<compile_context>
chip_gen: v7x
topology: tpu7x:2x2x1
jax: 0.10.0
libtpu: 0.0.40
codegen_flags: <defaults>
</compile_context>

<pallas_src>
import jax
import jax.numpy as jnp
from jax.experimental import pallas as pl
from jax.experimental.pallas import tpu as pltpu


# ----------------------------- Pallas kernel --------------------------------
def _lstm_cell(gates, h_prev, c_prev, mask_hw, H):
    # PyTorch LSTM gate order: i, f, g, o  (lane-aligned slices when H % 128 == 0)
    i_g = jax.nn.sigmoid(gates[:, 0 * H:1 * H])
    f_g = jax.nn.sigmoid(gates[:, 1 * H:2 * H])
    g_g = jnp.tanh(gates[:, 2 * H:3 * H])
    o_g = jax.nn.sigmoid(gates[:, 3 * H:4 * H])
    c_new = f_g * c_prev + i_g * g_g
    h_new = o_g * jnp.tanh(c_new)
    # packed-sequence semantics: freeze state once t >= length
    c_out = jnp.where(mask_hw, c_new, c_prev)
    h_out = jnp.where(mask_hw, h_new, h_prev)
    return h_out, c_out


def disc_decoder_kernel(xp_ref, len_ref, enc_ref, whh0_ref, wfused_ref, b_ref,
                        out_ref, h_scr, c_scr):
    """One (N-block, timestep) grid point of the option LSTM + scoring."""
    t = pl.program_id(1)
    n_t = pl.num_programs(1)
    L, n_blk, H = h_scr.shape

    @pl.when(t == 0)
    def _init():
        h_scr[...] = jnp.zeros_like(h_scr)
        c_scr[...] = jnp.zeros_like(c_scr)

    # hoisted mask broadcast: computed once per timestep, reused by all layers
    mask_hw = jnp.broadcast_to(len_ref[...] > t, (n_blk, H))

    # ---- layer 0: input projection (+ bias) precomputed in the wrapper ----
    h0 = h_scr[0]
    c0 = c_scr[0]
    gates0 = xp_ref[0] + jnp.dot(h0.astype(jnp.bfloat16), whh0_ref[...],
                                 preferred_element_type=jnp.float32)
    h_new, c_new = _lstm_cell(gates0, h0, c0, mask_hw, H)
    h_scr[0] = h_new
    c_scr[0] = c_new
    prev_h = h_new

    # ---- layers 1..L-1: fused [input ; hidden] x [W_ih ; W_hh] matmul ----
    for l in range(1, L):
        hl = h_scr[l]
        cl = c_scr[l]
        cat = jnp.concatenate([prev_h, hl], axis=1).astype(jnp.bfloat16)
        gates = jnp.dot(cat, wfused_ref[l - 1],
                        preferred_element_type=jnp.float32) + b_ref[l - 1]
        h_new, c_new = _lstm_cell(gates, hl, cl, mask_hw, H)
        h_scr[l] = h_new
        c_scr[l] = c_new
        prev_h = h_new

    # ---- finalize: score = <options_embed, encoder_output>, lane-dense row ----
    @pl.when(t == n_t - 1)
    def _finalize():
        scores = jnp.sum(prev_h * enc_ref[...], axis=1)       # (n_blk,)
        out_ref[...] = scores.reshape(1, 1, n_blk)


# ------------------------------- wrapper -------------------------------------
def disc_decoder_pallas(x_tne, lengths_n, enc_nh, w_ih_list, w_hh_list,
                        b_ih_list, b_hh_list, *, n_blk=128):
    """x_tne: (T, N, E) f32 embedded options (time-major); lengths_n: (N,) i32;
    enc_nh: (N, H) f32 encoder output repeated per option; per-layer params."""
    T, N, E = x_tne.shape
    H = w_hh_list[0].shape[0]
    L = len(w_ih_list)

    # Hoist the layer-0 input projection out of the recurrence: one large
    # (T*N, E) x (E, 4H) matmul, bf16 operands / f32 accumulate.
    b0 = (b_ih_list[0] + b_hh_list[0]).astype(jnp.float32)
    x_proj = jnp.einsum(
        'tne,eg->tng',
        x_tne.astype(jnp.bfloat16), w_ih_list[0].astype(jnp.bfloat16),
        preferred_element_type=jnp.float32) + b0[None, None, :]   # (T, N, 4H)

    # Fused [W_ih ; W_hh] weights for layers >= 1 (handles E != H naturally).
    if L > 1:
        w_fused = jnp.stack([
            jnp.concatenate([w_ih_list[l], w_hh_list[l]], axis=0)
            for l in range(1, L)]).astype(jnp.bfloat16)           # (L-1, 2H, 4H)
        b_rest = jnp.stack([
            (b_ih_list[l] + b_hh_list[l]).astype(jnp.float32)[None, :]
            for l in range(1, L)])                                # (L-1, 1, 4H)
    else:
        w_fused = jnp.zeros((1, 2 * H, 4 * H), jnp.bfloat16)      # dummy, unused
        b_rest = jnp.zeros((1, 1, 4 * H), jnp.float32)
    w_hh0 = w_hh_list[0].astype(jnp.bfloat16)                     # (H, 4H)

    # Pad N up to a multiple of the block size (padded rows: length 0 -> score 0).
    n_pad = pl.cdiv(N, n_blk) * n_blk
    pad = n_pad - N
    if pad:
        x_proj = jnp.pad(x_proj, ((0, 0), (0, pad), (0, 0)))
        lengths_n = jnp.pad(lengths_n, ((0, pad),))
        enc_nh = jnp.pad(enc_nh, ((0, pad), (0, 0)))
    lengths_n1 = lengths_n.reshape(n_pad, 1).astype(jnp.int32)
    num_blocks = n_pad // n_blk

    flops = 2 * T * n_pad * (H * 4 * H + max(L - 1, 0) * 2 * H * 4 * H)
    transcendentals = 5 * T * n_pad * L * H
    bytes_accessed = (x_proj.size * 4 + enc_nh.size * 4 + lengths_n1.size * 4
                      + w_hh0.size * 2 + w_fused.size * 2 + b_rest.size * 4
                      + n_pad * 4)

    out = pl.pallas_call(
        disc_decoder_kernel,
        out_shape=jax.ShapeDtypeStruct((num_blocks, 1, n_blk), jnp.float32),
        grid_spec=pltpu.PrefetchScalarGridSpec(
            num_scalar_prefetch=0,
            grid=(num_blocks, T),                       # (N blocks, timesteps)
            in_specs=[
                # x_proj: one timestep per grid step (streamed, double-buffered)
                pl.BlockSpec((1, n_blk, 4 * H), lambda n, t: (t, n, 0)),
                # lengths / encoder output: fixed per N-block (no re-DMA over t)
                pl.BlockSpec((n_blk, 1), lambda n, t: (n, 0)),
                pl.BlockSpec((n_blk, H), lambda n, t: (n, 0)),
                # weights / bias: constant index maps -> stay VMEM resident
                pl.BlockSpec((H, 4 * H), lambda n, t: (0, 0)),
                pl.BlockSpec(w_fused.shape, lambda n, t: (0, 0, 0)),
                pl.BlockSpec(b_rest.shape, lambda n, t: (0, 0, 0)),
            ],
            out_specs=pl.BlockSpec((1, 1, n_blk), lambda n, t: (n, 0, 0)),
            scratch_shapes=[
                pltpu.VMEM((L, n_blk, H), jnp.float32),   # h state per layer
                pltpu.VMEM((L, n_blk, H), jnp.float32),   # c state per layer
            ],
        ),
        compiler_params=pltpu.CompilerParams(
            dimension_semantics=("parallel", "arbitrary"),
            vmem_limit_bytes=32 * 1024 * 1024,
        ),
        cost_estimate=pl.CostEstimate(
            flops=flops, transcendentals=transcendentals,
            bytes_accessed=bytes_accessed),
    )(x_proj, lengths_n1, enc_nh, w_hh0, w_fused, b_rest)

    return out.reshape(n_pad)[:N]


# --------------------------- pure-JAX reference ------------------------------
def disc_decoder_ref(x_tne, lengths_n1, enc_nh, w_ih_list, w_hh_list,
                     b_ih_list, b_hh_list):
    T, N, E = x_tne.shape
    H = w_hh_list[0].shape[0]
    L = len(w_ih_list)
    hs = [jnp.zeros((N, H), jnp.float32) for _ in range(L)]
    cs = [jnp.zeros((N, H), jnp.float32) for _ in range(L)]
    for t in range(T):
        mask = lengths_n1 > t
        inp = x_tne[t]
        for l in range(L):
            gates = (inp @ w_ih_list[l] + hs[l] @ w_hh_list[l]
                     + b_ih_list[l] + b_hh_list[l])
            i_g = jax.nn.sigmoid(gates[:, 0 * H:1 * H])
            f_g = jax.nn.sigmoid(gates[:, 1 * H:2 * H])
            g_g = jnp.tanh(gates[:, 2 * H:3 * H])
            o_g = jax.nn.sigmoid(gates[:, 3 * H:4 * H])
            c_new = f_g * cs[l] + i_g * g_g
            h_new = o_g * jnp.tanh(c_new)
            cs[l] = jnp.where(mask, c_new, cs[l])
            hs[l] = jnp.where(mask, h_new, hs[l])
            inp = hs[l]
    return jnp.sum(hs[-1] * enc_nh, axis=1)


# --------------------------------- driver ------------------------------------
if __name__ == "__main__":
    # small config consistent with the module's opt (H chosen lane-aligned)
    B, R, O, T = 2, 4, 32, 8            # batch, num_rounds, num_options, seq
    VOCAB = 50
    E = 64                              # word_embedding_size  (E != H supported)
    H = 128                             # lstm_hidden_size
    L = 2                               # lstm_num_layers
    PAD = 0
    N = B * R * O                       # 256 -> 2 grid blocks of 128

    key = jax.random.PRNGKey(0)
    k_emb, k_opt, k_len, k_enc, k_w = jax.random.split(key, 5)

    # ---- deterministic parameter init (synthetic, not a checkpoint) ----
    word_embed = 0.1 * jax.random.normal(k_emb, (VOCAB, E), jnp.float32)
    word_embed = word_embed.at[PAD].set(0.0)     # padding_idx row = 0

    w_ih_list, w_hh_list, b_ih_list, b_hh_list = [], [], [], []
    wkeys = jax.random.split(k_w, 4 * L)
    for l in range(L):
        in_dim = E if l == 0 else H
        w_ih_list.append(0.1 * jax.random.normal(wkeys[4 * l + 0],
                                                 (in_dim, 4 * H), jnp.float32))
        w_hh_list.append(0.1 * jax.random.normal(wkeys[4 * l + 1],
                                                 (H, 4 * H), jnp.float32))
        b_ih_list.append(0.1 * jax.random.normal(wkeys[4 * l + 2],
                                                 (4 * H,), jnp.float32))
        b_hh_list.append(0.1 * jax.random.normal(wkeys[4 * l + 3],
                                                 (4 * H,), jnp.float32))
    # TODO(synk): inter-layer LSTM dropout (opt.dropout) is training-only; eval semantics here.

    # ---- deterministic inputs (batch['opt'], batch['opt_len'], encoder_output)
    options = jax.random.randint(k_opt, (B, R, O, T), 1, VOCAB, jnp.int32)
    opt_len = jax.random.randint(k_len, (B, R, O), 0, T + 1, jnp.int32)
    opt_len = opt_len.at[0, 0, 0].set(0)         # exercise zero-length path
    t_idx = jnp.arange(T, dtype=jnp.int32)[None, None, None, :]
    options = jnp.where(t_idx < opt_len[..., None], options, PAD)
    encoder_output = jax.random.normal(k_enc, (B, R, H), jnp.float32)

    # ---- glue (embedding gather, encoder repeat, reshape) in plain JAX ----
    opt_flat = options.reshape(N, T)
    len_flat = opt_len.reshape(N).astype(jnp.int32)
    x = word_embed[opt_flat]                                   # (N, T, E)
    x_tne = jnp.transpose(x, (1, 0, 2)).astype(jnp.float32)    # time-major (T,N,E)
    enc_rep = jnp.broadcast_to(encoder_output[:, :, None, :],
                               (B, R, O, H)).reshape(N, H).astype(jnp.float32)

    # ---- kernel ----
    scores_flat = disc_decoder_pallas(x_tne, len_flat, enc_rep,
                                      w_ih_list, w_hh_list,
                                      b_ih_list, b_hh_list, n_blk=128)
    scores = scores_flat.reshape(B, R, O)
    jax.block_until_ready(scores)

    # ---- check against pure-f32 JAX reference (bf16 matmuls -> loose tol) ----
    ref = disc_decoder_ref(x_tne, len_flat.reshape(N, 1), enc_rep,
                           w_ih_list, w_hh_list, b_ih_list, b_hh_list)
    ref = ref.reshape(B, R, O)
    assert jnp.allclose(scores, ref, atol=5e-2, rtol=5e-2), (
        float(jnp.max(jnp.abs(scores - ref))))

    print("KERNEL_OK")
</pallas_src>

<mosaic_0001>
module attributes {stable_mosaic.version = 11 : i64} {
  func.func @disc_decoder_kernel(%arg0: i32, %arg1: i32, %arg2: memref<1x128x512xf32, #tpu.memory_space<vmem>>, %arg3: memref<128x1xi32, #tpu.memory_space<vmem>>, %arg4: memref<128x128xf32, #tpu.memory_space<vmem>>, %arg5: memref<128x512xbf16, #tpu.memory_space<vmem>>, %arg6: memref<1x256x512xbf16, #tpu.memory_space<vmem>>, %arg7: memref<1x1x512xf32, #tpu.memory_space<vmem>>, %arg8: memref<1x1x128xf32, #tpu.memory_space<vmem>>, %arg9: memref<2x128x128xf32, #tpu.memory_space<vmem>>, %arg10: memref<2x128x128xf32, #tpu.memory_space<vmem>>) attributes {dimension_semantics = [#tpu.dimension_semantics<parallel>, #tpu.dimension_semantics<arbitrary>], iteration_bounds = array<i64: 2, 8>, scalar_prefetch = 0 : i64, scratch_operands = 2 : i64, tpu.core_type = #tpu.core_type<tc>, window_params = [{transform_indices = @transform_0, window_bounds = array<i64: 1, 128, 512>}, {transform_indices = @transform_1, window_bounds = array<i64: 128, 1>}, {transform_indices = @transform_2, window_bounds = array<i64: 128, 128>}, {pipeline_mode = #tpu.pipeline_mode<synchronous>, transform_indices = @transform_3, window_bounds = array<i64: 128, 512>}, {pipeline_mode = #tpu.pipeline_mode<synchronous>, transform_indices = @transform_4, window_bounds = array<i64: 1, 256, 512>}, {pipeline_mode = #tpu.pipeline_mode<synchronous>, transform_indices = @transform_5, window_bounds = array<i64: 1, 1, 512>}, {transform_indices = @transform_6, window_bounds = array<i64: 1, 1, 128>}]} {
    %c0_i32 = arith.constant 0 : i32
    %0 = arith.cmpi eq, %arg1, %c0_i32 : i32
    %1 = arith.extui %0 : i1 to i32
    %c0_i32_0 = arith.constant 0 : i32
    %2 = arith.cmpi ne, %1, %c0_i32_0 : i32
    scf.if %2 {
      %cst_44 = arith.constant 0.000000e+00 : f32
      %100 = vector.broadcast %cst_44 : f32 to vector<2x128x128xf32>
      %c0_45 = arith.constant 0 : index
      %c0_46 = arith.constant 0 : index
      %c0_47 = arith.constant 0 : index
      %101 = vector.load %arg9[%c0_45, %c0_46, %c0_47] : memref<2x128x128xf32, #tpu.memory_space<vmem>>, vector<2x128x128xf32>
      tpu.vector_store %arg9[%c0_45, %c0_46, %c0_47], %100 {strides = array<i32>} : memref<2x128x128xf32, #tpu.memory_space<vmem>>, vector<2x128x128xf32>,
      %cst_48 = arith.constant 0.000000e+00 : f32
      %102 = vector.broadcast %cst_48 : f32 to vector<2x128x128xf32>
      %c0_49 = arith.constant 0 : index
      %c0_50 = arith.constant 0 : index
      %c0_51 = arith.constant 0 : index
      %103 = vector.load %arg10[%c0_49, %c0_50, %c0_51] : memref<2x128x128xf32, #tpu.memory_space<vmem>>, vector<2x128x128xf32>
      tpu.vector_store %arg10[%c0_49, %c0_50, %c0_51], %102 {strides = array<i32>} : memref<2x128x128xf32, #tpu.memory_space<vmem>>, vector<2x128x128xf32>,
    } else {
    }
    %c0 = arith.constant 0 : index
    %c0_1 = arith.constant 0 : index
    %3 = vector.load %arg3[%c0, %c0_1] : memref<128x1xi32, #tpu.memory_space<vmem>>, vector<128x1xi32>
    %4 = vector.broadcast %arg1 : i32 to vector<128x1xi32>
    %5 = arith.cmpi sgt, %3, %4 : vector<128x1xi32>
    %6 = vector.shape_cast %5 : vector<128x1xi1> to vector<128x1xi1>
    %7 = vector.broadcast %6 : vector<128x1xi1> to vector<128x128xi1>
    %c0_2 = arith.constant 0 : index
    %c0_3 = arith.constant 0 : index
    %c0_4 = arith.constant 0 : index
    %8 = vector.load %arg9[%c0_2, %c0_3, %c0_4] : memref<2x128x128xf32, #tpu.memory_space<vmem>>, vector<1x128x128xf32>
    %9 = vector.shape_cast %8 : vector<1x128x128xf32> to vector<128x128xf32>
    %c0_5 = arith.constant 0 : index
    %c0_6 = arith.constant 0 : index
    %c0_7 = arith.constant 0 : index
    %10 = vector.load %arg10[%c0_5, %c0_6, %c0_7] : memref<2x128x128xf32, #tpu.memory_space<vmem>>, vector<1x128x128xf32>
    %11 = vector.shape_cast %10 : vector<1x128x128xf32> to vector<128x128xf32>
    %c0_8 = arith.constant 0 : index
    %c0_9 = arith.constant 0 : index
    %c0_10 = arith.constant 0 : index
    %12 = vector.load %arg2[%c0_8, %c0_9, %c0_10] : memref<1x128x512xf32, #tpu.memory_space<vmem>>, vector<1x128x512xf32>
    %13 = vector.shape_cast %12 : vector<1x128x512xf32> to vector<128x512xf32>
    %14 = arith.truncf %9 : vector<128x128xf32> to vector<128x128xbf16>
    %c0_11 = arith.constant 0 : index
    %c0_12 = arith.constant 0 : index
    %15 = vector.load %arg5[%c0_11, %c0_12] : memref<128x512xbf16, #tpu.memory_space<vmem>>, vector<128x512xbf16>
    %cst = arith.constant dense<0.000000e+00> : vector<128x512xf32>
    %16 = tpu.matmul %14, %15, %cst {dimension_numbers = #tpu.dot_dimension_numbers<[1], [0], [0], [1], [0, 0, 1, 1], [], []>} : vector<128x128xbf16>, vector<128x512xbf16>, vector<128x512xf32> -> vector<128x512xf32>
    %17 = arith.addf %13, %16 : vector<128x512xf32>
    %18 = vector.extract_strided_slice %17 {offsets = [0, 0], sizes = [128, 128], strides = [1, 1]} : vector<128x512xf32> to vector<128x128xf32>
    %19 = arith.negf %18 : vector<128x128xf32>
    %20 = math.exp %19 : vector<128x128xf32>
    %cst_13 = arith.constant 1.000000e+00 : f32
    %21 = vector.broadcast %cst_13 : f32 to vector<128x128xf32>
    %22 = arith.addf %21, %20 : vector<128x128xf32>
    %23 = arith.divf %21, %22 : vector<128x128xf32>
    %24 = vector.extract_strided_slice %17 {offsets = [0, 128], sizes = [128, 128], strides = [1, 1]} : vector<128x512xf32> to vector<128x128xf32>
    %25 = arith.negf %24 : vector<128x128xf32>
    %26 = math.exp %25 : vector<128x128xf32>
    %cst_14 = arith.constant 1.000000e+00 : f32
    %27 = vector.broadcast %cst_14 : f32 to vector<128x128xf32>
    %28 = arith.addf %27, %26 : vector<128x128xf32>
    %29 = arith.divf %27, %28 : vector<128x128xf32>
    %30 = vector.extract_strided_slice %17 {offsets = [0, 256], sizes = [128, 128], strides = [1, 1]} : vector<128x512xf32> to vector<128x128xf32>
    %31 = math.tanh %30 : vector<128x128xf32>
    %32 = vector.extract_strided_slice %17 {offsets = [0, 384], sizes = [128, 128], strides = [1, 1]} : vector<128x512xf32> to vector<128x128xf32>
    %33 = arith.negf %32 : vector<128x128xf32>
    %34 = math.exp %33 : vector<128x128xf32>
    %cst_15 = arith.constant 1.000000e+00 : f32
    %35 = vector.broadcast %cst_15 : f32 to vector<128x128xf32>
    %36 = arith.addf %35, %34 : vector<128x128xf32>
    %37 = arith.divf %35, %36 : vector<128x128xf32>
    %38 = arith.mulf %29, %11 : vector<128x128xf32>
    %39 = arith.mulf %23, %31 : vector<128x128xf32>
    %40 = arith.addf %38, %39 : vector<128x128xf32>
    %41 = math.tanh %40 : vector<128x128xf32>
    %42 = arith.mulf %37, %41 : vector<128x128xf32>
    %43 = arith.select %7, %40, %11 : vector<128x128xi1>, vector<128x128xf32>
    %44 = arith.select %7, %42, %9 : vector<128x128xi1>, vector<128x128xf32>
    %c0_16 = arith.constant 0 : index
    %c0_17 = arith.constant 0 : index
    %c0_18 = arith.constant 0 : index
    %45 = vector.load %arg9[%c0_16, %c0_17, %c0_18] : memref<2x128x128xf32, #tpu.memory_space<vmem>>, vector<1x128x128xf32>
    %46 = vector.shape_cast %45 : vector<1x128x128xf32> to vector<128x128xf32>
    %47 = vector.shape_cast %44 : vector<128x128xf32> to vector<1x128x128xf32>
    tpu.vector_store %arg9[%c0_16, %c0_17, %c0_18], %47 {strides = array<i32>} : memref<2x128x128xf32, #tpu.memory_space<vmem>>, vector<1x128x128xf32>,
    %c0_19 = arith.constant 0 : index
    %c0_20 = arith.constant 0 : index
    %c0_21 = arith.constant 0 : index
    %48 = vector.load %arg10[%c0_19, %c0_20, %c0_21] : memref<2x128x128xf32, #tpu.memory_space<vmem>>, vector<1x128x128xf32>
    %49 = vector.shape_cast %48 : vector<1x128x128xf32> to vector<128x128xf32>
    %50 = vector.shape_cast %43 : vector<128x128xf32> to vector<1x128x128xf32>
    tpu.vector_store %arg10[%c0_19, %c0_20, %c0_21], %50 {strides = array<i32>} : memref<2x128x128xf32, #tpu.memory_space<vmem>>, vector<1x128x128xf32>,
    %c1 = arith.constant 1 : index
    %c0_22 = arith.constant 0 : index
    %c0_23 = arith.constant 0 : index
    %51 = vector.load %arg9[%c1, %c0_22, %c0_23] : memref<2x128x128xf32, #tpu.memory_space<vmem>>, vector<1x128x128xf32>
    %52 = vector.shape_cast %51 : vector<1x128x128xf32> to vector<128x128xf32>
    %c1_24 = arith.constant 1 : index
    %c0_25 = arith.constant 0 : index
    %c0_26 = arith.constant 0 : index
    %53 = vector.load %arg10[%c1_24, %c0_25, %c0_26] : memref<2x128x128xf32, #tpu.memory_space<vmem>>, vector<1x128x128xf32>
    %54 = vector.shape_cast %53 : vector<1x128x128xf32> to vector<128x128xf32>
    %55 = tpu.concatenate %44, %52 in 1 : vector<128x128xf32>, vector<128x128xf32> -> vector<128x256xf32>
    %56 = arith.truncf %55 : vector<128x256xf32> to vector<128x256xbf16>
    %c0_27 = arith.constant 0 : index
    %c0_28 = arith.constant 0 : index
    %c0_29 = arith.constant 0 : index
    %57 = vector.load %arg6[%c0_27, %c0_28, %c0_29] : memref<1x256x512xbf16, #tpu.memory_space<vmem>>, vector<1x256x512xbf16>
    %58 = vector.shape_cast %57 : vector<1x256x512xbf16> to vector<256x512xbf16>
    %cst_30 = arith.constant dense<0.000000e+00> : vector<128x512xf32>
    %59 = tpu.matmul %56, %58, %cst_30 {dimension_numbers = #tpu.dot_dimension_numbers<[1], [0], [0], [1], [0, 0, 1, 1], [], []>} : vector<128x256xbf16>, vector<256x512xbf16>, vector<128x512xf32> -> vector<128x512xf32>
    %c0_31 = arith.constant 0 : index
    %c0_32 = arith.constant 0 : index
    %c0_33 = arith.constant 0 : index
    %60 = vector.load %arg7[%c0_31, %c0_32, %c0_33] : memref<1x1x512xf32, #tpu.memory_space<vmem>>, vector<1x1x512xf32>
    %61 = vector.shape_cast %60 : vector<1x1x512xf32> to vector<1x512xf32>
    %62 = vector.broadcast %61 : vector<1x512xf32> to vector<128x512xf32>
    %63 = arith.addf %59, %62 : vector<128x512xf32>
    %64 = vector.extract_strided_slice %63 {offsets = [0, 0], sizes = [128, 128], strides = [1, 1]} : vector<128x512xf32> to vector<128x128xf32>
    %65 = arith.negf %64 : vector<128x128xf32>
    %66 = math.exp %65 : vector<128x128xf32>
    %cst_34 = arith.constant 1.000000e+00 : f32
    %67 = vector.broadcast %cst_34 : f32 to vector<128x128xf32>
    %68 = arith.addf %67, %66 : vector<128x128xf32>
    %69 = arith.divf %67, %68 : vector<128x128xf32>
    %70 = vector.extract_strided_slice %63 {offsets = [0, 128], sizes = [128, 128], strides = [1, 1]} : vector<128x512xf32> to vector<128x128xf32>
    %71 = arith.negf %70 : vector<128x128xf32>
    %72 = math.exp %71 : vector<128x128xf32>
    %cst_35 = arith.constant 1.000000e+00 : f32
    %73 = vector.broadcast %cst_35 : f32 to vector<128x128xf32>
    %74 = arith.addf %73, %72 : vector<128x128xf32>
    %75 = arith.divf %73, %74 : vector<128x128xf32>
    %76 = vector.extract_strided_slice %63 {offsets = [0, 256], sizes = [128, 128], strides = [1, 1]} : vector<128x512xf32> to vector<128x128xf32>
    %77 = math.tanh %76 : vector<128x128xf32>
    %78 = vector.extract_strided_slice %63 {offsets = [0, 384], sizes = [128, 128], strides = [1, 1]} : vector<128x512xf32> to vector<128x128xf32>
    %79 = arith.negf %78 : vector<128x128xf32>
    %80 = math.exp %79 : vector<128x128xf32>
    %cst_36 = arith.constant 1.000000e+00 : f32
    %81 = vector.broadcast %cst_36 : f32 to vector<128x128xf32>
    %82 = arith.addf %81, %80 : vector<128x128xf32>
    %83 = arith.divf %81, %82 : vector<128x128xf32>
    %84 = arith.mulf %75, %54 : vector<128x128xf32>
    %85 = arith.mulf %69, %77 : vector<128x128xf32>
    %86 = arith.addf %84, %85 : vector<128x128xf32>
    %87 = math.tanh %86 : vector<128x128xf32>
    %88 = arith.mulf %83, %87 : vector<128x128xf32>
    %89 = arith.select %7, %86, %54 : vector<128x128xi1>, vector<128x128xf32>
    %90 = arith.select %7, %88, %52 : vector<128x128xi1>, vector<128x128xf32>
    %c1_37 = arith.constant 1 : index
    %c0_38 = arith.constant 0 : index
    %c0_39 = arith.constant 0 : index
    %91 = vector.load %arg9[%c1_37, %c0_38, %c0_39] : memref<2x128x128xf32, #tpu.memory_space<vmem>>, vector<1x128x128xf32>
    %92 = vector.shape_cast %91 : vector<1x128x128xf32> to vector<128x128xf32>
    %93 = vector.shape_cast %90 : vector<128x128xf32> to vector<1x128x128xf32>
    tpu.vector_store %arg9[%c1_37, %c0_38, %c0_39], %93 {strides = array<i32>} : memref<2x128x128xf32, #tpu.memory_space<vmem>>, vector<1x128x128xf32>,
    %c1_40 = arith.constant 1 : index
    %c0_41 = arith.constant 0 : index
    %c0_42 = arith.constant 0 : index
    %94 = vector.load %arg10[%c1_40, %c0_41, %c0_42] : memref<2x128x128xf32, #tpu.memory_space<vmem>>, vector<1x128x128xf32>
    %95 = vector.shape_cast %94 : vector<1x128x128xf32> to vector<128x128xf32>
    %96 = vector.shape_cast %89 : vector<128x128xf32> to vector<1x128x128xf32>
    tpu.vector_store %arg10[%c1_40, %c0_41, %c0_42], %96 {strides = array<i32>} : memref<2x128x128xf32, #tpu.memory_space<vmem>>, vector<1x128x128xf32>,
    %c7_i32 = arith.constant 7 : i32
    %97 = arith.cmpi eq, %arg1, %c7_i32 : i32
    %98 = arith.extui %97 : i1 to i32
    %c0_i32_43 = arith.constant 0 : i32
    %99 = arith.cmpi ne, %98, %c0_i32_43 : i32
    scf.if %99 {
      %c0_44 = arith.constant 0 : index
      %c0_45 = arith.constant 0 : index
      %100 = vector.load %arg4[%c0_44, %c0_45] : memref<128x128xf32, #tpu.memory_space<vmem>>, vector<128x128xf32>
      %101 = arith.mulf %90, %100 : vector<128x128xf32>
      %cst_46 = arith.constant dense<0.000000e+00> : vector<128xf32>
      %102 = vector.multi_reduction <add>, %101, %cst_46 [1] : vector<128x128xf32> to vector<128xf32>
      %103 = vector.shape_cast %102 : vector<128xf32> to vector<1x1x128xf32>
      %c0_47 = arith.constant 0 : index
      %c0_48 = arith.constant 0 : index
      %c0_49 = arith.constant 0 : index
      %104 = vector.load %arg8[%c0_47, %c0_48, %c0_49] : memref<1x1x128xf32, #tpu.memory_space<vmem>>, vector<1x1x128xf32>
      tpu.vector_store %arg8[%c0_47, %c0_48, %c0_49], %103 {strides = array<i32>} : memref<1x1x128xf32, #tpu.memory_space<vmem>>, vector<1x1x128xf32>,
    } else {
    }
    return
  }
  func.func @transform_0(%arg0: i32, %arg1: i32) -> (i32, i32, i32) {
    %c0_i32 = arith.constant 0 : i32
    %c0_i32_0 = arith.constant 0 : i32
    return %arg1, %arg0, %c0_i32 : i32, i32, i32
  }
  func.func @transform_1(%arg0: i32, %arg1: i32) -> (i32, i32) {
    %c0_i32 = arith.constant 0 : i32
    %c0_i32_0 = arith.constant 0 : i32
    return %arg0, %c0_i32 : i32, i32
  }
  func.func @transform_2(%arg0: i32, %arg1: i32) -> (i32, i32) {
    %c0_i32 = arith.constant 0 : i32
    %c0_i32_0 = arith.constant 0 : i32
    return %arg0, %c0_i32 : i32, i32
  }
  func.func @transform_3(%arg0: i32, %arg1: i32) -> (i32, i32) {
    %c0_i32 = arith.constant 0 : i32
    %c0_i32_0 = arith.constant 0 : i32
    %c0_i32_1 = arith.constant 0 : i32
    return %c0_i32, %c0_i32_0 : i32, i32
  }
  func.func @transform_4(%arg0: i32, %arg1: i32) -> (i32, i32, i32) {
    %c0_i32 = arith.constant 0 : i32
    %c0_i32_0 = arith.constant 0 : i32
    %c0_i32_1 = arith.constant 0 : i32
    %c0_i32_2 = arith.constant 0 : i32
    return %c0_i32, %c0_i32_0, %c0_i32_1 : i32, i32, i32
  }
  func.func @transform_5(%arg0: i32, %arg1: i32) -> (i32, i32, i32) {
    %c0_i32 = arith.constant 0 : i32
    %c0_i32_0 = arith.constant 0 : i32
    %c0_i32_1 = arith.constant 0 : i32
    %c0_i32_2 = arith.constant 0 : i32
    return %c0_i32, %c0_i32_0, %c0_i32_1 : i32, i32, i32
  }
  func.func @transform_6(%arg0: i32, %arg1: i32) -> (i32, i32, i32) {
    %c0_i32 = arith.constant 0 : i32
    %c0_i32_0 = arith.constant 0 : i32
    %c0_i32_1 = arith.constant 0 : i32
    return %arg0, %c0_i32, %c0_i32_0 : i32, i32, i32
  }
}

</mosaic_0001>

<llo_original>
// kernel: tpu_custom_call.1
$region0: #{tpu_custom_call.1}
  #allocation0 [shape = 'u32[]', space=smem, size = 0x4, offset = 0x4, fixed_abs, tag = 'smem constant byte address 0x4 - core index']
  #allocation1 [shape = 'u32[144,128]{1,0:T(1,128)}', space=vmem, size = 0x12000, scoped, tag = 'internal scratch']
  #allocation2 [shape = 'f32[2,128,128]{2,1,0:T(8,128)}', space=vmem, size = 0x20000, scoped, tag = 'scratch operand']
  #allocation3 [shape = 'f32[2,128,128]{2,1,0:T(8,128)}', space=vmem, size = 0x20000, scoped, tag = 'scratch operand']
  %s0 = inlined_call_operand.hbm [shape: f32[8,256,512], index: 0, kind: input, shape index: {}]
  %s1 = inlined_call_operand.vmem [shape: s32[256,1], index: 1, kind: input, shape index: {}]
  %s2 = inlined_call_operand.hbm [shape: f32[256,128], index: 2, kind: input, shape index: {}]
  %s3 = inlined_call_operand.hbm [shape: bf16[128,512], index: 3, kind: input, shape index: {}]
  %s4 = inlined_call_operand.hbm [shape: bf16[1,256,512], index: 4, kind: input, shape index: {}]
  %s5 = inlined_call_operand.hbm [shape: f32[1,1,512], index: 5, kind: input, shape index: {}]
  %s6 = inlined_call_operand.hbm [shape: f32[2,1,128], index: 6, kind: output, shape index: {}]
  %s7 = sld [smem:[#allocation0]]
  $region85: #{tpu_custom_call.1} parent=0
    _
  %s9 = ssub.s32 1, %s7
  %s10 = scalar_select 0, %s9, %s7
  $region1: #{tpu_custom_call.1} parent=0
    #allocation4 [shape = 'u8[524288]{0}', space=vmem, size = 0x80000, scoped, tag = 'input window, operand 0']
    #allocation5 [shape = 's32[2]{0}', space=sflag, size = 0x8, scoped, tag = 'scoped memory for tpu_custom_call.1']
    #allocation6 [shape = 's32[2]{0}', space=sflag, size = 0x8, scoped, tag = 'scoped memory for tpu_custom_call.1']
    #allocation7 [shape = 'u8[131072]{0}', space=vmem, size = 0x20000, scoped, tag = 'input window, operand 2']
    #allocation8 [shape = 's32[2]{0}', space=sflag, size = 0x8, scoped, tag = 'scoped memory for tpu_custom_call.1']
    #allocation9 [shape = 'u8[131072]{0}', space=vmem, size = 0x20000, scoped, tag = 'input window, operand 3, single buffered']
    #allocation10 [shape = 'u8[262144]{0}', space=vmem, size = 0x40000, scoped, tag = 'input window, operand 4, single buffered']
    #allocation11 [shape = 's32[1]{0}', space=sflag, size = 0x4, scoped, tag = 'scoped memory for tpu_custom_call.1']
    #allocation12 [shape = 'u8[2048]{0}', space=vmem, size = 0x800, scoped, tag = 'input window, operand 5, single buffered']
    #allocation13 [shape = 'u8[1024]{0}', space=vmem, size = 0x400, scoped, tag = 'output window, operand 0']
    %11 = vsyncpa [#allocation5], 0
    %s12 = scalar_lea.sflag [#allocation5], 1
    %13 = vsyncpa %s12, 0
    %14 = vsyncpa [#allocation8], 0
    %s15 = scalar_lea.sflag [#allocation8], 1
    %16 = vsyncpa %s15, 0
    %17 = vsyncpa [#allocation11], 0
    %18 = vsyncpa [#allocation6], 0
    %s19 = scalar_lea.sflag [#allocation6], 1
    %20 = vsyncpa %s19, 0
    loop: start=0, step=1, limit=18
    $region2: #{tpu_custom_call.1} parent=1 // loop_pre_header
      _
    $region3: #{tpu_custom_call.1} parent=1 // loop_header
      %s22 = sphi 0, %s26
      %p23 = scmp.ge.s32.totalorder %s22, 18
      %s29 = sphi 0, %s41
      %s30 = sphi 0, %s37
      %s31 = sphi 0, %s29
      %s32 = sphi 0, %s30
      %s33 = sphi 0, %s31
      %s34 = sphi 0, %s32
      %s46 = sphi 0, %s48
      %s49 = sphi 0, %s46
      %s50 = sphi 0, %s49
      %s66 = sphi 0, %s50
      %s72 = sphi 0, %s74
      %s75 = sphi 0, %s72
      %s76 = sphi 0, %s75
      %s92 = sphi 0, %s76
      %s98 = sphi 0, %s100
      %s101 = sphi 0, %s98
      %s102 = sphi 0, %s101
      %s118 = sphi 0, %s102
      %s122 = sphi 0, %s122
      %s124 = sphi 0, %s122
      %s125 = sphi 0, %s124
      %s139 = sphi 0, %s125
      %s143 = sphi 0, %s143
      %s145 = sphi 0, %s143
      %s146 = sphi 0, %s145
      %s160 = sphi 0, %s146
      %s164 = sphi 0, %s164
      %s166 = sphi 0, %s164
      %s167 = sphi 0, %s166
      %s181 = sphi 0, %s167
      %s187 = sphi 0, %s189
      %s190 = sphi 0, %s187
      %s191 = sphi 0, %s190
      %s207 = sphi 0, %s191
    $region4: #{tpu_custom_call.1} parent=1 // loop_header_branch
      %25 = sbr.rel (%p23) target = $region8
    $region5: #{tpu_custom_call.1} parent=1 // loop_body
      %s27 = ssub.s32 %s22, 1
      %s28 = ssub.s32 %s22, 2
      %s35 = sadd.s32 1, %s30
      %p36 = scmp.ge.s32.totalorder %s35, 8
      %s37 = scalar_select %p36, 0, %s35
      %s38 = sadd.s32 1, %s29
      %s39 = scalar_select %p36, %s38, %s29
      %p40 = scmp.ge.s32.totalorder %s39, 2
      %s41 = scalar_select %p40, 0, %s39
      %s42 = ssub.s32 %s30, %s37
      %s43 = ssub.s32 %s29, %s41
      %s44 = sor.u32 %s42, %s43
      %p45 = scmp.eq.s32.totalorder %s44, 0
      %s47 = sadd.s32 %s46, 1
      %s48 = scalar_select %p45, %s46, %s47
      %p51 = pneg %p45
      %p52 = scmp.eq.s32.totalorder %s22, 15
      %p53 = por %p51, %p52
      %p54 = scmp.ne.s32.totalorder %s46, %s49
      %p55 = scmp.eq.s32.totalorder %s22, 0
      %p56 = por %p54, %p55
      %p57 = scmp.ne.s32.totalorder %s46, %s49
      %p58 = scmp.eq.s32.totalorder %s27, 15
      %p59 = por %p57, %p58
      %p60 = scmp.ne.s32.totalorder %s49, %s50
      %p61 = scmp.eq.s32.totalorder %s27, 0
      %p62 = por %p60, %p61
      %p63 = scmp.ne.s32.totalorder %s49, %s50
      %p64 = scmp.eq.s32.totalorder %s28, 15
      %p65 = por %p63, %p64
      %p67 = scmp.ne.s32.totalorder %s50, %s66
      %p68 = scmp.eq.s32.totalorder %s28, 0
      %p69 = por %p67, %p68
      %s70 = ssub.s32 %s29, %s41
      %p71 = scmp.eq.s32.totalorder %s70, 0
      %s73 = sadd.s32 %s72, 1
      %s74 = scalar_select %p71, %s72, %s73
      %p77 = pneg %p71
      %p78 = scmp.eq.s32.totalorder %s22, 15
      %p79 = por %p77, %p78
      %p80 = scmp.ne.s32.totalorder %s72, %s75
      %p81 = scmp.eq.s32.totalorder %s22, 0
      %p82 = por %p80, %p81
      %p83 = scmp.ne.s32.totalorder %s72, %s75
      %p84 = scmp.eq.s32.totalorder %s27, 15
      %p85 = por %p83, %p84
      %p86 = scmp.ne.s32.totalorder %s75, %s76
      %p87 = scmp.eq.s32.totalorder %s27, 0
      %p88 = por %p86, %p87
      %p89 = scmp.ne.s32.totalorder %s75, %s76
      %p90 = scmp.eq.s32.totalorder %s28, 15
      %p91 = por %p89, %p90
      %p93 = scmp.ne.s32.totalorder %s76, %s92
      %p94 = scmp.eq.s32.totalorder %s28, 0
      %p95 = por %p93, %p94
      %s96 = ssub.s32 %s29, %s41
      %p97 = scmp.eq.s32.totalorder %s96, 0
      %s99 = sadd.s32 %s98, 1
      %s100 = scalar_select %p97, %s98, %s99
      %p103 = pneg %p97
      %p104 = scmp.eq.s32.totalorder %s22, 15
      %p105 = por %p103, %p104
      %p106 = scmp.ne.s32.totalorder %s98, %s101
      %p107 = scmp.eq.s32.totalorder %s22, 0
      %p108 = por %p106, %p107
      %p109 = scmp.ne.s32.totalorder %s98, %s101
      %p110 = scmp.eq.s32.totalorder %s27, 15
      %p111 = por %p109, %p110
      %p112 = scmp.ne.s32.totalorder %s101, %s102
      %p113 = scmp.eq.s32.totalorder %s27, 0
      %p114 = por %p112, %p113
      %p115 = scmp.ne.s32.totalorder %s101, %s102
      %p116 = scmp.eq.s32.totalorder %s28, 15
      %p117 = por %p115, %p116
      %p119 = scmp.ne.s32.totalorder %s102, %s118
      %p120 = scmp.eq.s32.totalorder %s28, 0
      %p121 = por %p119, %p120
      %s123 = sadd.s32 %s122, 1
      %p126 = scmp.eq.s32.totalorder %s22, 15
      %p127 = scmp.ne.s32.totalorder %s122, %s124
      %p128 = scmp.eq.s32.totalorder %s22, 0
      %p129 = por %p127, %p128
      %p130 = scmp.ne.s32.totalorder %s122, %s124
      %p131 = scmp.eq.s32.totalorder %s27, 15
      %p132 = por %p130, %p131
      %p133 = scmp.ne.s32.totalorder %s124, %s125
      %p134 = scmp.eq.s32.totalorder %s27, 0
      %p135 = por %p133, %p134
      %p136 = scmp.ne.s32.totalorder %s124, %s125
      %p137 = scmp.eq.s32.totalorder %s28, 15
      %p138 = por %p136, %p137
      %p140 = scmp.ne.s32.totalorder %s125, %s139
      %p141 = scmp.eq.s32.totalorder %s28, 0
      %p142 = por %p140, %p141
      %s144 = sadd.s32 %s143, 1
      %p147 = scmp.eq.s32.totalorder %s22, 15
      %p148 = scmp.ne.s32.totalorder %s143, %s145
      %p149 = scmp.eq.s32.totalorder %s22, 0
      %p150 = por %p148, %p149
      %p151 = scmp.ne.s32.totalorder %s143, %s145
      %p152 = scmp.eq.s32.totalorder %s27, 15
      %p153 = por %p151, %p152
      %p154 = scmp.ne.s32.totalorder %s145, %s146
      %p155 = scmp.eq.s32.totalorder %s27, 0
      %p156 = por %p154, %p155
      %p157 = scmp.ne.s32.totalorder %s145, %s146
      %p158 = scmp.eq.s32.totalorder %s28, 15
      %p159 = por %p157, %p158
      %p161 = scmp.ne.s32.totalorder %s146, %s160
      %p162 = scmp.eq.s32.totalorder %s28, 0
      %p163 = por %p161, %p162
      %s165 = sadd.s32 %s164, 1
      %p168 = scmp.eq.s32.totalorder %s22, 15
      %p169 = scmp.ne.s32.totalorder %s164, %s166
      %p170 = scmp.eq.s32.totalorder %s22, 0
      %p171 = por %p169, %p170
      %p172 = scmp.ne.s32.totalorder %s164, %s166
      %p173 = scmp.eq.s32.totalorder %s27, 15
      %p174 = por %p172, %p173
      %p175 = scmp.ne.s32.totalorder %s166, %s167
      %p176 = scmp.eq.s32.totalorder %s27, 0
      %p177 = por %p175, %p176
      %p178 = scmp.ne.s32.totalorder %s166, %s167
      %p179 = scmp.eq.s32.totalorder %s28, 15
      %p180 = por %p178, %p179
      %p182 = scmp.ne.s32.totalorder %s167, %s181
      %p183 = scmp.eq.s32.totalorder %s28, 0
      %p184 = por %p182, %p183
      %s185 = ssub.s32 %s29, %s41
      %p186 = scmp.eq.s32.totalorder %s185, 0
      %s188 = sadd.s32 %s187, 1
      %s189 = scalar_select %p186, %s187, %s188
      %p192 = pneg %p186
      %p193 = scmp.eq.s32.totalorder %s22, 15
      %p194 = por %p192, %p193
      %p195 = scmp.ne.s32.totalorder %s187, %s190
      %p196 = scmp.eq.s32.totalorder %s22, 0
      %p197 = por %p195, %p196
      %p198 = scmp.ne.s32.totalorder %s187, %s190
      %p199 = scmp.eq.s32.totalorder %s27, 15
      %p200 = por %p198, %p199
      %p201 = scmp.ne.s32.totalorder %s190, %s191
      %p202 = scmp.eq.s32.totalorder %s27, 0
      %p203 = por %p201, %p202
      %p204 = scmp.ne.s32.totalorder %s190, %s191
      %p205 = scmp.eq.s32.totalorder %s28, 15
      %p206 = por %p204, %p205
      %p208 = scmp.ne.s32.totalorder %s191, %s207
      %p209 = scmp.eq.s32.totalorder %s28, 0
      %p210 = por %p208, %p209
      %p211 = scmp.le.s32.totalorder 1, %s22
      %p212 = scmp.lt.s32.totalorder %s22, 17
      %p213 = pnand %p211, %p212
      %p214 = pneg %p213
      // Predicated region
      $region9: #{tpu_custom_call.1} parent=5 // pred_check
        _
      $region10: #{tpu_custom_call.1} parent=5 // pred_check_branch
        %216 = sbr.rel (%p213) target = $region12
      $region11: #{tpu_custom_call.1} parent=5 // pred_region
        %s217 = ssub.s32 %s22, 1
        // Predicated region
        $region13: #{tpu_custom_call.1} parent=11 // pred_check
          %p218 = pneg %p135
        $region14: #{tpu_custom_call.1} parent=11 // pred_check_branch
          %220 = sbr.rel (%p218) target = $region16
        $region15: #{tpu_custom_call.1} parent=11 // pred_region
          %s222 = ssub.s32 4096, 4096
          %223 = vsyncadd [#allocation8], %s222
          %s224 = sshll.u32 [#allocation9], 4
          %s225 = int_to_ptr.vmem [resolvable:$true] %s224
          %230 = dma.hbm_to_vmem [thread:$0]  %s3, 4096, %s225, [#allocation8], 256, 256, 16
        $region16: #{tpu_custom_call.1} parent=11 // pred_fallthru
          _
        // Predicated region
        $region17: #{tpu_custom_call.1} parent=11 // pred_check
          %p231 = pneg %p156
        $region18: #{tpu_custom_call.1} parent=11 // pred_check_branch
          %233 = sbr.rel (%p231) target = $region20
        $region19: #{tpu_custom_call.1} parent=11 // pred_region
          %s235 = ssub.s32 8192, 8192
          %236 = vsyncadd [#allocation11], %s235
          %s237 = sshll.u32 [#allocation10], 4
          %s238 = int_to_ptr.vmem [resolvable:$true] %s237
          %243 = dma.hbm_to_vmem [thread:$0]  %s4, 8192, %s238, [#allocation11], 256, 256, 16
        $region20: #{tpu_custom_call.1} parent=11 // pred_fallthru
          _
        // Predicated region
        $region21: #{tpu_custom_call.1} parent=11 // pred_check
          %p244 = pneg %p177
        $region22: #{tpu_custom_call.1} parent=11 // pred_check_branch
          %246 = sbr.rel (%p244) target = $region24
        $region23: #{tpu_custom_call.1} parent=11 // pred_region
          %s248 = ssub.s32 64, 64
          %249 = vsyncadd [#allocation11], %s248
          %s251 = sshll.u32 [#allocation12], 4
          %s252 = int_to_ptr.vmem [resolvable:$true] %s251
          %254 = dma.hbm_to_vmem [thread:$0]  %s5, 64, %s252, [#allocation11]
        $region24: #{tpu_custom_call.1} parent=11 // pred_fallthru
          _
      $region12: #{tpu_custom_call.1} parent=5 // pred_fallthru
        _
      %p255 = scmp.lt.s32.totalorder %s22, 16
      // Predicated region
      $region25: #{tpu_custom_call.1} parent=5 // pred_check
        %p256 = pneg %p255
      $region26: #{tpu_custom_call.1} parent=5 // pred_check_branch
        %258 = sbr.rel (%p256) target = $region28
      $region27: #{tpu_custom_call.1} parent=5 // pred_region
        // Predicated region
        $region29: #{tpu_custom_call.1} parent=27 // pred_check
          %p259 = pneg %p56
        $region30: #{tpu_custom_call.1} parent=27 // pred_check_branch
          %261 = sbr.rel (%p259) target = $region32
        $region31: #{tpu_custom_call.1} parent=27 // pred_region
          %s262 = sand.u32 %s46, 1
          %s263 = scalar_lea.sflag [#allocation5], %s262
          %s264 = sand.u32 %s46, 1
          %s265 = smul.addr %s264, 512
          %s266 = scalar_lea.vmem [#allocation4], %s265
          %s267 = smul.u32 16, %s29
          %s269 = ssub.s32 8192, 8192
          %270 = vsyncadd %s263, %s269
          %s271 = smul.addr %s267, 4
          %s272 = smul.addr %s30, 128
          %s273 = sadd.s32 %s271, %s272
          %s274 = smul.addr %s273, 128
          %s275 = scalar_lea.hbm %s0, %s274
          %s276 = sshll.u32 %s266, 4
          %s277 = int_to_ptr.vmem [resolvable:$true] %s276
          %282 = dma.hbm_to_vmem [thread:$0]  %s275, 8192, %s277, %s263, 512, 512, 32
        $region32: #{tpu_custom_call.1} parent=27 // pred_fallthru
          _
        // Predicated region
        $region33: #{tpu_custom_call.1} parent=27 // pred_check
          %p283 = pneg %p82
        $region34: #{tpu_custom_call.1} parent=27 // pred_check_branch
          %285 = sbr.rel (%p283) target = $region36
        $region35: #{tpu_custom_call.1} parent=27 // pred_region
          %s286 = smul.u32 16, %s29
          %p287 = scmp.lt.s32.totalorder %s286, 31
          %s288 = scalar_select %p287, %s286, 31
          %s289 = smul.addr %s288, 8
          %s290 = scalar_lea.vmem %s1, %s289
          %s291 = smul.u32 16, %s29
        $region36: #{tpu_custom_call.1} parent=27 // pred_fallthru
          _
        // Predicated region
        $region37: #{tpu_custom_call.1} parent=27 // pred_check
          %p292 = pneg %p108
        $region38: #{tpu_custom_call.1} parent=27 // pred_check_branch
          %294 = sbr.rel (%p292) target = $region40
        $region39: #{tpu_custom_call.1} parent=27 // pred_region
          %s295 = sand.u32 %s22, 1
          %s296 = scalar_lea.sflag [#allocation8], %s295
          %s297 = sand.u32 %s98, 1
          %s298 = smul.addr %s297, 128
          %s299 = scalar_lea.vmem [#allocation7], %s298
          %s300 = smul.u32 16, %s29
          %s302 = ssub.s32 2048, 2048
          %303 = vsyncadd %s296, %s302
          %s304 = smul.addr %s300, 128
          %s305 = scalar_lea.hbm %s2, %s304
          %s306 = sshll.u32 %s299, 4
          %s307 = int_to_ptr.vmem [resolvable:$true] %s306
          %312 = dma.hbm_to_vmem [thread:$0]  %s305, 2048, %s307, %s296, 128, 128, 8
        $region40: #{tpu_custom_call.1} parent=27 // pred_fallthru
          _
      $region28: #{tpu_custom_call.1} parent=5 // pred_fallthru
        _
      %p313 = scmp.le.s32.totalorder 1, %s22
      %p314 = scmp.lt.s32.totalorder %s22, 17
      %p315 = pnand %p313, %p314
      %p316 = pneg %p315
      // Predicated region
      $region41: #{tpu_custom_call.1} parent=5 // pred_check
        _
      $region42: #{tpu_custom_call.1} parent=5 // pred_check_branch
        %318 = sbr.rel (%p315) target = $region44
      $region43: #{tpu_custom_call.1} parent=5 // pred_region
        %s319 = ssub.s32 %s22, 1
        %s320 = sand.u32 %s49, 1
        %s321 = scalar_lea.sflag [#allocation5], %s320
        %s322 = sand.u32 %s49, 1
        %s323 = smul.addr %s322, 512
        %s324 = scalar_lea.vmem [#allocation4], %s323
        // Predicated region
        $region45: #{tpu_custom_call.1} parent=43 // pred_check
          %p325 = pneg %p62
        $region46: #{tpu_custom_call.1} parent=43 // pred_check_branch
          %327 = sbr.rel (%p325) target = $region48
        $region47: #{tpu_custom_call.1} parent=43 // pred_region
          %328 = dma.done %s321, 8192
        $region48: #{tpu_custom_call.1} parent=43 // pred_fallthru
          _
        %s329 = sand.u32 %s27, 1
        %s330 = scalar_lea.sflag [#allocation8], %s329
        %s331 = sand.u32 %s101, 1
        %s332 = smul.addr %s331, 128
        %s333 = scalar_lea.vmem [#allocation7], %s332
        // Predicated region
        $region49: #{tpu_custom_call.1} parent=43 // pred_check
          %p334 = pneg %p114
        $region50: #{tpu_custom_call.1} parent=43 // pred_check_branch
          %336 = sbr.rel (%p334) target = $region52
        $region51: #{tpu_custom_call.1} parent=43 // pred_region
          %337 = dma.done %s330, 2048
        $region52: #{tpu_custom_call.1} parent=43 // pred_fallthru
          _
        // Predicated region
        $region53: #{tpu_custom_call.1} parent=43 // pred_check
          %p338 = pneg %p135
        $region54: #{tpu_custom_call.1} parent=43 // pred_check_branch
          %340 = sbr.rel (%p338) target = $region56
        $region55: #{tpu_custom_call.1} parent=43 // pred_region
          %341 = dma.done [#allocation8], 4096
        $region56: #{tpu_custom_call.1} parent=43 // pred_fallthru
          _
        // Predicated region
        $region57: #{tpu_custom_call.1} parent=43 // pred_check
          %p342 = pneg %p156
        $region58: #{tpu_custom_call.1} parent=43 // pred_check_branch
          %344 = sbr.rel (%p342) target = $region60
        $region59: #{tpu_custom_call.1} parent=43 // pred_region
          %345 = dma.done [#allocation11], 8192
        $region60: #{tpu_custom_call.1} parent=43 // pred_fallthru
          _
        // Predicated region
        $region61: #{tpu_custom_call.1} parent=43 // pred_check
          %p346 = pneg %p177
        $region62: #{tpu_custom_call.1} parent=43 // pred_check_branch
          %348 = sbr.rel (%p346) target = $region64
        $region63: #{tpu_custom_call.1} parent=43 // pred_region
          %349 = dma.done [#allocation11], 64
        $region64: #{tpu_custom_call.1} parent=43 // pred_fallthru
          _
        %s350 = sand.u32 %s49, 1
        %s351 = scalar_lea.sflag [#allocation5], %s350
        %s352 = sand.u32 %s49, 1
        %s353 = smul.addr %s352, 512
        %s354 = scalar_lea.vmem [#allocation4], %s353
        %p355 = pneg %p62
        %p356 = pneg %p59
        %s357 = smul.u32 16, %s31
        %p358 = scmp.lt.s32.totalorder %s357, 31
        %s359 = scalar_select %p358, %s357, 31
        %s360 = smul.addr %s359, 8
        %s361 = scalar_lea.vmem %s1, %s360
        %p362 = pneg %p88
        %p363 = pneg %p85
        %s364 = sand.u32 %s27, 1
        %s365 = scalar_lea.sflag [#allocation8], %s364
        %s366 = sand.u32 %s101, 1
        %s367 = smul.addr %s366, 128
        %s368 = scalar_lea.vmem [#allocation7], %s367
        %p369 = pneg %p114
        %p370 = pneg %p111
        %p371 = pneg %p135
        %p372 = pneg %p132
        %p373 = pneg %p156
        %p374 = pneg %p153
        %p375 = pneg %p177
        %p376 = pneg %p174
        %p377 = pneg %p203
        %p378 = pneg %p200
        %s379 = sand.u32 %s190, 1
        %s380 = scalar_lea.sflag [#allocation6], %s379
        %s381 = sand.u32 %s190, 1
        %s382 = scalar_lea.vmem [#allocation13], %s381
        %s383 = smul.u32 16, %s31
        %s384 = smul.u32 16, %s31
        %p385 = scmp.lt.s32.totalorder %s384, 31
        %s386 = scalar_select %p385, %s384, 31
        %s387 = smul.addr %s386, 8
        %s388 = scalar_lea.vmem %s1, %s387
        %s389 = smul.u32 16, %s31
        %s390 = smul.u32 16, %s31
        %p392 = scmp.eq.s32.totalorder %s32, 0
        // Predicated region
        $region65: #{tpu_custom_call.1} parent=43 // pred_check
          %p393 = pneg %p392
        $region66: #{tpu_custom_call.1} parent=43 // pred_check_branch
          %395 = sbr.rel (%p393) target = $region68
        $region67: #{tpu_custom_call.1} parent=43 // pred_region
          %396 = vst [vmem:[#allocation2] sm:$0xff] 0.0
          %397 = vst [vmem:[#allocation2 + $0x8] sm:$0xff] 0.0
          %398 = vst [vmem:[#allocation2 + $0x10] sm:$0xff] 0.0
          %399 = vst [vmem:[#allocation2 + $0x18] sm:$0xff] 0.0
          %400 = vst [vmem:[#allocation2 + $0x20] sm:$0xff] 0.0
          %401 = vst [vmem:[#allocation2 + $0x28] sm:$0xff] 0.0
          %402 = vst [vmem:[#allocation2 + $0x30] sm:$0xff] 0.0
          %403 = vst [vmem:[#allocation2 + $0x38] sm:$0xff] 0.0
          %404 = vst [vmem:[#allocation2 + $0x40] sm:$0xff] 0.0
          %405 = vst [vmem:[#allocation2 + $0x48] sm:$0xff] 0.0
          %406 = vst [vmem:[#allocation2 + $0x50] sm:$0xff] 0.0
          %407 = vst [vmem:[#allocation2 + $0x58] sm:$0xff] 0.0
          %408 = vst [vmem:[#allocation2 + $0x60] sm:$0xff] 0.0
          %409 = vst [vmem:[#allocation2 + $0x68] sm:$0xff] 0.0
          %410 = vst [vmem:[#allocation2 + $0x70] sm:$0xff] 0.0
          %411 = vst [vmem:[#allocation2 + $0x78] sm:$0xff] 0.0
          %412 = vst [vmem:[#allocation2 + $0x80] sm:$0xff] 0.0
          %413 = vst [vmem:[#allocation2 + $0x88] sm:$0xff] 0.0
          %414 = vst [vmem:[#allocation2 + $0x90] sm:$0xff] 0.0
          %415 = vst [vmem:[#allocation2 + $0x98] sm:$0xff] 0.0
          %416 = vst [vmem:[#allocation2 + $0xa0] sm:$0xff] 0.0
          %417 = vst [vmem:[#allocation2 + $0xa8] sm:$0xff] 0.0
          %418 = vst [vmem:[#allocation2 + $0xb0] sm:$0xff] 0.0
          %419 = vst [vmem:[#allocation2 + $0xb8] sm:$0xff] 0.0
          %420 = vst [vmem:[#allocation2 + $0xc0] sm:$0xff] 0.0
          %421 = vst [vmem:[#allocation2 + $0xc8] sm:$0xff] 0.0
          %422 = vst [vmem:[#allocation2 + $0xd0] sm:$0xff] 0.0
          %423 = vst [vmem:[#allocation2 + $0xd8] sm:$0xff] 0.0
          %424 = vst [vmem:[#allocation2 + $0xe0] sm:$0xff] 0.0
          %425 = vst [vmem:[#allocation2 + $0xe8] sm:$0xff] 0.0
          %426 = vst [vmem:[#allocation2 + $0xf0] sm:$0xff] 0.0
          %427 = vst [vmem:[#allocation2 + $0xf8] sm:$0xff] 0.0
          %428 = vst [vmem:[#allocation3] sm:$0xff] 0.0
          %429 = vst [vmem:[#allocation3 + $0x8] sm:$0xff] 0.0
          %430 = vst [vmem:[#allocation3 + $0x10] sm:$0xff] 0.0
          %431 = vst [vmem:[#allocation3 + $0x18] sm:$0xff] 0.0
          %432 = vst [vmem:[#allocation3 + $0x20] sm:$0xff] 0.0
          %433 = vst [vmem:[#allocation3 + $0x28] sm:$0xff] 0.0
          %434 = vst [vmem:[#allocation3 + $0x30] sm:$0xff] 0.0
          %435 = vst [vmem:[#allocation3 + $0x38] sm:$0xff] 0.0
          %436 = vst [vmem:[#allocation3 + $0x40] sm:$0xff] 0.0
          %437 = vst [vmem:[#allocation3 + $0x48] sm:$0xff] 0.0
          %438 = vst [vmem:[#allocation3 + $0x50] sm:$0xff] 0.0
          %439 = vst [vmem:[#allocation3 + $0x58] sm:$0xff] 0.0
          %440 = vst [vmem:[#allocation3 + $0x60] sm:$0xff] 0.0
          %441 = vst [vmem:[#allocation3 + $0x68] sm:$0xff] 0.0
          %442 = vst [vmem:[#allocation3 + $0x70] sm:$0xff] 0.0
          %443 = vst [vmem:[#allocation3 + $0x78] sm:$0xff] 0.0
          %444 = vst [vmem:[#allocation3 + $0x80] sm:$0xff] 0.0
          %445 = vst [vmem:[#allocation3 + $0x88] sm:$0xff] 0.0
          %446 = vst [vmem:[#allocation3 + $0x90] sm:$0xff] 0.0
          %447 = vst [vmem:[#allocation3 + $0x98] sm:$0xff] 0.0
          %448 = vst [vmem:[#allocation3 + $0xa0] sm:$0xff] 0.0
          %449 = vst [vmem:[#allocation3 + $0xa8] sm:$0xff] 0.0
          %450 = vst [vmem:[#allocation3 + $0xb0] sm:$0xff] 0.0
          %451 = vst [vmem:[#allocation3 + $0xb8] sm:$0xff] 0.0
          %452 = vst [vmem:[#allocation3 + $0xc0] sm:$0xff] 0.0
          %453 = vst [vmem:[#allocation3 + $0xc8] sm:$0xff] 0.0
          %454 = vst [vmem:[#allocation3 + $0xd0] sm:$0xff] 0.0
          %455 = vst [vmem:[#allocation3 + $0xd8] sm:$0xff] 0.0
          %456 = vst [vmem:[#allocation3 + $0xe0] sm:$0xff] 0.0
          %457 = vst [vmem:[#allocation3 + $0xe8] sm:$0xff] 0.0
          %458 = vst [vmem:[#allocation3 + $0xf0] sm:$0xff] 0.0
          %459 = vst [vmem:[#allocation3 + $0xf8] sm:$0xff] 0.0
        $region68: #{tpu_custom_call.1} parent=43 // pred_fallthru
          _
        %v460 = vld [vmem:[%s388] sm:$0xff]
        %v461 = vld [vmem:[%s388 + $0x8] sm:$0xff]
        %v462 = vld [vmem:[%s388 + $0x10] sm:$0xff]
        %v463 = vld [vmem:[%s388 + $0x18] sm:$0xff]
        %v464 = vld [vmem:[%s388 + $0x20] sm:$0xff]
        %v465 = vld [vmem:[%s388 + $0x28] sm:$0xff]
        %v466 = vld [vmem:[%s388 + $0x30] sm:$0xff]
        %v467 = vld [vmem:[%s388 + $0x38] sm:$0xff]
        %v468 = vld [vmem:[%s388 + $0x40] sm:$0xff]
        %v469 = vld [vmem:[%s388 + $0x48] sm:$0xff]
        %v470 = vld [vmem:[%s388 + $0x50] sm:$0xff]
        %v471 = vld [vmem:[%s388 + $0x58] sm:$0xff]
        %v472 = vld [vmem:[%s388 + $0x60] sm:$0xff]
        %v473 = vld [vmem:[%s388 + $0x68] sm:$0xff]
        %v474 = vld [vmem:[%s388 + $0x70] sm:$0xff]
        %v475 = vld [vmem:[%s388 + $0x78] sm:$0xff]
        %v476 = vstv %s32
        %vm477 = vcmp.gt.s32.totalorder %v460, %v476
        %vm478 = vcmp.gt.s32.totalorder %v461, %v476
        %vm479 = vcmp.gt.s32.totalorder %v462, %v476
        %vm480 = vcmp.gt.s32.totalorder %v463, %v476
        %vm481 = vcmp.gt.s32.totalorder %v464, %v476
        %vm482 = vcmp.gt.s32.totalorder %v465, %v476
        %vm483 = vcmp.gt.s32.totalorder %v466, %v476
        %vm484 = vcmp.gt.s32.totalorder %v467, %v476
        %vm485 = vcmp.gt.s32.totalorder %v468, %v476
        %vm486 = vcmp.gt.s32.totalorder %v469, %v476
        %vm487 = vcmp.gt.s32.totalorder %v470, %v476
        %vm488 = vcmp.gt.s32.totalorder %v471, %v476
        %vm489 = vcmp.gt.s32.totalorder %v472, %v476
        %vm490 = vcmp.gt.s32.totalorder %v473, %v476
        %vm491 = vcmp.gt.s32.totalorder %v474, %v476
        %vm492 = vcmp.gt.s32.totalorder %v475, %v476
        %v493 = vsel %vm477, 1, 0
        %v494 = vsel %vm478, 1, 0
        %v495 = vsel %vm479, 1, 0
        %v496 = vsel %vm480, 1, 0
        %v497 = vsel %vm481, 1, 0
        %v498 = vsel %vm482, 1, 0
        %v499 = vsel %vm483, 1, 0
        %v500 = vsel %vm484, 1, 0
        %v501 = vsel %vm485, 1, 0
        %v502 = vsel %vm486, 1, 0
        %v503 = vsel %vm487, 1, 0
        %v504 = vsel %vm488, 1, 0
        %v505 = vsel %vm489, 1, 0
        %v506 = vsel %vm490, 1, 0
        %v507 = vsel %vm491, 1, 0
        %v508 = vsel %vm492, 1, 0
        %509 = vset.pattern.permute.xlu0 0
        %510 = vperm.xlu0 %509, %v493
        %v511 = vpop.permute.xlu0 %510
        %512 = vset.pattern.permute.xlu0 0
        %513 = vperm.xlu0 %512, %v494
        %v514 = vpop.permute.xlu0 %513
        %515 = vset.pattern.permute.xlu0 0
        %516 = vperm.xlu0 %515, %v495
        %v517 = vpop.permute.xlu0 %516
        %518 = vset.pattern.permute.xlu0 0
        %519 = vperm.xlu0 %518, %v496
        %v520 = vpop.permute.xlu0 %519
        %521 = vset.pattern.permute.xlu0 0
        %522 = vperm.xlu0 %521, %v497
        %v523 = vpop.permute.xlu0 %522
        %524 = vset.pattern.permute.xlu0 0
        %525 = vperm.xlu0 %524, %v498
        %v526 = vpop.permute.xlu0 %525
        %527 = vset.pattern.permute.xlu0 0
        %528 = vperm.xlu0 %527, %v499
        %v529 = vpop.permute.xlu0 %528
        %530 = vset.pattern.permute.xlu0 0
        %531 = vperm.xlu0 %530, %v500
        %v532 = vpop.permute.xlu0 %531
        %533 = vset.pattern.permute.xlu0 0
        %534 = vperm.xlu0 %533, %v501
        %v535 = vpop.permute.xlu0 %534
        %536 = vset.pattern.permute.xlu0 0
        %537 = vperm.xlu0 %536, %v502
        %v538 = vpop.permute.xlu0 %537
        %539 = vset.pattern.permute.xlu0 0
        %540 = vperm.xlu0 %539, %v503
        %v541 = vpop.permute.xlu0 %540
        %542 = vset.pattern.permute.xlu0 0
        %543 = vperm.xlu0 %542, %v504
        %v544 = vpop.permute.xlu0 %543
        %545 = vset.pattern.permute.xlu0 0
        %546 = vperm.xlu0 %545, %v505
        %v547 = vpop.permute.xlu0 %546
        %548 = vset.pattern.permute.xlu0 0
        %549 = vperm.xlu0 %548, %v506
        %v550 = vpop.permute.xlu0 %549
        %551 = vset.pattern.permute.xlu0 0
        %552 = vperm.xlu0 %551, %v507
        %v553 = vpop.permute.xlu0 %552
        %554 = vset.pattern.permute.xlu0 0
        %555 = vperm.xlu0 %554, %v508
        %v556 = vpop.permute.xlu0 %555
        %vm557 = vcmp.eq.s32.totalorder %v511, 1
        %vm558 = vcmp.eq.s32.totalorder %v514, 1
        %vm559 = vcmp.eq.s32.totalorder %v517, 1
        %vm560 = vcmp.eq.s32.totalorder %v520, 1
        %vm561 = vcmp.eq.s32.totalorder %v523, 1
        %vm562 = vcmp.eq.s32.totalorder %v526, 1
        %vm563 = vcmp.eq.s32.totalorder %v529, 1
        %vm564 = vcmp.eq.s32.totalorder %v532, 1
        %vm565 = vcmp.eq.s32.totalorder %v535, 1
        %vm566 = vcmp.eq.s32.totalorder %v538, 1
        %vm567 = vcmp.eq.s32.totalorder %v541, 1
        %vm568 = vcmp.eq.s32.totalorder %v544, 1
        %vm569 = vcmp.eq.s32.totalorder %v547, 1
        %vm570 = vcmp.eq.s32.totalorder %v550, 1
        %vm571 = vcmp.eq.s32.totalorder %v553, 1
        %vm572 = vcmp.eq.s32.totalorder %v556, 1
        %v573 = vld [vmem:[#allocation2] sm:$0xff]
        %v574 = vld [vmem:[#allocation2 + $0x8] sm:$0xff]
        %v575 = vld [vmem:[#allocation2 + $0x10] sm:$0xff]
        %v576 = vld [vmem:[#allocation2 + $0x18] sm:$0xff]
        %v577 = vld [vmem:[#allocation2 + $0x20] sm:$0xff]
        %v578 = vld [vmem:[#allocation2 + $0x28] sm:$0xff]
        %v579 = vld [vmem:[#allocation2 + $0x30] sm:$0xff]
        %v580 = vld [vmem:[#allocation2 + $0x38] sm:$0xff]
        %v581 = vld [vmem:[#allocation2 + $0x40] sm:$0xff]
        %v582 = vld [vmem:[#allocation2 + $0x48] sm:$0xff]
        %v583 = vld [vmem:[#allocation2 + $0x50] sm:$0xff]
        %v584 = vld [vmem:[#allocation2 + $0x58] sm:$0xff]
        %v585 = vld [vmem:[#allocation2 + $0x60] sm:$0xff]
        %v586 = vld [vmem:[#allocation2 + $0x68] sm:$0xff]
        %v587 = vld [vmem:[#allocation2 + $0x70] sm:$0xff]
        %v588 = vld [vmem:[#allocation2 + $0x78] sm:$0xff]
        %v589 = vld [vmem:[#allocation3] sm:$0xff]
        %v590 = vld [vmem:[#allocation3 + $0x8] sm:$0xff]
        %v591 = vld [vmem:[#allocation3 + $0x10] sm:$0xff]
        %v592 = vld [vmem:[#allocation3 + $0x18] sm:$0xff]
        %v593 = vld [vmem:[#allocation3 + $0x20] sm:$0xff]
        %v594 = vld [vmem:[#allocation3 + $0x28] sm:$0xff]
        %v595 = vld [vmem:[#allocation3 + $0x30] sm:$0xff]
        %v596 = vld [vmem:[#allocation3 + $0x38] sm:$0xff]
        %v597 = vld [vmem:[#allocation3 + $0x40] sm:$0xff]
        %v598 = vld [vmem:[#allocation3 + $0x48] sm:$0xff]
        %v599 = vld [vmem:[#allocation3 + $0x50] sm:$0xff]
        %v600 = vld [vmem:[#allocation3 + $0x58] sm:$0xff]
        %v601 = vld [vmem:[#allocation3 + $0x60] sm:$0xff]
        %v602 = vld [vmem:[#allocation3 + $0x68] sm:$0xff]
        %v603 = vld [vmem:[#allocation3 + $0x70] sm:$0xff]
        %v604 = vld [vmem:[#allocation3 + $0x78] sm:$0xff]
        %v605 = vld [vmem:[%s324] sm:$0xff]
        %v606 = vld [vmem:[%s324 + $0x8] sm:$0xff]
        %v607 = vld [vmem:[%s324 + $0x10] sm:$0xff]
        %v608 = vld [vmem:[%s324 + $0x18] sm:$0xff]
        %v609 = vld [vmem:[%s324 + $0x20] sm:$0xff]
        %v610 = vld [vmem:[%s324 + $0x28] sm:$0xff]
        %v611 = vld [vmem:[%s324 + $0x30] sm:$0xff]
        %v612 = vld [vmem:[%s324 + $0x38] sm:$0xff]
        %v613 = vld [vmem:[%s324 + $0x40] sm:$0xff]
        %v614 = vld [vmem:[%s324 + $0x48] sm:$0xff]
        %v615 = vld [vmem:[%s324 + $0x50] sm:$0xff]
        %v616 = vld [vmem:[%s324 + $0x58] sm:$0xff]
        %v617 = vld [vmem:[%s324 + $0x60] sm:$0xff]
        %v618 = vld [vmem:[%s324 + $0x68] sm:$0xff]
        %v619 = vld [vmem:[%s324 + $0x70] sm:$0xff]
        %v620 = vld [vmem:[%s324 + $0x78] sm:$0xff]
        %v621 = vld [vmem:[%s324 + $0x80] sm:$0xff]
        %v622 = vld [vmem:[%s324 + $0x88] sm:$0xff]
        %v623 = vld [vmem:[%s324 + $0x90] sm:$0xff]
        %v624 = vld [vmem:[%s324 + $0x98] sm:$0xff]
        %v625 = vld [vmem:[%s324 + $0xa0] sm:$0xff]
        %v626 = vld [vmem:[%s324 + $0xa8] sm:$0xff]
        %v627 = vld [vmem:[%s324 + $0xb0] sm:$0xff]
        %v628 = vld [vmem:[%s324 + $0xb8] sm:$0xff]
        %v629 = vld [vmem:[%s324 + $0xc0] sm:$0xff]
        %v630 = vld [vmem:[%s324 + $0xc8] sm:$0xff]
        %v631 = vld [vmem:[%s324 + $0xd0] sm:$0xff]
        %v632 = vld [vmem:[%s324 + $0xd8] sm:$0xff]
        %v633 = vld [vmem:[%s324 + $0xe0] sm:$0xff]
        %v634 = vld [vmem:[%s324 + $0xe8] sm:$0xff]
        %v635 = vld [vmem:[%s324 + $0xf0] sm:$0xff]
        %v636 = vld [vmem:[%s324 + $0xf8] sm:$0xff]
        %v637 = vld [vmem:[%s324 + $0x100] sm:$0xff]
        %v638 = vld [vmem:[%s324 + $0x108] sm:$0xff]
        %v639 = vld [vmem:[%s324 + $0x110] sm:$0xff]
        %v640 = vld [vmem:[%s324 + $0x118] sm:$0xff]
        %v641 = vld [vmem:[%s324 + $0x120] sm:$0xff]
        %v642 = vld [vmem:[%s324 + $0x128] sm:$0xff]
        %v643 = vld [vmem:[%s324 + $0x130] sm:$0xff]
        %v644 = vld [vmem:[%s324 + $0x138] sm:$0xff]
        %v645 = vld [vmem:[%s324 + $0x140] sm:$0xff]
        %v646 = vld [vmem:[%s324 + $0x148] sm:$0xff]
        %v647 = vld [vmem:[%s324 + $0x150] sm:$0xff]
        %v648 = vld [vmem:[%s324 + $0x158] sm:$0xff]
        %v649 = vld [vmem:[%s324 + $0x160] sm:$0xff]
        %v650 = vld [vmem:[%s324 + $0x168] sm:$0xff]
        %v651 = vld [vmem:[%s324 + $0x170] sm:$0xff]
        %v652 = vld [vmem:[%s324 + $0x178] sm:$0xff]
        %v653 = vld [vmem:[%s324 + $0x180] sm:$0xff]
        %v654 = vld [vmem:[%s324 + $0x188] sm:$0xff]
        %v655 = vld [vmem:[%s324 + $0x190] sm:$0xff]
        %v656 = vld [vmem:[%s324 + $0x198] sm:$0xff]
        %v657 = vld [vmem:[%s324 + $0x1a0] sm:$0xff]
        %v658 = vld [vmem:[%s324 + $0x1a8] sm:$0xff]
        %v659 = vld [vmem:[%s324 + $0x1b0] sm:$0xff]
        %v660 = vld [vmem:[%s324 + $0x1b8] sm:$0xff]
        %v661 = vld [vmem:[%s324 + $0x1c0] sm:$0xff]
        %v662 = vld [vmem:[%s324 + $0x1c8] sm:$0xff]
        %v663 = vld [vmem:[%s324 + $0x1d0] sm:$0xff]
        %v664 = vld [vmem:[%s324 + $0x1d8] sm:$0xff]
        %v665 = vld [vmem:[%s324 + $0x1e0] sm:$0xff]
        %v666 = vld [vmem:[%s324 + $0x1e8] sm:$0xff]
        %v667 = vld [vmem:[%s324 + $0x1f0] sm:$0xff]
        %v668 = vld [vmem:[%s324 + $0x1f8] sm:$0xff]
        %v669 = vpack.c.bf16 %v574, %v573
        %v670 = vpack.c.bf16 %v576, %v575
        %v671 = vpack.c.bf16 %v578, %v577
        %v672 = vpack.c.bf16 %v580, %v579
        %v673 = vpack.c.bf16 %v582, %v581
        %v674 = vpack.c.bf16 %v584, %v583
        %v675 = vpack.c.bf16 %v586, %v585
        %v676 = vpack.c.bf16 %v588, %v587
        %v677 = vld [vmem:[#allocation9] sm:$0xff]
        %v678 = vld [vmem:[#allocation9 + $0x8] sm:$0xff]
        %v679 = vld [vmem:[#allocation9 + $0x10] sm:$0xff]
        %v680 = vld [vmem:[#allocation9 + $0x18] sm:$0xff]
        %v681 = vld [vmem:[#allocation9 + $0x20] sm:$0xff]
        %v682 = vld [vmem:[#allocation9 + $0x28] sm:$0xff]
        %v683 = vld [vmem:[#allocation9 + $0x30] sm:$0xff]
        %v684 = vld [vmem:[#allocation9 + $0x38] sm:$0xff]
        %v685 = vld [vmem:[#allocation9 + $0x40] sm:$0xff]
        %v686 = vld [vmem:[#allocation9 + $0x48] sm:$0xff]
        %v687 = vld [vmem:[#allocation9 + $0x50] sm:$0xff]
        %v688 = vld [vmem:[#allocation9 + $0x58] sm:$0xff]
        %v689 = vld [vmem:[#allocation9 + $0x60] sm:$0xff]
        %v690 = vld [vmem:[#allocation9 + $0x68] sm:$0xff]
        %v691 = vld [vmem:[#allocation9 + $0x70] sm:$0xff]
        %v692 = vld [vmem:[#allocation9 + $0x78] sm:$0xff]
        %v693 = vld [vmem:[#allocation9 + $0x80] sm:$0xff]
        %v694 = vld [vmem:[#allocation9 + $0x88] sm:$0xff]
        %v695 = vld [vmem:[#allocation9 + $0x90] sm:$0xff]
        %v696 = vld [vmem:[#allocation9 + $0x98] sm:$0xff]
        %v697 = vld [vmem:[#allocation9 + $0xa0] sm:$0xff]
        %v698 = vld [vmem:[#allocation9 + $0xa8] sm:$0xff]
        %v699 = vld [vmem:[#allocation9 + $0xb0] sm:$0xff]
        %v700 = vld [vmem:[#allocation9 + $0xb8] sm:$0xff]
        %v701 = vld [vmem:[#allocation9 + $0xc0] sm:$0xff]
        %v702 = vld [vmem:[#allocation9 + $0xc8] sm:$0xff]
        %v703 = vld [vmem:[#allocation9 + $0xd0] sm:$0xff]
        %v704 = vld [vmem:[#allocation9 + $0xd8] sm:$0xff]
        %v705 = vld [vmem:[#allocation9 + $0xe0] sm:$0xff]
        %v706 = vld [vmem:[#allocation9 + $0xe8] sm:$0xff]
        %v707 = vld [vmem:[#allocation9 + $0xf0] sm:$0xff]
        %v708 = vld [vmem:[#allocation9 + $0xf8] sm:$0xff]
        %v741 = vunpack.c.l.b16 %v677
        %v742 = vunpack.c.h.b16 %v677
        %v743 = vunpack.c.l.b16 %v678
        %v744 = vunpack.c.h.b16 %v678
        %v745 = vunpack.c.l.b16 %v679
        %v746 = vunpack.c.h.b16 %v679
        %v747 = vunpack.c.l.b16 %v680
        %v748 = vunpack.c.h.b16 %v680
        %v749 = vunpack.c.l.b16 %v681
        %v750 = vunpack.c.h.b16 %v681
        %v751 = vunpack.c.l.b16 %v682
        %v752 = vunpack.c.h.b16 %v682
        %v753 = vunpack.c.l.b16 %v683
        %v754 = vunpack.c.h.b16 %v683
        %v755 = vunpack.c.l.b16 %v684
        %v756 = vunpack.c.h.b16 %v684
        %v757 = vunpack.c.l.b16 %v685
        %v758 = vunpack.c.h.b16 %v685
        %v759 = vunpack.c.l.b16 %v686
        %v760 = vunpack.c.h.b16 %v686
        %v761 = vunpack.c.l.b16 %v687
        %v762 = vunpack.c.h.b16 %v687
        %v763 = vunpack.c.l.b16 %v688
        %v764 = vunpack.c.h.b16 %v688
        %v765 = vunpack.c.l.b16 %v689
        %v766 = vunpack.c.h.b16 %v689
        %v767 = vunpack.c.l.b16 %v690
        %v768 = vunpack.c.h.b16 %v690
        %v769 = vunpack.c.l.b16 %v691
        %v770 = vunpack.c.h.b16 %v691
        %v771 = vunpack.c.l.b16 %v692
        %v772 = vunpack.c.h.b16 %v692
        %v773 = vunpack.c.l.b16 %v693
        %v774 = vunpack.c.h.b16 %v693
        %v775 = vunpack.c.l.b16 %v694
        %v776 = vunpack.c.h.b16 %v694
        %v777 = vunpack.c.l.b16 %v695
        %v778 = vunpack.c.h.b16 %v695
        %v779 = vunpack.c.l.b16 %v696
        %v780 = vunpack.c.h.b16 %v696
        %v781 = vunpack.c.l.b16 %v697
        %v782 = vunpack.c.h.b16 %v697
        %v783 = vunpack.c.l.b16 %v698
        %v784 = vunpack.c.h.b16 %v698
        %v785 = vunpack.c.l.b16 %v699
        %v786 = vunpack.c.h.b16 %v699
        %v787 = vunpack.c.l.b16 %v700
        %v788 = vunpack.c.h.b16 %v700
        %v789 = vunpack.c.l.b16 %v701
        %v790 = vunpack.c.h.b16 %v701
        %v791 = vunpack.c.l.b16 %v702
        %v792 = vunpack.c.h.b16 %v702
        %v793 = vunpack.c.l.b16 %v703
        %v794 = vunpack.c.h.b16 %v703
        %v795 = vunpack.c.l.b16 %v704
        %v796 = vunpack.c.h.b16 %v704
        %v797 = vunpack.c.l.b16 %v705
        %v798 = vunpack.c.h.b16 %v705
        %v799 = vunpack.c.l.b16 %v706
        %v800 = vunpack.c.h.b16 %v706
        %v801 = vunpack.c.l.b16 %v707
        %v802 = vunpack.c.h.b16 %v707
        %v803 = vunpack.c.l.b16 %v708
        %v804 = vunpack.c.h.b16 %v708
        %v805 = vpack.c.b16 %v745, %v741
        %v806 = vpack.c.b16 %v746, %v742
        %v807 = vpack.c.b16 %v747, %v743
        %v808 = vpack.c.b16 %v748, %v744
        %v809 = vpack.c.b16 %v753, %v749
        %v810 = vpack.c.b16 %v754, %v750
        %v811 = vpack.c.b16 %v755, %v751
        %v812 = vpack.c.b16 %v756, %v752
        %v813 = vpack.c.b16 %v761, %v757
        %v814 = vpack.c.b16 %v762, %v758
        %v815 = vpack.c.b16 %v763, %v759
        %v816 = vpack.c.b16 %v764, %v760
        %v817 = vpack.c.b16 %v769, %v765
        %v818 = vpack.c.b16 %v770, %v766
        %v819 = vpack.c.b16 %v771, %v767
        %v820 = vpack.c.b16 %v772, %v768
        %v821 = vpack.c.b16 %v777, %v773
        %v822 = vpack.c.b16 %v778, %v774
        %v823 = vpack.c.b16 %v779, %v775
        %v824 = vpack.c.b16 %v780, %v776
        %v825 = vpack.c.b16 %v785, %v781
        %v826 = vpack.c.b16 %v786, %v782
        %v827 = vpack.c.b16 %v787, %v783
        %v828 = vpack.c.b16 %v788, %v784
        %v829 = vpack.c.b16 %v793, %v789
        %v830 = vpack.c.b16 %v794, %v790
        %v831 = vpack.c.b16 %v795, %v791
        %v832 = vpack.c.b16 %v796, %v792
        %v833 = vpack.c.b16 %v801, %v797
        %v834 = vpack.c.b16 %v802, %v798
        %v835 = vpack.c.b16 %v803, %v799
        %v836 = vpack.c.b16 %v804, %v800
        %869 = vmatprep.subr.bf16.mxu0 %v806
        %870 = vmatpush1.bf16.msra.mxu0 %v805
        %871 = vmatprep.subr.bf16.mxu0 %v810
        %872 = vmatpush1.bf16.msra.mxu0 %v809
        %873 = vmatprep.subr.bf16.mxu0 %v814
        %874 = vmatpush1.bf16.msra.mxu0 %v813
        %875 = vmatprep.subr.bf16.mxu0 %v818
        %876 = vmatpush1.bf16.msra.mxu0 %v817
        %877 = vmatprep.subr.bf16.mxu0 %v822
        %878 = vmatpush1.bf16.msra.mxu0 %v821
        %879 = vmatprep.subr.bf16.mxu0 %v826
        %880 = vmatpush1.bf16.msra.mxu0 %v825
        %881 = vmatprep.subr.bf16.mxu0 %v830
        %882 = vmatpush1.bf16.msra.mxu0 %v829
        %883 = vmatprep.subr.bf16.mxu0 %v834
        %884 = vmatpush1.bf16.msra.mxu0 %v833
        %885 = vmatprep.subr.bf16.mxu0 0
        %886 = vmatpush1.bf16.msra.mxu0 0
        %887 = vmatprep.subr.bf16.mxu0 0
        %888 = vmatpush1.bf16.msra.mxu0 0
        %889 = vmatprep.subr.bf16.mxu0 0
        %890 = vmatpush1.bf16.msra.mxu0 0
        %891 = vmatprep.subr.bf16.mxu0 0
        %892 = vmatpush1.bf16.msra.mxu0 0
        %893 = vmatprep.subr.bf16.mxu0 0
        %894 = vmatpush1.bf16.msra.mxu0 0
        %895 = vmatprep.subr.bf16.mxu0 0
        %896 = vmatpush1.bf16.msra.mxu0 0
        %897 = vmatprep.subr.bf16.mxu0 0
        %898 = vmatpush1.bf16.msra.mxu0 0
        %899 = vmatprep.subr.bf16.mxu0 0
        %900 = vmatpush1.bf16.msra.mxu0 0
        %901 = vmatprep.mubr.bf16.mxu0 0
        %902 = vmatmul.mubr.bf16.gmra.mrb[0].mxu0 %v669
        %v903 = vpop.f32.mrb[0].mxu0
        %v904 = vadd.f32 0.0, %v903
        %v905 = vpop.f32.mrb[0].mxu0
        %v906 = vadd.f32 0.0, %v905
        %v907 = vpop.f32.mrb[0].mxu0
        %v908 = vadd.f32 0.0, %v907
        %v909 = vpop.f32.mrb[0].mxu0
        %v910 = vadd.f32 0.0, %v909
        %911 = vmatprep.mubr.bf16.mxu0 0
        %912 = vmatmul.mubr.bf16.gmra.mrb[0].mxu0 %v670
        %v913 = vpop.f32.mrb[0].mxu0
        %v914 = vadd.f32 0.0, %v913
        %v915 = vpop.f32.mrb[0].mxu0
        %v916 = vadd.f32 0.0, %v915
        %v917 = vpop.f32.mrb[0].mxu0
        %v918 = vadd.f32 0.0, %v917
        %v919 = vpop.f32.mrb[0].mxu0
        %v920 = vadd.f32 0.0, %v919
        %921 = vmatprep.mubr.bf16.mxu0 0
        %922 = vmatmul.mubr.bf16.gmra.mrb[0].mxu0 %v671
        %v923 = vpop.f32.mrb[0].mxu0
        %v924 = vadd.f32 0.0, %v923
        %v925 = vpop.f32.mrb[0].mxu0
        %v926 = vadd.f32 0.0, %v925
        %v927 = vpop.f32.mrb[0].mxu0
        %v928 = vadd.f32 0.0, %v927
        %v929 = vpop.f32.mrb[0].mxu0
        %v930 = vadd.f32 0.0, %v929
        %931 = vmatprep.mubr.bf16.mxu0 0
        %932 = vmatmul.mubr.bf16.gmra.mrb[0].mxu0 %v672
        %v933 = vpop.f32.mrb[0].mxu0
        %v934 = vadd.f32 0.0, %v933
        %v935 = vpop.f32.mrb[0].mxu0
        %v936 = vadd.f32 0.0, %v935
        %v937 = vpop.f32.mrb[0].mxu0
        %v938 = vadd.f32 0.0, %v937
        %v939 = vpop.f32.mrb[0].mxu0
        %v940 = vadd.f32 0.0, %v939
        %941 = vmatprep.mubr.bf16.mxu0 0
        %942 = vmatmul.mubr.bf16.gmra.mrb[0].mxu0 %v673
        %v943 = vpop.f32.mrb[0].mxu0
        %v944 = vadd.f32 0.0, %v943
        %v945 = vpop.f32.mrb[0].mxu0
        %v946 = vadd.f32 0.0, %v945
        %v947 = vpop.f32.mrb[0].mxu0
        %v948 = vadd.f32 0.0, %v947
        %v949 = vpop.f32.mrb[0].mxu0
        %v950 = vadd.f32 0.0, %v949
        %951 = vmatprep.mubr.bf16.mxu0 0
        %952 = vmatmul.mubr.bf16.gmra.mrb[0].mxu0 %v674
        %v953 = vpop.f32.mrb[0].mxu0
        %v954 = vadd.f32 0.0, %v953
        %v955 = vpop.f32.mrb[0].mxu0
        %v956 = vadd.f32 0.0, %v955
        %v957 = vpop.f32.mrb[0].mxu0
        %v958 = vadd.f32 0.0, %v957
        %v959 = vpop.f32.mrb[0].mxu0
        %v960 = vadd.f32 0.0, %v959
        %961 = vmatprep.mubr.bf16.mxu0 0
        %962 = vmatmul.mubr.bf16.gmra.mrb[0].mxu0 %v675
        %v963 = vpop.f32.mrb[0].mxu0
        %v964 = vadd.f32 0.0, %v963
        %v965 = vpop.f32.mrb[0].mxu0
        %v966 = vadd.f32 0.0, %v965
        %v967 = vpop.f32.mrb[0].mxu0
        %v968 = vadd.f32 0.0, %v967
        %v969 = vpop.f32.mrb[0].mxu0
        %v970 = vadd.f32 0.0, %v969
        %971 = vmatprep.mubr.bf16.mxu0 0
        %972 = vmatmul.mubr.bf16.gmra.mrb[0].mxu0 %v676
        %v973 = vpop.f32.mrb[0].mxu0
        %v974 = vadd.f32 0.0, %v973
        %v975 = vpop.f32.mrb[0].mxu0
        %v976 = vadd.f32 0.0, %v975
        %v977 = vpop.f32.mrb[0].mxu0
        %v978 = vadd.f32 0.0, %v977
        %v979 = vpop.f32.mrb[0].mxu0
        %v980 = vadd.f32 0.0, %v979
        %981 = vdwg.mxu0
        %982 = vmatprep.subr.bf16.mxu0 %v808
        %983 = vmatpush1.bf16.msra.mxu0 %v807
        %984 = vmatprep.subr.bf16.mxu0 %v812
        %985 = vmatpush1.bf16.msra.mxu0 %v811
        %986 = vmatprep.subr.bf16.mxu0 %v816
        %987 = vmatpush1.bf16.msra.mxu0 %v815
        %988 = vmatprep.subr.bf16.mxu0 %v820
        %989 = vmatpush1.bf16.msra.mxu0 %v819
        %990 = vmatprep.subr.bf16.mxu0 %v824
        %991 = vmatpush1.bf16.msra.mxu0 %v823
        %992 = vmatprep.subr.bf16.mxu0 %v828
        %993 = vmatpush1.bf16.msra.mxu0 %v827
        %994 = vmatprep.subr.bf16.mxu0 %v832
        %995 = vmatpush1.bf16.msra.mxu0 %v831
        %996 = vmatprep.subr.bf16.mxu0 %v836
        %997 = vmatpush1.bf16.msra.mxu0 %v835
        %998 = vmatprep.subr.bf16.mxu0 0
        %999 = vmatpush1.bf16.msra.mxu0 0
        %1000 = vmatprep.subr.bf16.mxu0 0
        %1001 = vmatpush1.bf16.msra.mxu0 0
        %1002 = vmatprep.subr.bf16.mxu0 0
        %1003 = vmatpush1.bf16.msra.mxu0 0
        %1004 = vmatprep.subr.bf16.mxu0 0
        %1005 = vmatpush1.bf16.msra.mxu0 0
        %1006 = vmatprep.subr.bf16.mxu0 0
        %1007 = vmatpush1.bf16.msra.mxu0 0
        %1008 = vmatprep.subr.bf16.mxu0 0
        %1009 = vmatpush1.bf16.msra.mxu0 0
        %1010 = vmatprep.subr.bf16.mxu0 0
        %1011 = vmatpush1.bf16.msra.mxu0 0
        %1012 = vmatprep.subr.bf16.mxu0 0
        %1013 = vmatpush1.bf16.msra.mxu0 0
        %1014 = vmatprep.mubr.bf16.mxu0 0
        %1015 = vmatmul.mubr.bf16.gmra.mrb[0].mxu0 %v669
        %v1016 = vpop.f32.mrb[0].mxu0
        %v1017 = vadd.f32 0.0, %v1016
        %v1018 = vpop.f32.mrb[0].mxu0
        %v1019 = vadd.f32 0.0, %v1018
        %v1020 = vpop.f32.mrb[0].mxu0
        %v1021 = vadd.f32 0.0, %v1020
        %v1022 = vpop.f32.mrb[0].mxu0
        %v1023 = vadd.f32 0.0, %v1022
        %1024 = vmatprep.mubr.bf16.mxu0 0
        %1025 = vmatmul.mubr.bf16.gmra.mrb[0].mxu0 %v670
        %v1026 = vpop.f32.mrb[0].mxu0
        %v1027 = vadd.f32 0.0, %v1026
        %v1028 = vpop.f32.mrb[0].mxu0
        %v1029 = vadd.f32 0.0, %v1028
        %v1030 = vpop.f32.mrb[0].mxu0
        %v1031 = vadd.f32 0.0, %v1030
        %v1032 = vpop.f32.mrb[0].mxu0
        %v1033 = vadd.f32 0.0, %v1032
        %1034 = vmatprep.mubr.bf16.mxu0 0
        %1035 = vmatmul.mubr.bf16.gmra.mrb[0].mxu0 %v671
        %v1036 = vpop.f32.mrb[0].mxu0
        %v1037 = vadd.f32 0.0, %v1036
        %v1038 = vpop.f32.mrb[0].mxu0
        %v1039 = vadd.f32 0.0, %v1038
        %v1040 = vpop.f32.mrb[0].mxu0
        %v1041 = vadd.f32 0.0, %v1040
        %v1042 = vpop.f32.mrb[0].mxu0
        %v1043 = vadd.f32 0.0, %v1042
        %1044 = vmatprep.mubr.bf16.mxu0 0
        %1045 = vmatmul.mubr.bf16.gmra.mrb[0].mxu0 %v672
        %v1046 = vpop.f32.mrb[0].mxu0
        %v1047 = vadd.f32 0.0, %v1046
        %v1048 = vpop.f32.mrb[0].mxu0
        %v1049 = vadd.f32 0.0, %v1048
        %v1050 = vpop.f32.mrb[0].mxu0
        %v1051 = vadd.f32 0.0, %v1050
        %v1052 = vpop.f32.mrb[0].mxu0
        %v1053 = vadd.f32 0.0, %v1052
        %1054 = vmatprep.mubr.bf16.mxu0 0
        %1055 = vmatmul.mubr.bf16.gmra.mrb[0].mxu0 %v673
        %v1056 = vpop.f32.mrb[0].mxu0
        %v1057 = vadd.f32 0.0, %v1056
        %v1058 = vpop.f32.mrb[0].mxu0
        %v1059 = vadd.f32 0.0, %v1058
        %v1060 = vpop.f32.mrb[0].mxu0
        %v1061 = vadd.f32 0.0, %v1060
        %v1062 = vpop.f32.mrb[0].mxu0
        %v1063 = vadd.f32 0.0, %v1062
        %1064 = vmatprep.mubr.bf16.mxu0 0
        %1065 = vmatmul.mubr.bf16.gmra.mrb[0].mxu0 %v674
        %v1066 = vpop.f32.mrb[0].mxu0
        %v1067 = vadd.f32 0.0, %v1066
        %v1068 = vpop.f32.mrb[0].mxu0
        %v1069 = vadd.f32 0.0, %v1068
        %v1070 = vpop.f32.mrb[0].mxu0
        %v1071 = vadd.f32 0.0, %v1070
        %v1072 = vpop.f32.mrb[0].mxu0
        %v1073 = vadd.f32 0.0, %v1072
        %1074 = vmatprep.mubr.bf16.mxu0 0
        %1075 = vmatmul.mubr.bf16.gmra.mrb[0].mxu0 %v675
        %v1076 = vpop.f32.mrb[0].mxu0
        %v1077 = vadd.f32 0.0, %v1076
        %v1078 = vpop.f32.mrb[0].mxu0
        %v1079 = vadd.f32 0.0, %v1078
        %v1080 = vpop.f32.mrb[0].mxu0
        %v1081 = vadd.f32 0.0, %v1080
        %v1082 = vpop.f32.mrb[0].mxu0
        %v1083 = vadd.f32 0.0, %v1082
        %1084 = vmatprep.mubr.bf16.mxu0 0
        %1085 = vmatmul.mubr.bf16.gmra.mrb[0].mxu0 %v676
        %v1086 = vpop.f32.mrb[0].mxu0
        %v1087 = vadd.f32 0.0, %v1086
        %v1088 = vpop.f32.mrb[0].mxu0
        %v1089 = vadd.f32 0.0, %v1088
        %v1090 = vpop.f32.mrb[0].mxu0
        %v1091 = vadd.f32 0.0, %v1090
        %v1092 = vpop.f32.mrb[0].mxu0
        %v1093 = vadd.f32 0.0, %v1092
        %1094 = vdwg.mxu0
        %v1095 = vadd.f32 %v605, %v904
        %v1096 = vadd.f32 %v606, %v906
        %v1097 = vadd.f32 %v607, %v1017
        %v1098 = vadd.f32 %v608, %v1019
        %v1099 = vadd.f32 %v609, %v908
        %v1100 = vadd.f32 %v610, %v910
        %v1101 = vadd.f32 %v611, %v1021
        %v1102 = vadd.f32 %v612, %v1023
        %v1103 = vadd.f32 %v613, %v914
        %v1104 = vadd.f32 %v614, %v916
        %v1105 = vadd.f32 %v615, %v1027
        %v1106 = vadd.f32 %v616, %v1029
        %v1107 = vadd.f32 %v617, %v918
        %v1108 = vadd.f32 %v618, %v920
        %v1109 = vadd.f32 %v619, %v1031
        %v1110 = vadd.f32 %v620, %v1033
        %v1111 = vadd.f32 %v621, %v924
        %v1112 = vadd.f32 %v622, %v926
        %v1113 = vadd.f32 %v623, %v1037
        %v1114 = vadd.f32 %v624, %v1039
        %v1115 = vadd.f32 %v625, %v928
        %v1116 = vadd.f32 %v626, %v930
        %v1117 = vadd.f32 %v627, %v1041
        %v1118 = vadd.f32 %v628, %v1043
        %v1119 = vadd.f32 %v629, %v934
        %v1120 = vadd.f32 %v630, %v936
        %v1121 = vadd.f32 %v631, %v1047
        %v1122 = vadd.f32 %v632, %v1049
        %v1123 = vadd.f32 %v633, %v938
        %v1124 = vadd.f32 %v634, %v940
        %v1125 = vadd.f32 %v635, %v1051
        %v1126 = vadd.f32 %v636, %v1053
        %v1127 = vadd.f32 %v637, %v944
        %v1128 = vadd.f32 %v638, %v946
        %v1129 = vadd.f32 %v639, %v1057
        %v1130 = vadd.f32 %v640, %v1059
        %v1131 = vadd.f32 %v641, %v948
        %v1132 = vadd.f32 %v642, %v950
        %v1133 = vadd.f32 %v643, %v1061
        %v1134 = vadd.f32 %v644, %v1063
        %v1135 = vadd.f32 %v645, %v954
        %v1136 = vadd.f32 %v646, %v956
        %v1137 = vadd.f32 %v647, %v1067
        %v1138 = vadd.f32 %v648, %v1069
        %v1139 = vadd.f32 %v649, %v958
        %v1140 = vadd.f32 %v650, %v960
        %v1141 = vadd.f32 %v651, %v1071
        %v1142 = vadd.f32 %v652, %v1073
        %v1143 = vadd.f32 %v653, %v964
        %v1144 = vadd.f32 %v654, %v966
        %v1145 = vadd.f32 %v655, %v1077
        %v1146 = vadd.f32 %v656, %v1079
        %v1147 = vadd.f32 %v657, %v968
        %v1148 = vadd.f32 %v658, %v970
        %v1149 = vadd.f32 %v659, %v1081
        %v1150 = vadd.f32 %v660, %v1083
        %v1151 = vadd.f32 %v661, %v974
        %v1152 = vadd.f32 %v662, %v976
        %v1153 = vadd.f32 %v663, %v1087
        %v1154 = vadd.f32 %v664, %v1089
        %v1155 = vadd.f32 %v665, %v978
        %v1156 = vadd.f32 %v666, %v980
        %v1157 = vadd.f32 %v667, %v1091
        %v1158 = vadd.f32 %v668, %v1093
        %v1159 = vxor.u32 %v1095, 2147483648
        %v1160 = vxor.u32 %v1099, 2147483648
        %v1161 = vxor.u32 %v1103, 2147483648
        %v1162 = vxor.u32 %v1107, 2147483648
        %v1163 = vxor.u32 %v1111, 2147483648
        %v1164 = vxor.u32 %v1115, 2147483648
        %v1165 = vxor.u32 %v1119, 2147483648
        %v1166 = vxor.u32 %v1123, 2147483648
        %v1167 = vxor.u32 %v1127, 2147483648
        %v1168 = vxor.u32 %v1131, 2147483648
        %v1169 = vxor.u32 %v1135, 2147483648
        %v1170 = vxor.u32 %v1139, 2147483648
        %v1171 = vxor.u32 %v1143, 2147483648
        %v1172 = vxor.u32 %v1147, 2147483648
        %v1173 = vxor.u32 %v1151, 2147483648
        %v1174 = vxor.u32 %v1155, 2147483648
        %v1175 = vmul.f32 %v1159, 1.442695
        %v1176 = vpow.pop %v1175
        %v1177 = vmul.f32 %v1160, 1.442695
        %v1178 = vpow.pop %v1177
        %v1179 = vmul.f32 %v1161, 1.442695
        %v1180 = vpow.pop %v1179
        %v1181 = vmul.f32 %v1162, 1.442695
        %v1182 = vpow.pop %v1181
        %v1183 = vmul.f32 %v1163, 1.442695
        %v1184 = vpow.pop %v1183
        %v1185 = vmul.f32 %v1164, 1.442695
        %v1186 = vpow.pop %v1185
        %v1187 = vmul.f32 %v1165, 1.442695
        %v1188 = vpow.pop %v1187
        %v1189 = vmul.f32 %v1166, 1.442695
        %v1190 = vpow.pop %v1189
        %v1191 = vmul.f32 %v1167, 1.442695
        %v1192 = vpow.pop %v1191
        %v1193 = vmul.f32 %v1168, 1.442695
        %v1194 = vpow.pop %v1193
        %v1195 = vmul.f32 %v1169, 1.442695
        %v1196 = vpow.pop %v1195
        %v1197 = vmul.f32 %v1170, 1.442695
        %v1198 = vpow.pop %v1197
        %v1199 = vmul.f32 %v1171, 1.442695
        %v1200 = vpow.pop %v1199
        %v1201 = vmul.f32 %v1172, 1.442695
        %v1202 = vpow.pop %v1201
        %v1203 = vmul.f32 %v1173, 1.442695
        %v1204 = vpow.pop %v1203
        %v1205 = vmul.f32 %v1174, 1.442695
        %v1206 = vpow.pop %v1205
        %v1207 = vadd.f32 %v1176, 1.0
        %v1208 = vadd.f32 %v1178, 1.0
        %v1209 = vadd.f32 %v1180, 1.0
        %v1210 = vadd.f32 %v1182, 1.0
        %v1211 = vadd.f32 %v1184, 1.0
        %v1212 = vadd.f32 %v1186, 1.0
        %v1213 = vadd.f32 %v1188, 1.0
        %v1214 = vadd.f32 %v1190, 1.0
        %v1215 = vadd.f32 %v1192, 1.0
        %v1216 = vadd.f32 %v1194, 1.0
        %v1217 = vadd.f32 %v1196, 1.0
        %v1218 = vadd.f32 %v1198, 1.0
        %v1219 = vadd.f32 %v1200, 1.0
        %v1220 = vadd.f32 %v1202, 1.0
        %v1221 = vadd.f32 %v1204, 1.0
        %v1222 = vadd.f32 %v1206, 1.0
        %v1223 = vrcp.pop %v1207
        %v1224 = vmul.f32 1.0, %v1223
        %v1225 = vrcp.pop %v1208
        %v1226 = vmul.f32 1.0, %v1225
        %v1227 = vrcp.pop %v1209
        %v1228 = vmul.f32 1.0, %v1227
        %v1229 = vrcp.pop %v1210
        %v1230 = vmul.f32 1.0, %v1229
        %v1231 = vrcp.pop %v1211
        %v1232 = vmul.f32 1.0, %v1231
        %v1233 = vrcp.pop %v1212
        %v1234 = vmul.f32 1.0, %v1233
        %v1235 = vrcp.pop %v1213
        %v1236 = vmul.f32 1.0, %v1235
        %v1237 = vrcp.pop %v1214
        %v1238 = vmul.f32 1.0, %v1237
        %v1239 = vrcp.pop %v1215
        %v1240 = vmul.f32 1.0, %v1239
        %v1241 = vrcp.pop %v1216
        %v1242 = vmul.f32 1.0, %v1241
        %v1243 = vrcp.pop %v1217
        %v1244 = vmul.f32 1.0, %v1243
        %v1245 = vrcp.pop %v1218
        %v1246 = vmul.f32 1.0, %v1245
        %v1247 = vrcp.pop %v1219
        %v1248 = vmul.f32 1.0, %v1247
        %v1249 = vrcp.pop %v1220
        %v1250 = vmul.f32 1.0, %v1249
        %v1251 = vrcp.pop %v1221
        %v1252 = vmul.f32 1.0, %v1251
        %v1253 = vrcp.pop %v1222
        %v1254 = vmul.f32 1.0, %v1253
        %v1255 = vxor.u32 %v1096, 2147483648
        %v1256 = vxor.u32 %v1100, 2147483648
        %v1257 = vxor.u32 %v1104, 2147483648
        %v1258 = vxor.u32 %v1108, 2147483648
        %v1259 = vxor.u32 %v1112, 2147483648
        %v1260 = vxor.u32 %v1116, 2147483648
        %v1261 = vxor.u32 %v1120, 2147483648
        %v1262 = vxor.u32 %v1124, 2147483648
        %v1263 = vxor.u32 %v1128, 2147483648
        %v1264 = vxor.u32 %v1132, 2147483648
        %v1265 = vxor.u32 %v1136, 2147483648
        %v1266 = vxor.u32 %v1140, 2147483648
        %v1267 = vxor.u32 %v1144, 2147483648
        %v1268 = vxor.u32 %v1148, 2147483648
        %v1269 = vxor.u32 %v1152, 2147483648
        %v1270 = vxor.u32 %v1156, 2147483648
        %v1271 = vmul.f32 %v1255, 1.442695
        %v1272 = vpow.pop %v1271
        %v1273 = vmul.f32 %v1256, 1.442695
        %v1274 = vpow.pop %v1273
        %v1275 = vmul.f32 %v1257, 1.442695
        %v1276 = vpow.pop %v1275
        %v1277 = vmul.f32 %v1258, 1.442695
        %v1278 = vpow.pop %v1277
        %v1279 = vmul.f32 %v1259, 1.442695
        %v1280 = vpow.pop %v1279
        %v1281 = vmul.f32 %v1260, 1.442695
        %v1282 = vpow.pop %v1281
        %v1283 = vmul.f32 %v1261, 1.442695
        %v1284 = vpow.pop %v1283
        %v1285 = vmul.f32 %v1262, 1.442695
        %v1286 = vpow.pop %v1285
        %v1287 = vmul.f32 %v1263, 1.442695
        %v1288 = vpow.pop %v1287
        %v1289 = vmul.f32 %v1264, 1.442695
        %v1290 = vpow.pop %v1289
        %v1291 = vmul.f32 %v1265, 1.442695
        %v1292 = vpow.pop %v1291
        %v1293 = vmul.f32 %v1266, 1.442695
        %v1294 = vpow.pop %v1293
        %v1295 = vmul.f32 %v1267, 1.442695
        %v1296 = vpow.pop %v1295
        %v1297 = vmul.f32 %v1268, 1.442695
        %v1298 = vpow.pop %v1297
        %v1299 = vmul.f32 %v1269, 1.442695
        %v1300 = vpow.pop %v1299
        %v1301 = vmul.f32 %v1270, 1.442695
        %v1302 = vpow.pop %v1301
        %v1303 = vadd.f32 %v1272, 1.0
        %v1304 = vadd.f32 %v1274, 1.0
        %v1305 = vadd.f32 %v1276, 1.0
        %v1306 = vadd.f32 %v1278, 1.0
        %v1307 = vadd.f32 %v1280, 1.0
        %v1308 = vadd.f32 %v1282, 1.0
        %v1309 = vadd.f32 %v1284, 1.0
        %v1310 = vadd.f32 %v1286, 1.0
        %v1311 = vadd.f32 %v1288, 1.0
        %v1312 = vadd.f32 %v1290, 1.0
        %v1313 = vadd.f32 %v1292, 1.0
        %v1314 = vadd.f32 %v1294, 1.0
        %v1315 = vadd.f32 %v1296, 1.0
        %v1316 = vadd.f32 %v1298, 1.0
        %v1317 = vadd.f32 %v1300, 1.0
        %v1318 = vadd.f32 %v1302, 1.0
        %v1319 = vrcp.pop %v1303
        %v1320 = vmul.f32 1.0, %v1319
        %v1321 = vrcp.pop %v1304
        %v1322 = vmul.f32 1.0, %v1321
        %v1323 = vrcp.pop %v1305
        %v1324 = vmul.f32 1.0, %v1323
        %v1325 = vrcp.pop %v1306
        %v1326 = vmul.f32 1.0, %v1325
        %v1327 = vrcp.pop %v1307
        %v1328 = vmul.f32 1.0, %v1327
        %v1329 = vrcp.pop %v1308
        %v1330 = vmul.f32 1.0, %v1329
        %v1331 = vrcp.pop %v1309
        %v1332 = vmul.f32 1.0, %v1331
        %v1333 = vrcp.pop %v1310
        %v1334 = vmul.f32 1.0, %v1333
        %v1335 = vrcp.pop %v1311
        %v1336 = vmul.f32 1.0, %v1335
        %v1337 = vrcp.pop %v1312
        %v1338 = vmul.f32 1.0, %v1337
        %v1339 = vrcp.pop %v1313
        %v1340 = vmul.f32 1.0, %v1339
        %v1341 = vrcp.pop %v1314
        %v1342 = vmul.f32 1.0, %v1341
        %v1343 = vrcp.pop %v1315
        %v1344 = vmul.f32 1.0, %v1343
        %v1345 = vrcp.pop %v1316
        %v1346 = vmul.f32 1.0, %v1345
        %v1347 = vrcp.pop %v1317
        %v1348 = vmul.f32 1.0, %v1347
        %v1349 = vrcp.pop %v1318
        %v1350 = vmul.f32 1.0, %v1349
        %v1351 = vtanh.pop %v1097
        %v1352 = vtanh.pop %v1101
        %v1353 = vtanh.pop %v1105
        %v1354 = vtanh.pop %v1109
        %v1355 = vtanh.pop %v1113
        %v1356 = vtanh.pop %v1117
        %v1357 = vtanh.pop %v1121
        %v1358 = vtanh.pop %v1125
        %v1359 = vtanh.pop %v1129
        %v1360 = vtanh.pop %v1133
        %v1361 = vtanh.pop %v1137
        %v1362 = vtanh.pop %v1141
        %v1363 = vtanh.pop %v1145
        %v1364 = vtanh.pop %v1149
        %v1365 = vtanh.pop %v1153
        %v1366 = vtanh.pop %v1157
        %v1367 = vxor.u32 %v1098, 2147483648
        %v1368 = vxor.u32 %v1102, 2147483648
        %v1369 = vxor.u32 %v1106, 2147483648
        %v1370 = vxor.u32 %v1110, 2147483648
        %v1371 = vxor.u32 %v1114, 2147483648
        %v1372 = vxor.u32 %v1118, 2147483648
        %v1373 = vxor.u32 %v1122, 2147483648
        %v1374 = vxor.u32 %v1126, 2147483648
        %v1375 = vxor.u32 %v1130, 2147483648
        %v1376 = vxor.u32 %v1134, 2147483648
        %v1377 = vxor.u32 %v1138, 2147483648
        %v1378 = vxor.u32 %v1142, 2147483648
        %v1379 = vxor.u32 %v1146, 2147483648
        %v1380 = vxor.u32 %v1150, 2147483648
        %v1381 = vxor.u32 %v1154, 2147483648
        %v1382 = vxor.u32 %v1158, 2147483648
        %v1383 = vmul.f32 %v1367, 1.442695
        %v1384 = vpow.pop %v1383
        %v1385 = vmul.f32 %v1368, 1.442695
        %v1386 = vpow.pop %v1385
        %v1387 = vmul.f32 %v1369, 1.442695
        %v1388 = vpow.pop %v1387
        %v1389 = vmul.f32 %v1370, 1.442695
        %v1390 = vpow.pop %v1389
        %v1391 = vmul.f32 %v1371, 1.442695
        %v1392 = vpow.pop %v1391
        %v1393 = vmul.f32 %v1372, 1.442695
        %v1394 = vpow.pop %v1393
        %v1395 = vmul.f32 %v1373, 1.442695
        %v1396 = vpow.pop %v1395
        %v1397 = vmul.f32 %v1374, 1.442695
        %v1398 = vpow.pop %v1397
        %v1399 = vmul.f32 %v1375, 1.442695
        %v1400 = vpow.pop %v1399
        %v1401 = vmul.f32 %v1376, 1.442695
        %v1402 = vpow.pop %v1401
        %v1403 = vmul.f32 %v1377, 1.442695
        %v1404 = vpow.pop %v1403
        %v1405 = vmul.f32 %v1378, 1.442695
        %v1406 = vpow.pop %v1405
        %v1407 = vmul.f32 %v1379, 1.442695
        %v1408 = vpow.pop %v1407
        %v1409 = vmul.f32 %v1380, 1.442695
        %v1410 = vpow.pop %v1409
        %v1411 = vmul.f32 %v1381, 1.442695
        %v1412 = vpow.pop %v1411
        %v1413 = vmul.f32 %v1382, 1.442695
        %v1414 = vpow.pop %v1413
        %v1415 = vadd.f32 %v1384, 1.0
        %v1416 = vadd.f32 %v1386, 1.0
        %v1417 = vadd.f32 %v1388, 1.0
        %v1418 = vadd.f32 %v1390, 1.0
        %v1419 = vadd.f32 %v1392, 1.0
        %v1420 = vadd.f32 %v1394, 1.0
        %v1421 = vadd.f32 %v1396, 1.0
        %v1422 = vadd.f32 %v1398, 1.0
        %v1423 = vadd.f32 %v1400, 1.0
        %v1424 = vadd.f32 %v1402, 1.0
        %v1425 = vadd.f32 %v1404, 1.0
        %v1426 = vadd.f32 %v1406, 1.0
        %v1427 = vadd.f32 %v1408, 1.0
        %v1428 = vadd.f32 %v1410, 1.0
        %v1429 = vadd.f32 %v1412, 1.0
        %v1430 = vadd.f32 %v1414, 1.0
        %v1431 = vrcp.pop %v1415
        %v1432 = vmul.f32 1.0, %v1431
        %v1433 = vrcp.pop %v1416
        %v1434 = vmul.f32 1.0, %v1433
        %v1435 = vrcp.pop %v1417
        %v1436 = vmul.f32 1.0, %v1435
        %v1437 = vrcp.pop %v1418
        %v1438 = vmul.f32 1.0, %v1437
        %v1439 = vrcp.pop %v1419
        %v1440 = vmul.f32 1.0, %v1439
        %v1441 = vrcp.pop %v1420
        %v1442 = vmul.f32 1.0, %v1441
        %v1443 = vrcp.pop %v1421
        %v1444 = vmul.f32 1.0, %v1443
        %v1445 = vrcp.pop %v1422
        %v1446 = vmul.f32 1.0, %v1445
        %v1447 = vrcp.pop %v1423
        %v1448 = vmul.f32 1.0, %v1447
        %v1449 = vrcp.pop %v1424
        %v1450 = vmul.f32 1.0, %v1449
        %v1451 = vrcp.pop %v1425
        %v1452 = vmul.f32 1.0, %v1451
        %v1453 = vrcp.pop %v1426
        %v1454 = vmul.f32 1.0, %v1453
        %v1455 = vrcp.pop %v1427
        %v1456 = vmul.f32 1.0, %v1455
        %v1457 = vrcp.pop %v1428
        %v1458 = vmul.f32 1.0, %v1457
        %v1459 = vrcp.pop %v1429
        %v1460 = vmul.f32 1.0, %v1459
        %v1461 = vrcp.pop %v1430
        %v1462 = vmul.f32 1.0, %v1461
        %v1463 = vmul.f32 %v1320, %v589
        %v1464 = vmul.f32 %v1322, %v590
        %v1465 = vmul.f32 %v1324, %v591
        %v1466 = vmul.f32 %v1326, %v592
        %v1467 = vmul.f32 %v1328, %v593
        %v1468 = vmul.f32 %v1330, %v594
        %v1469 = vmul.f32 %v1332, %v595
        %v1470 = vmul.f32 %v1334, %v596
        %v1471 = vmul.f32 %v1336, %v597
        %v1472 = vmul.f32 %v1338, %v598
        %v1473 = vmul.f32 %v1340, %v599
        %v1474 = vmul.f32 %v1342, %v600
        %v1475 = vmul.f32 %v1344, %v601
        %v1476 = vmul.f32 %v1346, %v602
        %v1477 = vmul.f32 %v1348, %v603
        %v1478 = vmul.f32 %v1350, %v604
        %v1479 = vmul.f32 %v1224, %v1351
        %v1480 = vmul.f32 %v1226, %v1352
        %v1481 = vmul.f32 %v1228, %v1353
        %v1482 = vmul.f32 %v1230, %v1354
        %v1483 = vmul.f32 %v1232, %v1355
        %v1484 = vmul.f32 %v1234, %v1356
        %v1485 = vmul.f32 %v1236, %v1357
        %v1486 = vmul.f32 %v1238, %v1358
        %v1487 = vmul.f32 %v1240, %v1359
        %v1488 = vmul.f32 %v1242, %v1360
        %v1489 = vmul.f32 %v1244, %v1361
        %v1490 = vmul.f32 %v1246, %v1362
        %v1491 = vmul.f32 %v1248, %v1363
        %v1492 = vmul.f32 %v1250, %v1364
        %v1493 = vmul.f32 %v1252, %v1365
        %v1494 = vmul.f32 %v1254, %v1366
        %v1495 = vadd.f32 %v1463, %v1479
        %v1496 = vadd.f32 %v1464, %v1480
        %v1497 = vadd.f32 %v1465, %v1481
        %v1498 = vadd.f32 %v1466, %v1482
        %v1499 = vadd.f32 %v1467, %v1483
        %v1500 = vadd.f32 %v1468, %v1484
        %v1501 = vadd.f32 %v1469, %v1485
        %v1502 = vadd.f32 %v1470, %v1486
        %v1503 = vadd.f32 %v1471, %v1487
        %v1504 = vadd.f32 %v1472, %v1488
        %v1505 = vadd.f32 %v1473, %v1489
        %v1506 = vadd.f32 %v1474, %v1490
        %v1507 = vadd.f32 %v1475, %v1491
        %v1508 = vadd.f32 %v1476, %v1492
        %v1509 = vadd.f32 %v1477, %v1493
        %v1510 = vadd.f32 %v1478, %v1494
        %v1511 = vtanh.pop %v1495
        %v1512 = vtanh.pop %v1496
        %v1513 = vtanh.pop %v1497
        %v1514 = vtanh.pop %v1498
        %v1515 = vtanh.pop %v1499
        %v1516 = vtanh.pop %v1500
        %v1517 = vtanh.pop %v1501
        %v1518 = vtanh.pop %v1502
        %v1519 = vtanh.pop %v1503
        %v1520 = vtanh.pop %v1504
        %v1521 = vtanh.pop %v1505
        %v1522 = vtanh.pop %v1506
        %v1523 = vtanh.pop %v1507
        %v1524 = vtanh.pop %v1508
        %v1525 = vtanh.pop %v1509
        %v1526 = vtanh.pop %v1510
        %v1527 = vmul.f32 %v1432, %v1511
        %v1528 = vmul.f32 %v1434, %v1512
        %v1529 = vmul.f32 %v1436, %v1513
        %v1530 = vmul.f32 %v1438, %v1514
        %v1531 = vmul.f32 %v1440, %v1515
        %v1532 = vmul.f32 %v1442, %v1516
        %v1533 = vmul.f32 %v1444, %v1517
        %v1534 = vmul.f32 %v1446, %v1518
        %v1535 = vmul.f32 %v1448, %v1519
        %v1536 = vmul.f32 %v1450, %v1520
        %v1537 = vmul.f32 %v1452, %v1521
        %v1538 = vmul.f32 %v1454, %v1522
        %v1539 = vmul.f32 %v1456, %v1523
        %v1540 = vmul.f32 %v1458, %v1524
        %v1541 = vmul.f32 %v1460, %v1525
        %v1542 = vmul.f32 %v1462, %v1526
        %v1543 = vsel %vm557, %v1495, %v589
        %v1544 = vsel %vm558, %v1496, %v590
        %v1545 = vsel %vm559, %v1497, %v591
        %v1546 = vsel %vm560, %v1498, %v592
        %v1547 = vsel %vm561, %v1499, %v593
        %v1548 = vsel %vm562, %v1500, %v594
        %v1549 = vsel %vm563, %v1501, %v595
        %v1550 = vsel %vm564, %v1502, %v596
        %v1551 = vsel %vm565, %v1503, %v597
        %v1552 = vsel %vm566, %v1504, %v598
        %v1553 = vsel %vm567, %v1505, %v599
        %v1554 = vsel %vm568, %v1506, %v600
        %v1555 = vsel %vm569, %v1507, %v601
        %v1556 = vsel %vm570, %v1508, %v602
        %v1557 = vsel %vm571, %v1509, %v603
        %v1558 = vsel %vm572, %v1510, %v604
        %v1559 = vsel %vm557, %v1527, %v573
        %v1560 = vsel %vm558, %v1528, %v574
        %v1561 = vsel %vm559, %v1529, %v575
        %v1562 = vsel %vm560, %v1530, %v576
        %v1563 = vsel %vm561, %v1531, %v577
        %v1564 = vsel %vm562, %v1532, %v578
        %v1565 = vsel %vm563, %v1533, %v579
        %v1566 = vsel %vm564, %v1534, %v580
        %v1567 = vsel %vm565, %v1535, %v581
        %v1568 = vsel %vm566, %v1536, %v582
        %v1569 = vsel %vm567, %v1537, %v583
        %v1570 = vsel %vm568, %v1538, %v584
        %v1571 = vsel %vm569, %v1539, %v585
        %v1572 = vsel %vm570, %v1540, %v586
        %v1573 = vsel %vm571, %v1541, %v587
        %v1574 = vsel %vm572, %v1542, %v588
        %1575 = vst [vmem:[#allocation2] sm:$0xff] %v1559
        %1576 = vst [vmem:[#allocation2 + $0x8] sm:$0xff] %v1560
        %1577 = vst [vmem:[#allocation2 + $0x10] sm:$0xff] %v1561
        %1578 = vst [vmem:[#allocation2 + $0x18] sm:$0xff] %v1562
        %1579 = vst [vmem:[#allocation2 + $0x20] sm:$0xff] %v1563
        %1580 = vst [vmem:[#allocation2 + $0x28] sm:$0xff] %v1564
        %1581 = vst [vmem:[#allocation2 + $0x30] sm:$0xff] %v1565
        %1582 = vst [vmem:[#allocation2 + $0x38] sm:$0xff] %v1566
        %1583 = vst [vmem:[#allocation2 + $0x40] sm:$0xff] %v1567
        %1584 = vst [vmem:[#allocation2 + $0x48] sm:$0xff] %v1568
        %1585 = vst [vmem:[#allocation2 + $0x50] sm:$0xff] %v1569
        %1586 = vst [vmem:[#allocation2 + $0x58] sm:$0xff] %v1570
        %1587 = vst [vmem:[#allocation2 + $0x60] sm:$0xff] %v1571
        %1588 = vst [vmem:[#allocation2 + $0x68] sm:$0xff] %v1572
        %1589 = vst [vmem:[#allocation2 + $0x70] sm:$0xff] %v1573
        %1590 = vst [vmem:[#allocation2 + $0x78] sm:$0xff] %v1574
        %1591 = vst [vmem:[#allocation3] sm:$0xff] %v1543
        %1592 = vst [vmem:[#allocation3 + $0x8] sm:$0xff] %v1544
        %1593 = vst [vmem:[#allocation3 + $0x10] sm:$0xff] %v1545
        %1594 = vst [vmem:[#allocation3 + $0x18] sm:$0xff] %v1546
        %1595 = vst [vmem:[#allocation3 + $0x20] sm:$0xff] %v1547
        %1596 = vst [vmem:[#allocation3 + $0x28] sm:$0xff] %v1548
        %1597 = vst [vmem:[#allocation3 + $0x30] sm:$0xff] %v1549
        %1598 = vst [vmem:[#allocation3 + $0x38] sm:$0xff] %v1550
        %1599 = vst [vmem:[#allocation3 + $0x40] sm:$0xff] %v1551
        %1600 = vst [vmem:[#allocation3 + $0x48] sm:$0xff] %v1552
        %1601 = vst [vmem:[#allocation3 + $0x50] sm:$0xff] %v1553
        %1602 = vst [vmem:[#allocation3 + $0x58] sm:$0xff] %v1554
        %1603 = vst [vmem:[#allocation3 + $0x60] sm:$0xff] %v1555
        %1604 = vst [vmem:[#allocation3 + $0x68] sm:$0xff] %v1556
        %1605 = vst [vmem:[#allocation3 + $0x70] sm:$0xff] %v1557
        %1606 = vst [vmem:[#allocation3 + $0x78] sm:$0xff] %v1558
        %s1607 = scalar_lea.vmem [#allocation2], 128
        %v1608 = vld [vmem:[%s1607] sm:$0xff]
        %v1609 = vld [vmem:[%s1607 + $0x8] sm:$0xff]
        %v1610 = vld [vmem:[%s1607 + $0x10] sm:$0xff]
        %v1611 = vld [vmem:[%s1607 + $0x18] sm:$0xff]
        %v1612 = vld [vmem:[%s1607 + $0x20] sm:$0xff]
        %v1613 = vld [vmem:[%s1607 + $0x28] sm:$0xff]
        %v1614 = vld [vmem:[%s1607 + $0x30] sm:$0xff]
        %v1615 = vld [vmem:[%s1607 + $0x38] sm:$0xff]
        %v1616 = vld [vmem:[%s1607 + $0x40] sm:$0xff]
        %v1617 = vld [vmem:[%s1607 + $0x48] sm:$0xff]
        %v1618 = vld [vmem:[%s1607 + $0x50] sm:$0xff]
        %v1619 = vld [vmem:[%s1607 + $0x58] sm:$0xff]
        %v1620 = vld [vmem:[%s1607 + $0x60] sm:$0xff]
        %v1621 = vld [vmem:[%s1607 + $0x68] sm:$0xff]
        %v1622 = vld [vmem:[%s1607 + $0x70] sm:$0xff]
        %v1623 = vld [vmem:[%s1607 + $0x78] sm:$0xff]
        %s1624 = scalar_lea.vmem [#allocation3], 128
        %v1625 = vld [vmem:[%s1624] sm:$0xff]
        %v1626 = vld [vmem:[%s1624 + $0x8] sm:$0xff]
        %v1627 = vld [vmem:[%s1624 + $0x10] sm:$0xff]
        %v1628 = vld [vmem:[%s1624 + $0x18] sm:$0xff]
        %v1629 = vld [vmem:[%s1624 + $0x20] sm:$0xff]
        %v1630 = vld [vmem:[%s1624 + $0x28] sm:$0xff]
        %v1631 = vld [vmem:[%s1624 + $0x30] sm:$0xff]
        %v1632 = vld [vmem:[%s1624 + $0x38] sm:$0xff]
        %v1633 = vld [vmem:[%s1624 + $0x40] sm:$0xff]
        %v1634 = vld [vmem:[%s1624 + $0x48] sm:$0xff]
        %v1635 = vld [vmem:[%s1624 + $0x50] sm:$0xff]
        %v1636 = vld [vmem:[%s1624 + $0x58] sm:$0xff]
        %v1637 = vld [vmem:[%s1624 + $0x60] sm:$0xff]
        %v1638 = vld [vmem:[%s1624 + $0x68] sm:$0xff]
        %v1639 = vld [vmem:[%s1624 + $0x70] sm:$0xff]
        %v1640 = vld [vmem:[%s1624 + $0x78] sm:$0xff]
        %v1641 = vpack.c.bf16 %v1560, %v1559
        %v1642 = vpack.c.bf16 %v1609, %v1608
        %v1643 = vpack.c.bf16 %v1562, %v1561
        %v1644 = vpack.c.bf16 %v1611, %v1610
        %v1645 = vpack.c.bf16 %v1564, %v1563
        %v1646 = vpack.c.bf16 %v1613, %v1612
        %v1647 = vpack.c.bf16 %v1566, %v1565
        %v1648 = vpack.c.bf16 %v1615, %v1614
        %v1649 = vpack.c.bf16 %v1568, %v1567
        %v1650 = vpack.c.bf16 %v1617, %v1616
        %v1651 = vpack.c.bf16 %v1570, %v1569
        %v1652 = vpack.c.bf16 %v1619, %v1618
        %v1653 = vpack.c.bf16 %v1572, %v1571
        %v1654 = vpack.c.bf16 %v1621, %v1620
        %v1655 = vpack.c.bf16 %v1574, %v1573
        %v1656 = vpack.c.bf16 %v1623, %v1622
        %v1657 = vld [vmem:[#allocation10] sm:$0xff]
        %v1658 = vld [vmem:[#allocation10 + $0x8] sm:$0xff]
        %v1659 = vld [vmem:[#allocation10 + $0x10] sm:$0xff]
        %v1660 = vld [vmem:[#allocation10 + $0x18] sm:$0xff]
        %v1661 = vld [vmem:[#allocation10 + $0x20] sm:$0xff]
        %v1662 = vld [vmem:[#allocation10 + $0x28] sm:$0xff]
        %v1663 = vld [vmem:[#allocation10 + $0x30] sm:$0xff]
        %v1664 = vld [vmem:[#allocation10 + $0x38] sm:$0xff]
        %v1665 = vld [vmem:[#allocation10 + $0x40] sm:$0xff]
        %v1666 = vld [vmem:[#allocation10 + $0x48] sm:$0xff]
        %v1667 = vld [vmem:[#allocation10 + $0x50] sm:$0xff]
        %v1668 = vld [vmem:[#allocation10 + $0x58] sm:$0xff]
        %v1669 = vld [vmem:[#allocation10 + $0x60] sm:$0xff]
        %v1670 = vld [vmem:[#allocation10 + $0x68] sm:$0xff]
        %v1671 = vld [vmem:[#allocation10 + $0x70] sm:$0xff]
        %v1672 = vld [vmem:[#allocation10 + $0x78] sm:$0xff]
        %v1673 = vld [vmem:[#allocation10 + $0x80] sm:$0xff]
        %v1674 = vld [vmem:[#allocation10 + $0x88] sm:$0xff]
        %v1675 = vld [vmem:[#allocation10 + $0x90] sm:$0xff]
        %v1676 = vld [vmem:[#allocation10 + $0x98] sm:$0xff]
        %v1677 = vld [vmem:[#allocation10 + $0xa0] sm:$0xff]
        %v1678 = vld [vmem:[#allocation10 + $0xa8] sm:$0xff]
        %v1679 = vld [vmem:[#allocation10 + $0xb0] sm:$0xff]
        %v1680 = vld [vmem:[#allocation10 + $0xb8] sm:$0xff]
        %v1681 = vld [vmem:[#allocation10 + $0xc0] sm:$0xff]
        %v1682 = vld [vmem:[#allocation10 + $0xc8] sm:$0xff]
        %v1683 = vld [vmem:[#allocation10 + $0xd0] sm:$0xff]
        %v1684 = vld [vmem:[#allocation10 + $0xd8] sm:$0xff]
        %v1685 = vld [vmem:[#allocation10 + $0xe0] sm:$0xff]
        %v1686 = vld [vmem:[#allocation10 + $0xe8] sm:$0xff]
        %v1687 = vld [vmem:[#allocation10 + $0xf0] sm:$0xff]
        %v1688 = vld [vmem:[#allocation10 + $0xf8] sm:$0xff]
        %v1689 = vld [vmem:[#allocation10 + $0x100] sm:$0xff]
        %v1690 = vld [vmem:[#allocation10 + $0x108] sm:$0xff]
        %v1691 = vld [vmem:[#allocation10 + $0x110] sm:$0xff]
        %v1692 = vld [vmem:[#allocation10 + $0x118] sm:$0xff]
        %v1693 = vld [vmem:[#allocation10 + $0x120] sm:$0xff]
        %v1694 = vld [vmem:[#allocation10 + $0x128] sm:$0xff]
        %v1695 = vld [vmem:[#allocation10 + $0x130] sm:$0xff]
        %v1696 = vld [vmem:[#allocation10 + $0x138] sm:$0xff]
        %v1697 = vld [vmem:[#allocation10 + $0x140] sm:$0xff]
        %v1698 = vld [vmem:[#allocation10 + $0x148] sm:$0xff]
        %v1699 = vld [vmem:[#allocation10 + $0x150] sm:$0xff]
        %v1700 = vld [vmem:[#allocation10 + $0x158] sm:$0xff]
        %v1701 = vld [vmem:[#allocation10 + $0x160] sm:$0xff]
        %v1702 = vld [vmem:[#allocation10 + $0x168] sm:$0xff]
        %v1703 = vld [vmem:[#allocation10 + $0x170] sm:$0xff]
        %v1704 = vld [vmem:[#allocation10 + $0x178] sm:$0xff]
        %v1705 = vld [vmem:[#allocation10 + $0x180] sm:$0xff]
        %v1706 = vld [vmem:[#allocation10 + $0x188] sm:$0xff]
        %v1707 = vld [vmem:[#allocation10 + $0x190] sm:$0xff]
        %v1708 = vld [vmem:[#allocation10 + $0x198] sm:$0xff]
        %v1709 = vld [vmem:[#allocation10 + $0x1a0] sm:$0xff]
        %v1710 = vld [vmem:[#allocation10 + $0x1a8] sm:$0xff]
        %v1711 = vld [vmem:[#allocation10 + $0x1b0] sm:$0xff]
        %v1712 = vld [vmem:[#allocation10 + $0x1b8] sm:$0xff]
        %v1713 = vld [vmem:[#allocation10 + $0x1c0] sm:$0xff]
        %v1714 = vld [vmem:[#allocation10 + $0x1c8] sm:$0xff]
        %v1715 = vld [vmem:[#allocation10 + $0x1d0] sm:$0xff]
        %v1716 = vld [vmem:[#allocation10 + $0x1d8] sm:$0xff]
        %v1717 = vld [vmem:[#allocation10 + $0x1e0] sm:$0xff]
        %v1718 = vld [vmem:[#allocation10 + $0x1e8] sm:$0xff]
        %v1719 = vld [vmem:[#allocation10 + $0x1f0] sm:$0xff]
        %v1720 = vld [vmem:[#allocation10 + $0x1f8] sm:$0xff]
        %v1721 = vld [vmem:[#allocation12] sm:$0xf]
        %v1723 = vlaneseq
        %v1724 = vshrl.u32 %v1723, 7
        %v1725 = vsub.s32 0, %v1724
        %v1726 = vrot.slane %v1721, %v1725
        %v1727 = vlaneseq
        %v1728 = vshrl.u32 %v1727, 7
        %v1729 = vsub.s32 1, %v1728
        %v1730 = vrot.slane %v1721, %v1729
        %v1731 = vlaneseq
        %v1732 = vshrl.u32 %v1731, 7
        %v1733 = vsub.s32 2, %v1732
        %v1734 = vrot.slane %v1721, %v1733
        %v1735 = vlaneseq
        %v1736 = vshrl.u32 %v1735, 7
        %v1737 = vsub.s32 3, %v1736
        %v1738 = vrot.slane %v1721, %v1737
        %v1807 = vunpack.c.l.b16 %v1657
        %v1808 = vunpack.c.h.b16 %v1657
        %v1809 = vunpack.c.l.b16 %v1658
        %v1810 = vunpack.c.h.b16 %v1658
        %v1811 = vunpack.c.l.b16 %v1659
        %v1812 = vunpack.c.h.b16 %v1659
        %v1813 = vunpack.c.l.b16 %v1660
        %v1814 = vunpack.c.h.b16 %v1660
        %v1815 = vunpack.c.l.b16 %v1661
        %v1816 = vunpack.c.h.b16 %v1661
        %v1817 = vunpack.c.l.b16 %v1662
        %v1818 = vunpack.c.h.b16 %v1662
        %v1819 = vunpack.c.l.b16 %v1663
        %v1820 = vunpack.c.h.b16 %v1663
        %v1821 = vunpack.c.l.b16 %v1664
        %v1822 = vunpack.c.h.b16 %v1664
        %v1823 = vunpack.c.l.b16 %v1665
        %v1824 = vunpack.c.h.b16 %v1665
        %v1825 = vunpack.c.l.b16 %v1666
        %v1826 = vunpack.c.h.b16 %v1666
        %v1827 = vunpack.c.l.b16 %v1667
        %v1828 = vunpack.c.h.b16 %v1667
        %v1829 = vunpack.c.l.b16 %v1668
        %v1830 = vunpack.c.h.b16 %v1668
        %v1831 = vunpack.c.l.b16 %v1669
        %v1832 = vunpack.c.h.b16 %v1669
        %v1833 = vunpack.c.l.b16 %v1670
        %v1834 = vunpack.c.h.b16 %v1670
        %v1835 = vunpack.c.l.b16 %v1671
        %v1836 = vunpack.c.h.b16 %v1671
        %v1837 = vunpack.c.l.b16 %v1672
        %v1838 = vunpack.c.h.b16 %v1672
        %v1839 = vunpack.c.l.b16 %v1673
        %v1840 = vunpack.c.h.b16 %v1673
        %v1841 = vunpack.c.l.b16 %v1674
        %v1842 = vunpack.c.h.b16 %v1674
        %v1843 = vunpack.c.l.b16 %v1675
        %v1844 = vunpack.c.h.b16 %v1675
        %v1845 = vunpack.c.l.b16 %v1676
        %v1846 = vunpack.c.h.b16 %v1676
        %v1847 = vunpack.c.l.b16 %v1677
        %v1848 = vunpack.c.h.b16 %v1677
        %v1849 = vunpack.c.l.b16 %v1678
        %v1850 = vunpack.c.h.b16 %v1678
        %v1851 = vunpack.c.l.b16 %v1679
        %v1852 = vunpack.c.h.b16 %v1679
        %v1853 = vunpack.c.l.b16 %v1680
        %v1854 = vunpack.c.h.b16 %v1680
        %v1855 = vunpack.c.l.b16 %v1681
        %v1856 = vunpack.c.h.b16 %v1681
        %v1857 = vunpack.c.l.b16 %v1682
        %v1858 = vunpack.c.h.b16 %v1682
        %v1859 = vunpack.c.l.b16 %v1683
        %v1860 = vunpack.c.h.b16 %v1683
        %v1861 = vunpack.c.l.b16 %v1684
        %v1862 = vunpack.c.h.b16 %v1684
        %v1863 = vunpack.c.l.b16 %v1685
        %v1864 = vunpack.c.h.b16 %v1685
        %v1865 = vunpack.c.l.b16 %v1686
        %v1866 = vunpack.c.h.b16 %v1686
        %v1867 = vunpack.c.l.b16 %v1687
        %v1868 = vunpack.c.h.b16 %v1687
        %v1869 = vunpack.c.l.b16 %v1688
        %v1870 = vunpack.c.h.b16 %v1688
        %v1871 = vunpack.c.l.b16 %v1689
        %v1872 = vunpack.c.h.b16 %v1689
        %v1873 = vunpack.c.l.b16 %v1690
        %v1874 = vunpack.c.h.b16 %v1690
        %v1875 = vunpack.c.l.b16 %v1691
        %v1876 = vunpack.c.h.b16 %v1691
        %v1877 = vunpack.c.l.b16 %v1692
        %v1878 = vunpack.c.h.b16 %v1692
        %v1879 = vunpack.c.l.b16 %v1693
        %v1880 = vunpack.c.h.b16 %v1693
        %v1881 = vunpack.c.l.b16 %v1694
        %v1882 = vunpack.c.h.b16 %v1694
        %v1883 = vunpack.c.l.b16 %v1695
        %v1884 = vunpack.c.h.b16 %v1695
        %v1885 = vunpack.c.l.b16 %v1696
        %v1886 = vunpack.c.h.b16 %v1696
        %v1887 = vunpack.c.l.b16 %v1697
        %v1888 = vunpack.c.h.b16 %v1697
        %v1889 = vunpack.c.l.b16 %v1698
        %v1890 = vunpack.c.h.b16 %v1698
        %v1891 = vunpack.c.l.b16 %v1699
        %v1892 = vunpack.c.h.b16 %v1699
        %v1893 = vunpack.c.l.b16 %v1700
        %v1894 = vunpack.c.h.b16 %v1700
        %v1895 = vunpack.c.l.b16 %v1701
        %v1896 = vunpack.c.h.b16 %v1701
        %v1897 = vunpack.c.l.b16 %v1702
        %v1898 = vunpack.c.h.b16 %v1702
        %v1899 = vunpack.c.l.b16 %v1703
        %v1900 = vunpack.c.h.b16 %v1703
        %v1901 = vunpack.c.l.b16 %v1704
        %v1902 = vunpack.c.h.b16 %v1704
        %v1903 = vunpack.c.l.b16 %v1705
        %v1904 = vunpack.c.h.b16 %v1705
        %v1905 = vunpack.c.l.b16 %v1706
        %v1906 = vunpack.c.h.b16 %v1706
        %v1907 = vunpack.c.l.b16 %v1707
        %v1908 = vunpack.c.h.b16 %v1707
        %v1909 = vunpack.c.l.b16 %v1708
        %v1910 = vunpack.c.h.b16 %v1708
        %v1911 = vunpack.c.l.b16 %v1709
        %v1912 = vunpack.c.h.b16 %v1709
        %v1913 = vunpack.c.l.b16 %v1710
        %v1914 = vunpack.c.h.b16 %v1710
        %v1915 = vunpack.c.l.b16 %v1711
        %v1916 = vunpack.c.h.b16 %v1711
        %v1917 = vunpack.c.l.b16 %v1712
        %v1918 = vunpack.c.h.b16 %v1712
        %v1919 = vunpack.c.l.b16 %v1713
        %v1920 = vunpack.c.h.b16 %v1713
        %v1921 = vunpack.c.l.b16 %v1714
        %v1922 = vunpack.c.h.b16 %v1714
        %v1923 = vunpack.c.l.b16 %v1715
        %v1924 = vunpack.c.h.b16 %v1715
        %v1925 = vunpack.c.l.b16 %v1716
        %v1926 = vunpack.c.h.b16 %v1716
        %v1927 = vunpack.c.l.b16 %v1717
        %v1928 = vunpack.c.h.b16 %v1717
        %v1929 = vunpack.c.l.b16 %v1718
        %v1930 = vunpack.c.h.b16 %v1718
        %v1931 = vunpack.c.l.b16 %v1719
        %v1932 = vunpack.c.h.b16 %v1719
        %v1933 = vunpack.c.l.b16 %v1720
        %v1934 = vunpack.c.h.b16 %v1720
        %v1935 = vpack.c.b16 %v1811, %v1807
        %v1936 = vpack.c.b16 %v1812, %v1808
        %v1937 = vpack.c.b16 %v1813, %v1809
        %v1938 = vpack.c.b16 %v1814, %v1810
        %v1939 = vpack.c.b16 %v1819, %v1815
        %v1940 = vpack.c.b16 %v1820, %v1816
        %v1941 = vpack.c.b16 %v1821, %v1817
        %v1942 = vpack.c.b16 %v1822, %v1818
        %v1943 = vpack.c.b16 %v1827, %v1823
        %v1944 = vpack.c.b16 %v1828, %v1824
        %v1945 = vpack.c.b16 %v1829, %v1825
        %v1946 = vpack.c.b16 %v1830, %v1826
        %v1947 = vpack.c.b16 %v1835, %v1831
        %v1948 = vpack.c.b16 %v1836, %v1832
        %v1949 = vpack.c.b16 %v1837, %v1833
        %v1950 = vpack.c.b16 %v1838, %v1834
        %v1951 = vpack.c.b16 %v1843, %v1839
        %v1952 = vpack.c.b16 %v1844, %v1840
        %v1953 = vpack.c.b16 %v1845, %v1841
        %v1954 = vpack.c.b16 %v1846, %v1842
        %v1955 = vpack.c.b16 %v1851, %v1847
        %v1956 = vpack.c.b16 %v1852, %v1848
        %v1957 = vpack.c.b16 %v1853, %v1849
        %v1958 = vpack.c.b16 %v1854, %v1850
        %v1959 = vpack.c.b16 %v1859, %v1855
        %v1960 = vpack.c.b16 %v1860, %v1856
        %v1961 = vpack.c.b16 %v1861, %v1857
        %v1962 = vpack.c.b16 %v1862, %v1858
        %v1963 = vpack.c.b16 %v1867, %v1863
        %v1964 = vpack.c.b16 %v1868, %v1864
        %v1965 = vpack.c.b16 %v1869, %v1865
        %v1966 = vpack.c.b16 %v1870, %v1866
        %v1967 = vpack.c.b16 %v1875, %v1871
        %v1968 = vpack.c.b16 %v1876, %v1872
        %v1969 = vpack.c.b16 %v1877, %v1873
        %v1970 = vpack.c.b16 %v1878, %v1874
        %v1971 = vpack.c.b16 %v1883, %v1879
        %v1972 = vpack.c.b16 %v1884, %v1880
        %v1973 = vpack.c.b16 %v1885, %v1881
        %v1974 = vpack.c.b16 %v1886, %v1882
        %v1975 = vpack.c.b16 %v1891, %v1887
        %v1976 = vpack.c.b16 %v1892, %v1888
        %v1977 = vpack.c.b16 %v1893, %v1889
        %v1978 = vpack.c.b16 %v1894, %v1890
        %v1979 = vpack.c.b16 %v1899, %v1895
        %v1980 = vpack.c.b16 %v1900, %v1896
        %v1981 = vpack.c.b16 %v1901, %v1897
        %v1982 = vpack.c.b16 %v1902, %v1898
        %v1983 = vpack.c.b16 %v1907, %v1903
        %v1984 = vpack.c.b16 %v1908, %v1904
        %v1985 = vpack.c.b16 %v1909, %v1905
        %v1986 = vpack.c.b16 %v1910, %v1906
        %v1987 = vpack.c.b16 %v1915, %v1911
        %v1988 = vpack.c.b16 %v1916, %v1912
        %v1989 = vpack.c.b16 %v1917, %v1913
        %v1990 = vpack.c.b16 %v1918, %v1914
        %v1991 = vpack.c.b16 %v1923, %v1919
        %v1992 = vpack.c.b16 %v1924, %v1920
        %v1993 = vpack.c.b16 %v1925, %v1921
        %v1994 = vpack.c.b16 %v1926, %v1922
        %v1995 = vpack.c.b16 %v1931, %v1927
        %v1996 = vpack.c.b16 %v1932, %v1928
        %v1997 = vpack.c.b16 %v1933, %v1929
        %v1998 = vpack.c.b16 %v1934, %v1930
        %2063 = vmatprep.subr.bf16.mxu0 %v1936
        %2064 = vmatpush1.bf16.msra.mxu0 %v1935
        %2065 = vmatprep.subr.bf16.mxu0 %v1940
        %2066 = vmatpush1.bf16.msra.mxu0 %v1939
        %2067 = vmatprep.subr.bf16.mxu0 %v1944
        %2068 = vmatpush1.bf16.msra.mxu0 %v1943
        %2069 = vmatprep.subr.bf16.mxu0 %v1948
        %2070 = vmatpush1.bf16.msra.mxu0 %v1947
        %2071 = vmatprep.subr.bf16.mxu0 %v1952
        %2072 = vmatpush1.bf16.msra.mxu0 %v1951
        %2073 = vmatprep.subr.bf16.mxu0 %v1956
        %2074 = vmatpush1.bf16.msra.mxu0 %v1955
        %2075 = vmatprep.subr.bf16.mxu0 %v1960
        %2076 = vmatpush1.bf16.msra.mxu0 %v1959
        %2077 = vmatprep.subr.bf16.mxu0 %v1964
        %2078 = vmatpush1.bf16.msra.mxu0 %v1963
        %2079 = vmatprep.subr.bf16.mxu0 %v1968
        %2080 = vmatpush1.bf16.msra.mxu0 %v1967
        %2081 = vmatprep.subr.bf16.mxu0 %v1972
        %2082 = vmatpush1.bf16.msra.mxu0 %v1971
        %2083 = vmatprep.subr.bf16.mxu0 %v1976
        %2084 = vmatpush1.bf16.msra.mxu0 %v1975
        %2085 = vmatprep.subr.bf16.mxu0 %v1980
        %2086 = vmatpush1.bf16.msra.mxu0 %v1979
        %2087 = vmatprep.subr.bf16.mxu0 %v1984
        %2088 = vmatpush1.bf16.msra.mxu0 %v1983
        %2089 = vmatprep.subr.bf16.mxu0 %v1988
        %2090 = vmatpush1.bf16.msra.mxu0 %v1987
        %2091 = vmatprep.subr.bf16.mxu0 %v1992
        %2092 = vmatpush1.bf16.msra.mxu0 %v1991
        %2093 = vmatprep.subr.bf16.mxu0 %v1996
        %2094 = vmatpush1.bf16.msra.mxu0 %v1995
        %2095 = vmatprep.mubr.bf16.mxu0 %v1642
        %2096 = vmatmul.mubr.bf16.gmra.mrb[0].mxu0 %v1641
        %v2097 = vpop.f32.mrb[0].mxu0
        %v2098 = vadd.f32 %v1726, %v2097
        %v2099 = vpop.f32.mrb[0].mxu0
        %v2100 = vadd.f32 %v1730, %v2099
        %v2101 = vpop.f32.mrb[0].mxu0
        %v2102 = vadd.f32 %v1726, %v2101
        %v2103 = vpop.f32.mrb[0].mxu0
        %v2104 = vadd.f32 %v1730, %v2103
        %2105 = vmatprep.mubr.bf16.mxu0 %v1644
        %2106 = vmatmul.mubr.bf16.gmra.mrb[0].mxu0 %v1643
        %v2107 = vpop.f32.mrb[0].mxu0
        %v2108 = vadd.f32 %v1726, %v2107
        %v2109 = vpop.f32.mrb[0].mxu0
        %v2110 = vadd.f32 %v1730, %v2109
        %v2111 = vpop.f32.mrb[0].mxu0
        %v2112 = vadd.f32 %v1726, %v2111
        %v2113 = vpop.f32.mrb[0].mxu0
        %v2114 = vadd.f32 %v1730, %v2113
        %2115 = vmatprep.mubr.bf16.mxu0 %v1646
        %2116 = vmatmul.mubr.bf16.gmra.mrb[0].mxu0 %v1645
        %v2117 = vpop.f32.mrb[0].mxu0
        %v2118 = vadd.f32 %v1726, %v2117
        %v2119 = vpop.f32.mrb[0].mxu0
        %v2120 = vadd.f32 %v1730, %v2119
        %v2121 = vpop.f32.mrb[0].mxu0
        %v2122 = vadd.f32 %v1726, %v2121
        %v2123 = vpop.f32.mrb[0].mxu0
        %v2124 = vadd.f32 %v1730, %v2123
        %2125 = vmatprep.mubr.bf16.mxu0 %v1648
        %2126 = vmatmul.mubr.bf16.gmra.mrb[0].mxu0 %v1647
        %v2127 = vpop.f32.mrb[0].mxu0
        %v2128 = vadd.f32 %v1726, %v2127
        %v2129 = vpop.f32.mrb[0].mxu0
        %v2130 = vadd.f32 %v1730, %v2129
        %v2131 = vpop.f32.mrb[0].mxu0
        %v2132 = vadd.f32 %v1726, %v2131
        %v2133 = vpop.f32.mrb[0].mxu0
        %v2134 = vadd.f32 %v1730, %v2133
        %2135 = vmatprep.mubr.bf16.mxu0 %v1650
        %2136 = vmatmul.mubr.bf16.gmra.mrb[0].mxu0 %v1649
        %v2137 = vpop.f32.mrb[0].mxu0
        %v2138 = vadd.f32 %v1726, %v2137
        %v2139 = vpop.f32.mrb[0].mxu0
        %v2140 = vadd.f32 %v1730, %v2139
        %v2141 = vpop.f32.mrb[0].mxu0
        %v2142 = vadd.f32 %v1726, %v2141
        %v2143 = vpop.f32.mrb[0].mxu0
        %v2144 = vadd.f32 %v1730, %v2143
        %2145 = vmatprep.mubr.bf16.mxu0 %v1652
        %2146 = vmatmul.mubr.bf16.gmra.mrb[0].mxu0 %v1651
        %v2147 = vpop.f32.mrb[0].mxu0
        %v2148 = vadd.f32 %v1726, %v2147
        %v2149 = vpop.f32.mrb[0].mxu0
        %v2150 = vadd.f32 %v1730, %v2149
        %v2151 = vpop.f32.mrb[0].mxu0
        %v2152 = vadd.f32 %v1726, %v2151
        %v2153 = vpop.f32.mrb[0].mxu0
        %v2154 = vadd.f32 %v1730, %v2153
        %2155 = vmatprep.mubr.bf16.mxu0 %v1654
        %2156 = vmatmul.mubr.bf16.gmra.mrb[0].mxu0 %v1653
        %v2157 = vpop.f32.mrb[0].mxu0
        %v2158 = vadd.f32 %v1726, %v2157
        %v2159 = vpop.f32.mrb[0].mxu0
        %v2160 = vadd.f32 %v1730, %v2159
        %v2161 = vpop.f32.mrb[0].mxu0
        %v2162 = vadd.f32 %v1726, %v2161
        %v2163 = vpop.f32.mrb[0].mxu0
        %v2164 = vadd.f32 %v1730, %v2163
        %2165 = vmatprep.mubr.bf16.mxu0 %v1656
        %2166 = vmatmul.mubr.bf16.gmra.mrb[0].mxu0 %v1655
        %v2167 = vpop.f32.mrb[0].mxu0
        %v2168 = vadd.f32 %v1726, %v2167
        %v2169 = vpop.f32.mrb[0].mxu0
        %v2170 = vadd.f32 %v1730, %v2169
        %v2171 = vpop.f32.mrb[0].mxu0
        %v2172 = vadd.f32 %v1726, %v2171
        %v2173 = vpop.f32.mrb[0].mxu0
        %v2174 = vadd.f32 %v1730, %v2173
        %2175 = vdwg.mxu0
        %2176 = vmatprep.subr.bf16.mxu0 %v1938
        %2177 = vmatpush1.bf16.msra.mxu0 %v1937
        %2178 = vmatprep.subr.bf16.mxu0 %v1942
        %2179 = vmatpush1.bf16.msra.mxu0 %v1941
        %2180 = vmatprep.subr.bf16.mxu0 %v1946
        %2181 = vmatpush1.bf16.msra.mxu0 %v1945
        %2182 = vmatprep.subr.bf16.mxu0 %v1950
        %2183 = vmatpush1.bf16.msra.mxu0 %v1949
        %2184 = vmatprep.subr.bf16.mxu0 %v1954
        %2185 = vmatpush1.bf16.msra.mxu0 %v1953
        %2186 = vmatprep.subr.bf16.mxu0 %v1958
        %2187 = vmatpush1.bf16.msra.mxu0 %v1957
        %2188 = vmatprep.subr.bf16.mxu0 %v1962
        %2189 = vmatpush1.bf16.msra.mxu0 %v1961
        %2190 = vmatprep.subr.bf16.mxu0 %v1966
        %2191 = vmatpush1.bf16.msra.mxu0 %v1965
        %2192 = vmatprep.subr.bf16.mxu0 %v1970
        %2193 = vmatpush1.bf16.msra.mxu0 %v1969
        %2194 = vmatprep.subr.bf16.mxu0 %v1974
        %2195 = vmatpush1.bf16.msra.mxu0 %v1973
        %2196 = vmatprep.subr.bf16.mxu0 %v1978
        %2197 = vmatpush1.bf16.msra.mxu0 %v1977
        %2198 = vmatprep.subr.bf16.mxu0 %v1982
        %2199 = vmatpush1.bf16.msra.mxu0 %v1981
        %2200 = vmatprep.subr.bf16.mxu0 %v1986
        %2201 = vmatpush1.bf16.msra.mxu0 %v1985
        %2202 = vmatprep.subr.bf16.mxu0 %v1990
        %2203 = vmatpush1.bf16.msra.mxu0 %v1989
        %2204 = vmatprep.subr.bf16.mxu0 %v1994
        %2205 = vmatpush1.bf16.msra.mxu0 %v1993
        %2206 = vmatprep.subr.bf16.mxu0 %v1998
        %2207 = vmatpush1.bf16.msra.mxu0 %v1997
        %2208 = vmatprep.mubr.bf16.mxu0 %v1642
        %2209 = vmatmul.mubr.bf16.gmra.mrb[0].mxu0 %v1641
        %v2210 = vpop.f32.mrb[0].mxu0
        %v2211 = vadd.f32 %v1734, %v2210
        %v2212 = vpop.f32.mrb[0].mxu0
        %v2213 = vadd.f32 %v1738, %v2212
        %v2214 = vpop.f32.mrb[0].mxu0
        %v2215 = vadd.f32 %v1734, %v2214
        %v2216 = vpop.f32.mrb[0].mxu0
        %v2217 = vadd.f32 %v1738, %v2216
        %2218 = vmatprep.mubr.bf16.mxu0 %v1644
        %2219 = vmatmul.mubr.bf16.gmra.mrb[0].mxu0 %v1643
        %v2220 = vpop.f32.mrb[0].mxu0
        %v2221 = vadd.f32 %v1734, %v2220
        %v2222 = vpop.f32.mrb[0].mxu0
        %v2223 = vadd.f32 %v1738, %v2222
        %v2224 = vpop.f32.mrb[0].mxu0
        %v2225 = vadd.f32 %v1734, %v2224
        %v2226 = vpop.f32.mrb[0].mxu0
        %v2227 = vadd.f32 %v1738, %v2226
        %2228 = vmatprep.mubr.bf16.mxu0 %v1646
        %2229 = vmatmul.mubr.bf16.gmra.mrb[0].mxu0 %v1645
        %v2230 = vpop.f32.mrb[0].mxu0
        %v2231 = vadd.f32 %v1734, %v2230
        %v2232 = vpop.f32.mrb[0].mxu0
        %v2233 = vadd.f32 %v1738, %v2232
        %v2234 = vpop.f32.mrb[0].mxu0
        %v2235 = vadd.f32 %v1734, %v2234
        %v2236 = vpop.f32.mrb[0].mxu0
        %v2237 = vadd.f32 %v1738, %v2236
        %2238 = vmatprep.mubr.bf16.mxu0 %v1648
        %2239 = vmatmul.mubr.bf16.gmra.mrb[0].mxu0 %v1647
        %v2240 = vpop.f32.mrb[0].mxu0
        %v2241 = vadd.f32 %v1734, %v2240
        %v2242 = vpop.f32.mrb[0].mxu0
        %v2243 = vadd.f32 %v1738, %v2242
        %v2244 = vpop.f32.mrb[0].mxu0
        %v2245 = vadd.f32 %v1734, %v2244
        %v2246 = vpop.f32.mrb[0].mxu0
        %v2247 = vadd.f32 %v1738, %v2246
        %2248 = vmatprep.mubr.bf16.mxu0 %v1650
        %2249 = vmatmul.mubr.bf16.gmra.mrb[0].mxu0 %v1649
        %v2250 = vpop.f32.mrb[0].mxu0
        %v2251 = vadd.f32 %v1734, %v2250
        %v2252 = vpop.f32.mrb[0].mxu0
        %v2253 = vadd.f32 %v1738, %v2252
        %v2254 = vpop.f32.mrb[0].mxu0
        %v2255 = vadd.f32 %v1734, %v2254
        %v2256 = vpop.f32.mrb[0].mxu0
        %v2257 = vadd.f32 %v1738, %v2256
        %2258 = vmatprep.mubr.bf16.mxu0 %v1652
        %2259 = vmatmul.mubr.bf16.gmra.mrb[0].mxu0 %v1651
        %v2260 = vpop.f32.mrb[0].mxu0
        %v2261 = vadd.f32 %v1734, %v2260
        %v2262 = vpop.f32.mrb[0].mxu0
        %v2263 = vadd.f32 %v1738, %v2262
        %v2264 = vpop.f32.mrb[0].mxu0
        %v2265 = vadd.f32 %v1734, %v2264
        %v2266 = vpop.f32.mrb[0].mxu0
        %v2267 = vadd.f32 %v1738, %v2266
        %2268 = vmatprep.mubr.bf16.mxu0 %v1654
        %2269 = vmatmul.mubr.bf16.gmra.mrb[0].mxu0 %v1653
        %v2270 = vpop.f32.mrb[0].mxu0
        %v2271 = vadd.f32 %v1734, %v2270
        %v2272 = vpop.f32.mrb[0].mxu0
        %v2273 = vadd.f32 %v1738, %v2272
        %v2274 = vpop.f32.mrb[0].mxu0
        %v2275 = vadd.f32 %v1734, %v2274
        %v2276 = vpop.f32.mrb[0].mxu0
        %v2277 = vadd.f32 %v1738, %v2276
        %2278 = vmatprep.mubr.bf16.mxu0 %v1656
        %2279 = vmatmul.mubr.bf16.gmra.mrb[0].mxu0 %v1655
        %v2280 = vpop.f32.mrb[0].mxu0
        %v2281 = vadd.f32 %v1734, %v2280
        %v2282 = vpop.f32.mrb[0].mxu0
        %v2283 = vadd.f32 %v1738, %v2282
        %v2284 = vpop.f32.mrb[0].mxu0
        %v2285 = vadd.f32 %v1734, %v2284
        %v2286 = vpop.f32.mrb[0].mxu0
        %v2287 = vadd.f32 %v1738, %v2286
        %2288 = vdwg.mxu0
        %v2289 = vxor.u32 %v2098, 2147483648
        %v2290 = vxor.u32 %v2102, 2147483648
        %v2291 = vxor.u32 %v2108, 2147483648
        %v2292 = vxor.u32 %v2112, 2147483648
        %v2293 = vxor.u32 %v2118, 2147483648
        %v2294 = vxor.u32 %v2122, 2147483648
        %v2295 = vxor.u32 %v2128, 2147483648
        %v2296 = vxor.u32 %v2132, 2147483648
        %v2297 = vxor.u32 %v2138, 2147483648
        %v2298 = vxor.u32 %v2142, 2147483648
        %v2299 = vxor.u32 %v2148, 2147483648
        %v2300 = vxor.u32 %v2152, 2147483648
        %v2301 = vxor.u32 %v2158, 2147483648
        %v2302 = vxor.u32 %v2162, 2147483648
        %v2303 = vxor.u32 %v2168, 2147483648
        %v2304 = vxor.u32 %v2172, 2147483648
        %v2305 = vmul.f32 %v2289, 1.442695
        %v2306 = vpow.pop %v2305
        %v2307 = vmul.f32 %v2290, 1.442695
        %v2308 = vpow.pop %v2307
        %v2309 = vmul.f32 %v2291, 1.442695
        %v2310 = vpow.pop %v2309
        %v2311 = vmul.f32 %v2292, 1.442695
        %v2312 = vpow.pop %v2311
        %v2313 = vmul.f32 %v2293, 1.442695
        %v2314 = vpow.pop %v2313
        %v2315 = vmul.f32 %v2294, 1.442695
        %v2316 = vpow.pop %v2315
        %v2317 = vmul.f32 %v2295, 1.442695
        %v2318 = vpow.pop %v2317
        %v2319 = vmul.f32 %v2296, 1.442695
        %v2320 = vpow.pop %v2319
        %v2321 = vmul.f32 %v2297, 1.442695
        %v2322 = vpow.pop %v2321
        %v2323 = vmul.f32 %v2298, 1.442695
        %v2324 = vpow.pop %v2323
        %v2325 = vmul.f32 %v2299, 1.442695
        %v2326 = vpow.pop %v2325
        %v2327 = vmul.f32 %v2300, 1.442695
        %v2328 = vpow.pop %v2327
        %v2329 = vmul.f32 %v2301, 1.442695
        %v2330 = vpow.pop %v2329
        %v2331 = vmul.f32 %v2302, 1.442695
        %v2332 = vpow.pop %v2331
        %v2333 = vmul.f32 %v2303, 1.442695
        %v2334 = vpow.pop %v2333
        %v2335 = vmul.f32 %v2304, 1.442695
        %v2336 = vpow.pop %v2335
        %v2337 = vadd.f32 %v2306, 1.0
        %v2338 = vadd.f32 %v2308, 1.0
        %v2339 = vadd.f32 %v2310, 1.0
        %v2340 = vadd.f32 %v2312, 1.0
        %v2341 = vadd.f32 %v2314, 1.0
        %v2342 = vadd.f32 %v2316, 1.0
        %v2343 = vadd.f32 %v2318, 1.0
        %v2344 = vadd.f32 %v2320, 1.0
        %v2345 = vadd.f32 %v2322, 1.0
        %v2346 = vadd.f32 %v2324, 1.0
        %v2347 = vadd.f32 %v2326, 1.0
        %v2348 = vadd.f32 %v2328, 1.0
        %v2349 = vadd.f32 %v2330, 1.0
        %v2350 = vadd.f32 %v2332, 1.0
        %v2351 = vadd.f32 %v2334, 1.0
        %v2352 = vadd.f32 %v2336, 1.0
        %v2353 = vrcp.pop %v2337
        %v2354 = vmul.f32 1.0, %v2353
        %v2355 = vrcp.pop %v2338
        %v2356 = vmul.f32 1.0, %v2355
        %v2357 = vrcp.pop %v2339
        %v2358 = vmul.f32 1.0, %v2357
        %v2359 = vrcp.pop %v2340
        %v2360 = vmul.f32 1.0, %v2359
        %v2361 = vrcp.pop %v2341
        %v2362 = vmul.f32 1.0, %v2361
        %v2363 = vrcp.pop %v2342
        %v2364 = vmul.f32 1.0, %v2363
        %v2365 = vrcp.pop %v2343
        %v2366 = vmul.f32 1.0, %v2365
        %v2367 = vrcp.pop %v2344
        %v2368 = vmul.f32 1.0, %v2367
        %v2369 = vrcp.pop %v2345
        %v2370 = vmul.f32 1.0, %v2369
        %v2371 = vrcp.pop %v2346
        %v2372 = vmul.f32 1.0, %v2371
        %v2373 = vrcp.pop %v2347
        %v2374 = vmul.f32 1.0, %v2373
        %v2375 = vrcp.pop %v2348
        %v2376 = vmul.f32 1.0, %v2375
        %v2377 = vrcp.pop %v2349
        %v2378 = vmul.f32 1.0, %v2377
        %v2379 = vrcp.pop %v2350
        %v2380 = vmul.f32 1.0, %v2379
        %v2381 = vrcp.pop %v2351
        %v2382 = vmul.f32 1.0, %v2381
        %v2383 = vrcp.pop %v2352
        %v2384 = vmul.f32 1.0, %v2383
        %v2385 = vxor.u32 %v2100, 2147483648
        %v2386 = vxor.u32 %v2104, 2147483648
        %v2387 = vxor.u32 %v2110, 2147483648
        %v2388 = vxor.u32 %v2114, 2147483648
        %v2389 = vxor.u32 %v2120, 2147483648
        %v2390 = vxor.u32 %v2124, 2147483648
        %v2391 = vxor.u32 %v2130, 2147483648
        %v2392 = vxor.u32 %v2134, 2147483648
        %v2393 = vxor.u32 %v2140, 2147483648
        %v2394 = vxor.u32 %v2144, 2147483648
        %v2395 = vxor.u32 %v2150, 2147483648
        %v2396 = vxor.u32 %v2154, 2147483648
        %v2397 = vxor.u32 %v2160, 2147483648
        %v2398 = vxor.u32 %v2164, 2147483648
        %v2399 = vxor.u32 %v2170, 2147483648
        %v2400 = vxor.u32 %v2174, 2147483648
        %v2401 = vmul.f32 %v2385, 1.442695
        %v2402 = vpow.pop %v2401
        %v2403 = vmul.f32 %v2386, 1.442695
        %v2404 = vpow.pop %v2403
        %v2405 = vmul.f32 %v2387, 1.442695
        %v2406 = vpow.pop %v2405
        %v2407 = vmul.f32 %v2388, 1.442695
        %v2408 = vpow.pop %v2407
        %v2409 = vmul.f32 %v2389, 1.442695
        %v2410 = vpow.pop %v2409
        %v2411 = vmul.f32 %v2390, 1.442695
        %v2412 = vpow.pop %v2411
        %v2413 = vmul.f32 %v2391, 1.442695
        %v2414 = vpow.pop %v2413
        %v2415 = vmul.f32 %v2392, 1.442695
        %v2416 = vpow.pop %v2415
        %v2417 = vmul.f32 %v2393, 1.442695
        %v2418 = vpow.pop %v2417
        %v2419 = vmul.f32 %v2394, 1.442695
        %v2420 = vpow.pop %v2419
        %v2421 = vmul.f32 %v2395, 1.442695
        %v2422 = vpow.pop %v2421
        %v2423 = vmul.f32 %v2396, 1.442695
        %v2424 = vpow.pop %v2423
        %v2425 = vmul.f32 %v2397, 1.442695
        %v2426 = vpow.pop %v2425
        %v2427 = vmul.f32 %v2398, 1.442695
        %v2428 = vpow.pop %v2427
        %v2429 = vmul.f32 %v2399, 1.442695
        %v2430 = vpow.pop %v2429
        %v2431 = vmul.f32 %v2400, 1.442695
        %v2432 = vpow.pop %v2431
        %v2433 = vadd.f32 %v2402, 1.0
        %v2434 = vadd.f32 %v2404, 1.0
        %v2435 = vadd.f32 %v2406, 1.0
        %v2436 = vadd.f32 %v2408, 1.0
        %v2437 = vadd.f32 %v2410, 1.0
        %v2438 = vadd.f32 %v2412, 1.0
        %v2439 = vadd.f32 %v2414, 1.0
        %v2440 = vadd.f32 %v2416, 1.0
        %v2441 = vadd.f32 %v2418, 1.0
        %v2442 = vadd.f32 %v2420, 1.0
        %v2443 = vadd.f32 %v2422, 1.0
        %v2444 = vadd.f32 %v2424, 1.0
        %v2445 = vadd.f32 %v2426, 1.0
        %v2446 = vadd.f32 %v2428, 1.0
        %v2447 = vadd.f32 %v2430, 1.0
        %v2448 = vadd.f32 %v2432, 1.0
        %v2449 = vrcp.pop %v2433
        %v2450 = vmul.f32 1.0, %v2449
        %v2451 = vrcp.pop %v2434
        %v2452 = vmul.f32 1.0, %v2451
        %v2453 = vrcp.pop %v2435
        %v2454 = vmul.f32 1.0, %v2453
        %v2455 = vrcp.pop %v2436
        %v2456 = vmul.f32 1.0, %v2455
        %v2457 = vrcp.pop %v2437
        %v2458 = vmul.f32 1.0, %v2457
        %v2459 = vrcp.pop %v2438
        %v2460 = vmul.f32 1.0, %v2459
        %v2461 = vrcp.pop %v2439
        %v2462 = vmul.f32 1.0, %v2461
        %v2463 = vrcp.pop %v2440
        %v2464 = vmul.f32 1.0, %v2463
        %v2465 = vrcp.pop %v2441
        %v2466 = vmul.f32 1.0, %v2465
        %v2467 = vrcp.pop %v2442
        %v2468 = vmul.f32 1.0, %v2467
        %v2469 = vrcp.pop %v2443
        %v2470 = vmul.f32 1.0, %v2469
        %v2471 = vrcp.pop %v2444
        %v2472 = vmul.f32 1.0, %v2471
        %v2473 = vrcp.pop %v2445
        %v2474 = vmul.f32 1.0, %v2473
        %v2475 = vrcp.pop %v2446
        %v2476 = vmul.f32 1.0, %v2475
        %v2477 = vrcp.pop %v2447
        %v2478 = vmul.f32 1.0, %v2477
        %v2479 = vrcp.pop %v2448
        %v2480 = vmul.f32 1.0, %v2479
        %v2481 = vtanh.pop %v2211
        %v2482 = vtanh.pop %v2215
        %v2483 = vtanh.pop %v2221
        %v2484 = vtanh.pop %v2225
        %v2485 = vtanh.pop %v2231
        %v2486 = vtanh.pop %v2235
        %v2487 = vtanh.pop %v2241
        %v2488 = vtanh.pop %v2245
        %v2489 = vtanh.pop %v2251
        %v2490 = vtanh.pop %v2255
        %v2491 = vtanh.pop %v2261
        %v2492 = vtanh.pop %v2265
        %v2493 = vtanh.pop %v2271
        %v2494 = vtanh.pop %v2275
        %v2495 = vtanh.pop %v2281
        %v2496 = vtanh.pop %v2285
        %v2497 = vxor.u32 %v2213, 2147483648
        %v2498 = vxor.u32 %v2217, 2147483648
        %v2499 = vxor.u32 %v2223, 2147483648
        %v2500 = vxor.u32 %v2227, 2147483648
        %v2501 = vxor.u32 %v2233, 2147483648
        %v2502 = vxor.u32 %v2237, 2147483648
        %v2503 = vxor.u32 %v2243, 2147483648
        %v2504 = vxor.u32 %v2247, 2147483648
        %v2505 = vxor.u32 %v2253, 2147483648
        %v2506 = vxor.u32 %v2257, 2147483648
        %v2507 = vxor.u32 %v2263, 2147483648
        %v2508 = vxor.u32 %v2267, 2147483648
        %v2509 = vxor.u32 %v2273, 2147483648
        %v2510 = vxor.u32 %v2277, 2147483648
        %v2511 = vxor.u32 %v2283, 2147483648
        %v2512 = vxor.u32 %v2287, 2147483648
        %v2513 = vmul.f32 %v2497, 1.442695
        %v2514 = vpow.pop %v2513
        %v2515 = vmul.f32 %v2498, 1.442695
        %v2516 = vpow.pop %v2515
        %v2517 = vmul.f32 %v2499, 1.442695
        %v2518 = vpow.pop %v2517
        %v2519 = vmul.f32 %v2500, 1.442695
        %v2520 = vpow.pop %v2519
        %v2521 = vmul.f32 %v2501, 1.442695
        %v2522 = vpow.pop %v2521
        %v2523 = vmul.f32 %v2502, 1.442695
        %v2524 = vpow.pop %v2523
        %v2525 = vmul.f32 %v2503, 1.442695
        %v2526 = vpow.pop %v2525
        %v2527 = vmul.f32 %v2504, 1.442695
        %v2528 = vpow.pop %v2527
        %v2529 = vmul.f32 %v2505, 1.442695
        %v2530 = vpow.pop %v2529
        %v2531 = vmul.f32 %v2506, 1.442695
        %v2532 = vpow.pop %v2531
        %v2533 = vmul.f32 %v2507, 1.442695
        %v2534 = vpow.pop %v2533
        %v2535 = vmul.f32 %v2508, 1.442695
        %v2536 = vpow.pop %v2535
        %v2537 = vmul.f32 %v2509, 1.442695
        %v2538 = vpow.pop %v2537
        %v2539 = vmul.f32 %v2510, 1.442695
        %v2540 = vpow.pop %v2539
        %v2541 = vmul.f32 %v2511, 1.442695
        %v2542 = vpow.pop %v2541
        %v2543 = vmul.f32 %v2512, 1.442695
        %v2544 = vpow.pop %v2543
        %v2545 = vadd.f32 %v2514, 1.0
        %v2546 = vadd.f32 %v2516, 1.0
        %v2547 = vadd.f32 %v2518, 1.0
        %v2548 = vadd.f32 %v2520, 1.0
        %v2549 = vadd.f32 %v2522, 1.0
        %v2550 = vadd.f32 %v2524, 1.0
        %v2551 = vadd.f32 %v2526, 1.0
        %v2552 = vadd.f32 %v2528, 1.0
        %v2553 = vadd.f32 %v2530, 1.0
        %v2554 = vadd.f32 %v2532, 1.0
        %v2555 = vadd.f32 %v2534, 1.0
        %v2556 = vadd.f32 %v2536, 1.0
        %v2557 = vadd.f32 %v2538, 1.0
        %v2558 = vadd.f32 %v2540, 1.0
        %v2559 = vadd.f32 %v2542, 1.0
        %v2560 = vadd.f32 %v2544, 1.0
        %v2561 = vrcp.pop %v2545
        %v2562 = vmul.f32 1.0, %v2561
        %v2563 = vrcp.pop %v2546
        %v2564 = vmul.f32 1.0, %v2563
        %v2565 = vrcp.pop %v2547
        %v2566 = vmul.f32 1.0, %v2565
        %v2567 = vrcp.pop %v2548
        %v2568 = vmul.f32 1.0, %v2567
        %v2569 = vrcp.pop %v2549
        %v2570 = vmul.f32 1.0, %v2569
        %v2571 = vrcp.pop %v2550
        %v2572 = vmul.f32 1.0, %v2571
        %v2573 = vrcp.pop %v2551
        %v2574 = vmul.f32 1.0, %v2573
        %v2575 = vrcp.pop %v2552
        %v2576 = vmul.f32 1.0, %v2575
        %v2577 = vrcp.pop %v2553
        %v2578 = vmul.f32 1.0, %v2577
        %v2579 = vrcp.pop %v2554
        %v2580 = vmul.f32 1.0, %v2579
        %v2581 = vrcp.pop %v2555
        %v2582 = vmul.f32 1.0, %v2581
        %v2583 = vrcp.pop %v2556
        %v2584 = vmul.f32 1.0, %v2583
        %v2585 = vrcp.pop %v2557
        %v2586 = vmul.f32 1.0, %v2585
        %v2587 = vrcp.pop %v2558
        %v2588 = vmul.f32 1.0, %v2587
        %v2589 = vrcp.pop %v2559
        %v2590 = vmul.f32 1.0, %v2589
        %v2591 = vrcp.pop %v2560
        %v2592 = vmul.f32 1.0, %v2591
        %v2593 = vmul.f32 %v2450, %v1625
        %v2594 = vmul.f32 %v2452, %v1626
        %v2595 = vmul.f32 %v2454, %v1627
        %v2596 = vmul.f32 %v2456, %v1628
        %v2597 = vmul.f32 %v2458, %v1629
        %v2598 = vmul.f32 %v2460, %v1630
        %v2599 = vmul.f32 %v2462, %v1631
        %v2600 = vmul.f32 %v2464, %v1632
        %v2601 = vmul.f32 %v2466, %v1633
        %v2602 = vmul.f32 %v2468, %v1634
        %v2603 = vmul.f32 %v2470, %v1635
        %v2604 = vmul.f32 %v2472, %v1636
        %v2605 = vmul.f32 %v2474, %v1637
        %v2606 = vmul.f32 %v2476, %v1638
        %v2607 = vmul.f32 %v2478, %v1639
        %v2608 = vmul.f32 %v2480, %v1640
        %v2609 = vmul.f32 %v2354, %v2481
        %v2610 = vmul.f32 %v2356, %v2482
        %v2611 = vmul.f32 %v2358, %v2483
        %v2612 = vmul.f32 %v2360, %v2484
        %v2613 = vmul.f32 %v2362, %v2485
        %v2614 = vmul.f32 %v2364, %v2486
        %v2615 = vmul.f32 %v2366, %v2487
        %v2616 = vmul.f32 %v2368, %v2488
        %v2617 = vmul.f32 %v2370, %v2489
        %v2618 = vmul.f32 %v2372, %v2490
        %v2619 = vmul.f32 %v2374, %v2491
        %v2620 = vmul.f32 %v2376, %v2492
        %v2621 = vmul.f32 %v2378, %v2493
        %v2622 = vmul.f32 %v2380, %v2494
        %v2623 = vmul.f32 %v2382, %v2495
        %v2624 = vmul.f32 %v2384, %v2496
        %v2625 = vadd.f32 %v2593, %v2609
        %v2626 = vadd.f32 %v2594, %v2610
        %v2627 = vadd.f32 %v2595, %v2611
        %v2628 = vadd.f32 %v2596, %v2612
        %v2629 = vadd.f32 %v2597, %v2613
        %v2630 = vadd.f32 %v2598, %v2614
        %v2631 = vadd.f32 %v2599, %v2615
        %v2632 = vadd.f32 %v2600, %v2616
        %v2633 = vadd.f32 %v2601, %v2617
        %v2634 = vadd.f32 %v2602, %v2618
        %v2635 = vadd.f32 %v2603, %v2619
        %v2636 = vadd.f32 %v2604, %v2620
        %v2637 = vadd.f32 %v2605, %v2621
        %v2638 = vadd.f32 %v2606, %v2622
        %v2639 = vadd.f32 %v2607, %v2623
        %v2640 = vadd.f32 %v2608, %v2624
        %v2641 = vtanh.pop %v2625
        %v2642 = vtanh.pop %v2626
        %v2643 = vtanh.pop %v2627
        %v2644 = vtanh.pop %v2628
        %v2645 = vtanh.pop %v2629
        %v2646 = vtanh.pop %v2630
        %v2647 = vtanh.pop %v2631
        %v2648 = vtanh.pop %v2632
        %v2649 = vtanh.pop %v2633
        %v2650 = vtanh.pop %v2634
        %v2651 = vtanh.pop %v2635
        %v2652 = vtanh.pop %v2636
        %v2653 = vtanh.pop %v2637
        %v2654 = vtanh.pop %v2638
        %v2655 = vtanh.pop %v2639
        %v2656 = vtanh.pop %v2640
        %v2657 = vmul.f32 %v2562, %v2641
        %v2658 = vmul.f32 %v2564, %v2642
        %v2659 = vmul.f32 %v2566, %v2643
        %v2660 = vmul.f32 %v2568, %v2644
        %v2661 = vmul.f32 %v2570, %v2645
        %v2662 = vmul.f32 %v2572, %v2646
        %v2663 = vmul.f32 %v2574, %v2647
        %v2664 = vmul.f32 %v2576, %v2648
        %v2665 = vmul.f32 %v2578, %v2649
        %v2666 = vmul.f32 %v2580, %v2650
        %v2667 = vmul.f32 %v2582, %v2651
        %v2668 = vmul.f32 %v2584, %v2652
        %v2669 = vmul.f32 %v2586, %v2653
        %v2670 = vmul.f32 %v2588, %v2654
        %v2671 = vmul.f32 %v2590, %v2655
        %v2672 = vmul.f32 %v2592, %v2656
        %v2673 = vsel %vm557, %v2625, %v1625
        %v2674 = vsel %vm558, %v2626, %v1626
        %v2675 = vsel %vm559, %v2627, %v1627
        %v2676 = vsel %vm560, %v2628, %v1628
        %v2677 = vsel %vm561, %v2629, %v1629
        %v2678 = vsel %vm562, %v2630, %v1630
        %v2679 = vsel %vm563, %v2631, %v1631
        %v2680 = vsel %vm564, %v2632, %v1632
        %v2681 = vsel %vm565, %v2633, %v1633
        %v2682 = vsel %vm566, %v2634, %v1634
        %v2683 = vsel %vm567, %v2635, %v1635
        %v2684 = vsel %vm568, %v2636, %v1636
        %v2685 = vsel %vm569, %v2637, %v1637
        %v2686 = vsel %vm570, %v2638, %v1638
        %v2687 = vsel %vm571, %v2639, %v1639
        %v2688 = vsel %vm572, %v2640, %v1640
        %v2689 = vsel %vm557, %v2657, %v1608
        %v2690 = vsel %vm558, %v2658, %v1609
        %v2691 = vsel %vm559, %v2659, %v1610
        %v2692 = vsel %vm560, %v2660, %v1611
        %v2693 = vsel %vm561, %v2661, %v1612
        %v2694 = vsel %vm562, %v2662, %v1613
        %v2695 = vsel %vm563, %v2663, %v1614
        %v2696 = vsel %vm564, %v2664, %v1615
        %v2697 = vsel %vm565, %v2665, %v1616
        %v2698 = vsel %vm566, %v2666, %v1617
        %v2699 = vsel %vm567, %v2667, %v1618
        %v2700 = vsel %vm568, %v2668, %v1619
        %v2701 = vsel %vm569, %v2669, %v1620
        %v2702 = vsel %vm570, %v2670, %v1621
        %v2703 = vsel %vm571, %v2671, %v1622
        %v2704 = vsel %vm572, %v2672, %v1623
        %2705 = vst [vmem:[%s1607] sm:$0xff] %v2689
        %2706 = vst [vmem:[%s1607 + $0x8] sm:$0xff] %v2690
        %2707 = vst [vmem:[%s1607 + $0x10] sm:$0xff] %v2691
        %2708 = vst [vmem:[%s1607 + $0x18] sm:$0xff] %v2692
        %2709 = vst [vmem:[%s1607 + $0x20] sm:$0xff] %v2693
        %2710 = vst [vmem:[%s1607 + $0x28] sm:$0xff] %v2694
        %2711 = vst [vmem:[%s1607 + $0x30] sm:$0xff] %v2695
        %2712 = vst [vmem:[%s1607 + $0x38] sm:$0xff] %v2696
        %2713 = vst [vmem:[%s1607 + $0x40] sm:$0xff] %v2697
        %2714 = vst [vmem:[%s1607 + $0x48] sm:$0xff] %v2698
        %2715 = vst [vmem:[%s1607 + $0x50] sm:$0xff] %v2699
        %2716 = vst [vmem:[%s1607 + $0x58] sm:$0xff] %v2700
        %2717 = vst [vmem:[%s1607 + $0x60] sm:$0xff] %v2701
        %2718 = vst [vmem:[%s1607 + $0x68] sm:$0xff] %v2702
        %2719 = vst [vmem:[%s1607 + $0x70] sm:$0xff] %v2703
        %2720 = vst [vmem:[%s1607 + $0x78] sm:$0xff] %v2704
        %2721 = vst [vmem:[%s1624] sm:$0xff] %v2673
        %2722 = vst [vmem:[%s1624 + $0x8] sm:$0xff] %v2674
        %2723 = vst [vmem:[%s1624 + $0x10] sm:$0xff] %v2675
        %2724 = vst [vmem:[%s1624 + $0x18] sm:$0xff] %v2676
        %2725 = vst [vmem:[%s1624 + $0x20] sm:$0xff] %v2677
        %2726 = vst [vmem:[%s1624 + $0x28] sm:$0xff] %v2678
        %2727 = vst [vmem:[%s1624 + $0x30] sm:$0xff] %v2679
        %2728 = vst [vmem:[%s1624 + $0x38] sm:$0xff] %v2680
        %2729 = vst [vmem:[%s1624 + $0x40] sm:$0xff] %v2681
        %2730 = vst [vmem:[%s1624 + $0x48] sm:$0xff] %v2682
        %2731 = vst [vmem:[%s1624 + $0x50] sm:$0xff] %v2683
        %2732 = vst [vmem:[%s1624 + $0x58] sm:$0xff] %v2684
        %2733 = vst [vmem:[%s1624 + $0x60] sm:$0xff] %v2685
        %2734 = vst [vmem:[%s1624 + $0x68] sm:$0xff] %v2686
        %2735 = vst [vmem:[%s1624 + $0x70] sm:$0xff] %v2687
        %2736 = vst [vmem:[%s1624 + $0x78] sm:$0xff] %v2688
        %p2737 = scmp.eq.s32.totalorder %s32, 7
        // Predicated region
        $region69: #{tpu_custom_call.1} parent=43 // pred_check
          %p2738 = pneg %p2737
        $region70: #{tpu_custom_call.1} parent=43 // pred_check_branch
          %2740 = sbr.rel (%p2738) target = $region72
        $region71: #{tpu_custom_call.1} parent=43 // pred_region
          %v2741 = vld [vmem:[%s333] sm:$0xff]
          %v2742 = vld [vmem:[%s333 + $0x8] sm:$0xff]
          %v2743 = vld [vmem:[%s333 + $0x10] sm:$0xff]
          %v2744 = vld [vmem:[%s333 + $0x18] sm:$0xff]
          %v2745 = vld [vmem:[%s333 + $0x20] sm:$0xff]
          %v2746 = vld [vmem:[%s333 + $0x28] sm:$0xff]
          %v2747 = vld [vmem:[%s333 + $0x30] sm:$0xff]
          %v2748 = vld [vmem:[%s333 + $0x38] sm:$0xff]
          %v2749 = vld [vmem:[%s333 + $0x40] sm:$0xff]
          %v2750 = vld [vmem:[%s333 + $0x48] sm:$0xff]
          %v2751 = vld [vmem:[%s333 + $0x50] sm:$0xff]
          %v2752 = vld [vmem:[%s333 + $0x58] sm:$0xff]
          %v2753 = vld [vmem:[%s333 + $0x60] sm:$0xff]
          %v2754 = vld [vmem:[%s333 + $0x68] sm:$0xff]
          %v2755 = vld [vmem:[%s333 + $0x70] sm:$0xff]
          %v2756 = vld [vmem:[%s333 + $0x78] sm:$0xff]
          %v2757 = vmul.f32 %v2689, %v2741
          %v2758 = vmul.f32 %v2690, %v2742
          %v2759 = vmul.f32 %v2691, %v2743
          %v2760 = vmul.f32 %v2692, %v2744
          %v2761 = vmul.f32 %v2693, %v2745
          %v2762 = vmul.f32 %v2694, %v2746
          %v2763 = vmul.f32 %v2695, %v2747
          %v2764 = vmul.f32 %v2696, %v2748
          %v2765 = vmul.f32 %v2697, %v2749
          %v2766 = vmul.f32 %v2698, %v2750
          %v2767 = vmul.f32 %v2699, %v2751
          %v2768 = vmul.f32 %v2700, %v2752
          %v2769 = vmul.f32 %v2701, %v2753
          %v2770 = vmul.f32 %v2702, %v2754
          %v2771 = vmul.f32 %v2703, %v2755
          %v2772 = vmul.f32 %v2704, %v2756
          %2773 = vadd.xlane.f32.xlu0 %v2757
          %v2774 = vpop.xlane.xlu0 %2773
          %2775 = vadd.xlane.f32.xlu0 %v2758
          %v2776 = vpop.xlane.xlu0 %2775
          %2777 = vadd.xlane.f32.xlu0 %v2759
          %v2778 = vpop.xlane.xlu0 %2777
          %2779 = vadd.xlane.f32.xlu0 %v2760
          %v2780 = vpop.xlane.xlu0 %2779
          %2781 = vadd.xlane.f32.xlu0 %v2761
          %v2782 = vpop.xlane.xlu0 %2781
          %2783 = vadd.xlane.f32.xlu0 %v2762
          %v2784 = vpop.xlane.xlu0 %2783
          %2785 = vadd.xlane.f32.xlu0 %v2763
          %v2786 = vpop.xlane.xlu0 %2785
          %2787 = vadd.xlane.f32.xlu0 %v2764
          %v2788 = vpop.xlane.xlu0 %2787
          %2789 = vadd.xlane.f32.xlu0 %v2765
          %v2790 = vpop.xlane.xlu0 %2789
          %2791 = vadd.xlane.f32.xlu0 %v2766
          %v2792 = vpop.xlane.xlu0 %2791
          %2793 = vadd.xlane.f32.xlu0 %v2767
          %v2794 = vpop.xlane.xlu0 %2793
          %2795 = vadd.xlane.f32.xlu0 %v2768
          %v2796 = vpop.xlane.xlu0 %2795
          %2797 = vadd.xlane.f32.xlu0 %v2769
          %v2798 = vpop.xlane.xlu0 %2797
          %2799 = vadd.xlane.f32.xlu0 %v2770
          %v2800 = vpop.xlane.xlu0 %2799
          %2801 = vadd.xlane.f32.xlu0 %v2771
          %v2802 = vpop.xlane.xlu0 %2801
          %2803 = vadd.xlane.f32.xlu0 %v2772
          %v2804 = vpop.xlane.xlu0 %2803
          %v2821 = vlaneseq
          %v2822 = vand.u32 %v2821, 127
          %v2823 = vlaneseq
          %v2824 = vshrl.u32 %v2823, 7
          %v2825 = vsub.s32 %v2822, %v2824
          %v2826 = vrot.slane %v2774, %v2825
          %v2827 = vadd.s32 %v2822, 4294967288
          %v2828 = vlaneseq
          %v2829 = vshrl.u32 %v2828, 7
          %v2830 = vsub.s32 %v2827, %v2829
          %v2831 = vrot.slane %v2776, %v2830
          %vm2832 = vcmask 130112
          %v2833 = vsel %vm2832, %v2831, %v2826
          %v2834 = vadd.s32 %v2822, 4294967280
          %v2835 = vlaneseq
          %v2836 = vshrl.u32 %v2835, 7
          %v2837 = vsub.s32 %v2834, %v2836
          %v2838 = vrot.slane %v2778, %v2837
          %vm2839 = vcmask 195712
          %v2840 = vsel %vm2839, %v2838, %v2833
          %v2841 = vadd.s32 %v2822, 4294967272
          %v2842 = vlaneseq
          %v2843 = vshrl.u32 %v2842, 7
          %v2844 = vsub.s32 %v2841, %v2843
          %v2845 = vrot.slane %v2780, %v2844
          %vm2846 = vcmask 261312
          %v2847 = vsel %vm2846, %v2845, %v2840
          %v2848 = vadd.s32 %v2822, 4294967264
          %v2849 = vlaneseq
          %v2850 = vshrl.u32 %v2849, 7
          %v2851 = vsub.s32 %v2848, %v2850
          %v2852 = vrot.slane %v2782, %v2851
          %vm2853 = vcmask 326912
          %v2854 = vsel %vm2853, %v2852, %v2847
          %v2855 = vadd.s32 %v2822, 4294967256
          %v2856 = vlaneseq
          %v2857 = vshrl.u32 %v2856, 7
          %v2858 = vsub.s32 %v2855, %v2857
          %v2859 = vrot.slane %v2784, %v2858
          %vm2860 = vcmask 392512
          %v2861 = vsel %vm2860, %v2859, %v2854
          %v2862 = vadd.s32 %v2822, 4294967248
          %v2863 = vlaneseq
          %v2864 = vshrl.u32 %v2863, 7
          %v2865 = vsub.s32 %v2862, %v2864
          %v2866 = vrot.slane %v2786, %v2865
          %vm2867 = vcmask 458112
          %v2868 = vsel %vm2867, %v2866, %v2861
          %v2869 = vadd.s32 %v2822, 4294967240
          %v2870 = vlaneseq
          %v2871 = vshrl.u32 %v2870, 7
          %v2872 = vsub.s32 %v2869, %v2871
          %v2873 = vrot.slane %v2788, %v2872
          %vm2874 = vcmask 523712
          %v2875 = vsel %vm2874, %v2873, %v2868
          %v2876 = vadd.s32 %v2822, 4294967232
          %v2877 = vlaneseq
          %v2878 = vshrl.u32 %v2877, 7
          %v2879 = vsub.s32 %v2876, %v2878
          %v2880 = vrot.slane %v2790, %v2879
          %vm2881 = vcmask 589312
          %v2882 = vsel %vm2881, %v2880, %v2875
          %v2883 = vadd.s32 %v2822, 4294967224
          %v2884 = vlaneseq
          %v2885 = vshrl.u32 %v2884, 7
          %v2886 = vsub.s32 %v2883, %v2885
          %v2887 = vrot.slane %v2792, %v2886
          %vm2888 = vcmask 654912
          %v2889 = vsel %vm2888, %v2887, %v2882
          %v2890 = vadd.s32 %v2822, 4294967216
          %v2891 = vlaneseq
          %v2892 = vshrl.u32 %v2891, 7
          %v2893 = vsub.s32 %v2890, %v2892
          %v2894 = vrot.slane %v2794, %v2893
          %vm2895 = vcmask 720512
          %v2896 = vsel %vm2895, %v2894, %v2889
          %v2897 = vadd.s32 %v2822, 4294967208
          %v2898 = vlaneseq
          %v2899 = vshrl.u32 %v2898, 7
          %v2900 = vsub.s32 %v2897, %v2899
          %v2901 = vrot.slane %v2796, %v2900
          %vm2902 = vcmask 786112
          %v2903 = vsel %vm2902, %v2901, %v2896
          %v2904 = vadd.s32 %v2822, 4294967200
          %v2905 = vlaneseq
          %v2906 = vshrl.u32 %v2905, 7
          %v2907 = vsub.s32 %v2904, %v2906
          %v2908 = vrot.slane %v2798, %v2907
          %vm2909 = vcmask 851712
          %v2910 = vsel %vm2909, %v2908, %v2903
          %v2911 = vadd.s32 %v2822, 4294967192
          %v2912 = vlaneseq
          %v2913 = vshrl.u32 %v2912, 7
          %v2914 = vsub.s32 %v2911, %v2913
          %v2915 = vrot.slane %v2800, %v2914
          %vm2916 = vcmask 917312
          %v2917 = vsel %vm2916, %v2915, %v2910
          %v2918 = vadd.s32 %v2822, 4294967184
          %v2919 = vlaneseq
          %v2920 = vshrl.u32 %v2919, 7
          %v2921 = vsub.s32 %v2918, %v2920
          %v2922 = vrot.slane %v2802, %v2921
          %vm2923 = vcmask 982912
          %v2924 = vsel %vm2923, %v2922, %v2917
          %v2925 = vadd.s32 %v2822, 4294967176
          %v2926 = vlaneseq
          %v2927 = vshrl.u32 %v2926, 7
          %v2928 = vsub.s32 %v2925, %v2927
          %v2929 = vrot.slane %v2804, %v2928
          %vm2930 = vcmask 1048512
          %v2931 = vsel %vm2930, %v2929, %v2924
          %2933 = vst [vmem:[%s382] sm:$0x1] %v2931
        $region72: #{tpu_custom_call.1} parent=43 // pred_fallthru
          _
        %s2934 = sand.u32 %s190, 1
        %s2935 = scalar_lea.sflag [#allocation6], %s2934
        %s2936 = sand.u32 %s190, 1
        %s2937 = scalar_lea.vmem [#allocation13], %s2936
        // Predicated region
        $region73: #{tpu_custom_call.1} parent=43 // pred_check
          %p2938 = pneg %p200
        $region74: #{tpu_custom_call.1} parent=43 // pred_check_branch
          %2940 = sbr.rel (%p2938) target = $region76
        $region75: #{tpu_custom_call.1} parent=43 // pred_region
          %s2942 = ssub.s32 16, 16
          %2943 = vsyncadd %s2935, %s2942
          %s2944 = smul.addr %s31, 16
          %s2945 = scalar_lea.hbm %s6, %s2944
          %s2947 = sshll.u32 %s2937, 4
          %s2948 = int_to_ptr.vmem [resolvable:$true] %s2947
          %2950 = dma.vmem_to_hbm [thread:$0]  %s2948, 16, %s2945, %s2935
        $region76: #{tpu_custom_call.1} parent=43 // pred_fallthru
          _
      $region44: #{tpu_custom_call.1} parent=5 // pred_fallthru
        _
      %p2951 = scmp.le.s32.totalorder 2, %s22
      // Predicated region
      $region77: #{tpu_custom_call.1} parent=5 // pred_check
        %p2952 = pneg %p2951
      $region78: #{tpu_custom_call.1} parent=5 // pred_check_branch
        %2954 = sbr.rel (%p2952) target = $region80
      $region79: #{tpu_custom_call.1} parent=5 // pred_region
        %s2955 = ssub.s32 %s22, 2
        // Predicated region
        $region81: #{tpu_custom_call.1} parent=79 // pred_check
          %p2956 = pneg %p206
        $region82: #{tpu_custom_call.1} parent=79 // pred_check_branch
          %2958 = sbr.rel (%p2956) target = $region84
        $region83: #{tpu_custom_call.1} parent=79 // pred_region
          %s2959 = sand.u32 %s191, 1
          %s2960 = scalar_lea.sflag [#allocation6], %s2959
          %s2961 = sand.u32 %s191, 1
          %s2962 = scalar_lea.vmem [#allocation13], %s2961
          %2963 = dma.done %s2960, 16
        $region84: #{tpu_custom_call.1} parent=79 // pred_fallthru
          _
      $region80: #{tpu_custom_call.1} parent=5 // pred_fallthru
        _
    $region6: #{tpu_custom_call.1} parent=1 // loop_footer
      %s26 = sadd.s32 1, %s22
    $region7: #{tpu_custom_call.1} parent=1 // loop_footer_branch
      %21 = sbr.rel target = $region3
    $region8: #{tpu_custom_call.1} parent=1 // loop_exit
      _
    %2964 = vsyncpa [#allocation5], 1
    %s2965 = scalar_lea.sflag [#allocation5], 1
    %2966 = vsyncpa %s2965, 1
    %2967 = vsyncpa [#allocation8], 1
    %s2968 = scalar_lea.sflag [#allocation8], 1
    %2969 = vsyncpa %s2968, 1
    %2970 = vsyncpa [#allocation11], 1
    %2971 = vsyncpa [#allocation6], 1
    %s2972 = scalar_lea.sflag [#allocation6], 1
    %2973 = vsyncpa %s2972, 1

</llo_original>
